<compile_context>
chip_gen: v6e
topology: v6e:2x2x1
jax: 0.10.0
libtpu: 0.0.40
codegen_flags: <defaults>
</compile_context>

<pallas_src>
import jax
import jax.numpy as jnp
from jax.experimental import pallas as pl
from jax.experimental.pallas import tpu as pltpu

# ---- synthetic model config (small, but lane-dense: H, FF multiples of 128) -
B, S, H = 2, 8, 128         # batch, sequence length, hidden size
NH, HD = 2, 64              # num heads, head dim (NH * HD == H)
FF = 256                    # feed-forward intermediate size
VOCAB = 100                 # vocab size
MAX_POS = 16                # max position embeddings
NLAYERS = 2                 # number of transformer layers
EPS = 1e-12                 # BERT LayerNorm eps


# ---------------------------- in-kernel helpers ------------------------------
def _layernorm(x, g, b):
    # f32 math (v5e has no bf16 VPU/EUP; numerically needed anyway).
    mu = jnp.mean(x, axis=-1, keepdims=True)
    var = jnp.mean((x - mu) ** 2, axis=-1, keepdims=True)
    return (x - mu) * jax.lax.rsqrt(var + EPS) * g + b


def _gelu(x):
    # TODO(synk): HF BERT/DPR uses the exact erf GELU; tanh approximation here.
    c = 0.7978845608028654  # sqrt(2/pi)
    return 0.5 * x * (1.0 + jnp.tanh(c * (x + 0.044715 * x * x * x)))


# ------------------------------- fused kernel --------------------------------
def fused_encoder_kernel(x_ref, embg_ref, embb_ref,
                         wq_ref, bq_ref, wk_ref, bk_ref, wv_ref, bv_ref,
                         wo_ref, bo_ref, ln1g_ref, ln1b_ref,
                         w1_ref, b1_ref, w2_ref, b2_ref,
                         ln2g_ref, ln2b_ref, o_ref):
    """grid = (B,). One sequence per grid step; all layers run in this body."""
    # Embedding LayerNorm.
    x = _layernorm(x_ref[...], embg_ref[...], embb_ref[...])        # [S, H] f32

    # Statically unrolled layer loop (NLAYERS is tiny); activation stays a value.
    for l in range(NLAYERS):
        xb = x.astype(jnp.bfloat16)
        xh = jnp.broadcast_to(xb, (NH, S, H))          # head-batched LHS (cheap)

        # Head-major projections: contraction over the full H=128 lanes, no
        # lane-64 slicing.  1/sqrt(HD) is folded into wq/bq at init time.
        qh = jnp.einsum('nsh,nhd->nsd', xh, wq_ref[l],
                        preferred_element_type=jnp.float32) + bq_ref[l]
        kh = jnp.einsum('nsh,nhd->nsd', xh, wk_ref[l],
                        preferred_element_type=jnp.float32) + bk_ref[l]
        vh = jnp.einsum('nsh,nhd->nsd', xh, wv_ref[l],
                        preferred_element_type=jnp.float32) + bv_ref[l]

        # TODO(synk): attention_mask support omitted (all tokens attended).
        s = jnp.einsum('nqd,nkd->nqk', qh.astype(jnp.bfloat16),
                       kh.astype(jnp.bfloat16),
                       preferred_element_type=jnp.float32)          # [NH, S, S]
        s = s - jnp.max(s, axis=-1, keepdims=True)
        pexp = jnp.exp(s)
        pexp = pexp * pl.reciprocal(jnp.sum(pexp, axis=-1, keepdims=True),
                                    approx=True)
        ctx = jnp.einsum('nqk,nkd->nqd', pexp.astype(jnp.bfloat16),
                         vh.astype(jnp.bfloat16),
                         preferred_element_type=jnp.float32)        # [NH, S, HD]

        # Re-concat heads along lanes (pure layout) and do ONE full-width
        # [S,128] @ [128,128] output projection.
        ctx_flat = jnp.concatenate([ctx[n] for n in range(NH)], axis=-1)
        attn = jnp.dot(ctx_flat.astype(jnp.bfloat16), wo_ref[l],
                       preferred_element_type=jnp.float32) + bo_ref[l]

        x1 = _layernorm(x + attn, ln1g_ref[l], ln1b_ref[l])

        # ---- feed-forward -----------------------------------------------------
        h1 = jnp.dot(x1.astype(jnp.bfloat16), w1_ref[l],
                     preferred_element_type=jnp.float32) + b1_ref[l]
        h1 = _gelu(h1)
        ffn = jnp.dot(h1.astype(jnp.bfloat16), w2_ref[l],
                      preferred_element_type=jnp.float32) + b2_ref[l]

        x = _layernorm(x1 + ffn, ln2g_ref[l], ln2b_ref[l])

    # Only the CLS row leaves the kernel (lane-dense 128-wide store).
    o_ref[...] = x[0:1, :]


# ----------------------------- pallas wrapper ---------------------------------
def fused_encoder(x, p):
    """x: [B, S, H] f32 embedded input -> CLS hidden state [B, 1, H] f32."""

    def vspec(arr):
        # Full-array VMEM block with a constant index_map: fetched once,
        # resident across all grid steps (no per-layer / per-batch streaming).
        nd = arr.ndim
        return pl.BlockSpec(arr.shape, lambda b, _nd=nd: (0,) * _nd)

    weight_names = ['emb_ln_g', 'emb_ln_b',
                    'wq', 'bq', 'wk', 'bk', 'wv', 'bv',
                    'wo', 'bo', 'ln1_g', 'ln1_b',
                    'w1', 'b1', 'w2', 'b2', 'ln2_g', 'ln2_b']
    weights = [p[n] for n in weight_names]

    in_specs = ([pl.BlockSpec((None, S, H), lambda b: (b, 0, 0))]   # per-seq input
                + [vspec(w) for w in weights])

    return pl.pallas_call(
        fused_encoder_kernel,
        out_shape=jax.ShapeDtypeStruct((B, 1, H), jnp.float32),
        grid=(B,),
        in_specs=in_specs,
        out_specs=pl.BlockSpec((None, 1, H), lambda b: (b, 0, 0)),
        compiler_params=pltpu.CompilerParams(
            dimension_semantics=("parallel",),          # v7x: one sequence per TC
            vmem_limit_bytes=32 * 1024 * 1024),
    )(x, *weights)


# ------------------------- deterministic param init ---------------------------
def init_params(key):
    keys = iter(jax.random.split(key, 12))
    scale = 0.02

    def mat(shape):   # weights stored bf16 (MXU operands)
        return (scale * jax.random.normal(next(keys), shape, jnp.float32)
                ).astype(jnp.bfloat16)

    # Per-head Q projection with 1/sqrt(HD) folded in at init (a real
    # checkpoint's [H, H] nn.Linear weight maps here via
    # W.T.reshape(H, NH, HD).transpose(1, 0, 2)).
    qk_scale = 1.0 / (HD ** 0.5)
    wq = ((scale * jax.random.normal(next(keys), (NLAYERS, NH, H, HD),
                                     jnp.float32)) * qk_scale
          ).astype(jnp.bfloat16)

    return {
        'word_emb': mat((VOCAB, H)),
        'pos_emb': mat((MAX_POS, H)),
        'type_emb': mat((2, H)),
        'emb_ln_g': jnp.ones((1, H), jnp.float32),
        'emb_ln_b': jnp.zeros((1, H), jnp.float32),
        # per-layer weights stacked along a leading L axis; Q/K/V head-major:
        'wq': wq,                                              # scale pre-folded
        'bq': jnp.zeros((NLAYERS, NH, 1, HD), jnp.float32),    # (would be scaled too)
        'wk': mat((NLAYERS, NH, H, HD)),
        'bk': jnp.zeros((NLAYERS, NH, 1, HD), jnp.float32),
        'wv': mat((NLAYERS, NH, H, HD)),
        'bv': jnp.zeros((NLAYERS, NH, 1, HD), jnp.float32),
        'wo': mat((NLAYERS, H, H)),                            # concat-heads @ Wo
        'bo': jnp.zeros((NLAYERS, 1, H), jnp.float32),
        'ln1_g': jnp.ones((NLAYERS, 1, H), jnp.float32),
        'ln1_b': jnp.zeros((NLAYERS, 1, H), jnp.float32),
        'w1': mat((NLAYERS, H, FF)),
        'b1': jnp.zeros((NLAYERS, 1, FF), jnp.float32),
        'w2': mat((NLAYERS, FF, H)),
        'b2': jnp.zeros((NLAYERS, 1, H), jnp.float32),
        'ln2_g': jnp.ones((NLAYERS, 1, H), jnp.float32),
        'ln2_b': jnp.zeros((NLAYERS, 1, H), jnp.float32),
    }


# ------------------------------ forward pass -----------------------------------
def dpr_question_encoder_forward(params, input_ids):
    """Equivalent of DPRQuestionEncoder.forward: last_hidden_state[:, 0]."""
    # Embedding gathers stay in plain JAX (glue); summed in f32.
    positions = jnp.arange(input_ids.shape[1])
    x = (params['word_emb'][input_ids].astype(jnp.float32)
         + params['pos_emb'][positions][None, :, :].astype(jnp.float32)
         + params['type_emb'][0][None, None, :].astype(jnp.float32))   # [B,S,H]

    cls = fused_encoder(x, params)      # one fused pallas_call -> [B, 1, H]
    return cls[:, 0]                    # CLS token, [B, H]


# ----------------------------------- main ---------------------------------------
if __name__ == "__main__":
    key = jax.random.PRNGKey(0)
    k_params, k_ids = jax.random.split(key)

    params = init_params(k_params)
    input_ids = jax.random.randint(k_ids, (B, S), 0, VOCAB, dtype=jnp.int32)

    out = jax.jit(dpr_question_encoder_forward)(params, input_ids)
    out = jax.block_until_ready(out)

    assert out.shape == (B, H), out.shape
    assert out.dtype == jnp.float32
    assert bool(jnp.all(jnp.isfinite(out)))
    print("KERNEL_OK")
</pallas_src>

<mosaic_0001>
module attributes {stable_mosaic.version = 11 : i64} {
  func.func @fused_encoder_kernel(%arg0: i32, %arg1: memref<1x8x128xf32, #tpu.memory_space<vmem>>, %arg2: memref<1x128xf32, #tpu.memory_space<vmem>>, %arg3: memref<1x128xf32, #tpu.memory_space<vmem>>, %arg4: memref<2x2x128x64xbf16, #tpu.memory_space<vmem>>, %arg5: memref<2x2x1x64xf32, #tpu.memory_space<vmem>>, %arg6: memref<2x2x128x64xbf16, #tpu.memory_space<vmem>>, %arg7: memref<2x2x1x64xf32, #tpu.memory_space<vmem>>, %arg8: memref<2x2x128x64xbf16, #tpu.memory_space<vmem>>, %arg9: memref<2x2x1x64xf32, #tpu.memory_space<vmem>>, %arg10: memref<2x128x128xbf16, #tpu.memory_space<vmem>>, %arg11: memref<2x1x128xf32, #tpu.memory_space<vmem>>, %arg12: memref<2x1x128xf32, #tpu.memory_space<vmem>>, %arg13: memref<2x1x128xf32, #tpu.memory_space<vmem>>, %arg14: memref<2x128x256xbf16, #tpu.memory_space<vmem>>, %arg15: memref<2x1x256xf32, #tpu.memory_space<vmem>>, %arg16: memref<2x256x128xbf16, #tpu.memory_space<vmem>>, %arg17: memref<2x1x128xf32, #tpu.memory_space<vmem>>, %arg18: memref<2x1x128xf32, #tpu.memory_space<vmem>>, %arg19: memref<2x1x128xf32, #tpu.memory_space<vmem>>, %arg20: memref<1x1x128xf32, #tpu.memory_space<vmem>>) attributes {dimension_semantics = [#tpu.dimension_semantics<parallel>], iteration_bounds = array<i64: 2>, scalar_prefetch = 0 : i64, scratch_operands = 0 : i64, tpu.core_type = #tpu.core_type<tc>, window_params = [{transform_indices = @transform_0, window_bounds = array<i64: 1, 8, 128>}, {pipeline_mode = #tpu.pipeline_mode<synchronous>, transform_indices = @transform_1, window_bounds = array<i64: 1, 128>}, {pipeline_mode = #tpu.pipeline_mode<synchronous>, transform_indices = @transform_2, window_bounds = array<i64: 1, 128>}, {pipeline_mode = #tpu.pipeline_mode<synchronous>, transform_indices = @transform_3, window_bounds = array<i64: 2, 2, 128, 64>}, {pipeline_mode = #tpu.pipeline_mode<synchronous>, transform_indices = @transform_4, window_bounds = array<i64: 2, 2, 1, 64>}, {pipeline_mode = #tpu.pipeline_mode<synchronous>, transform_indices = @transform_5, window_bounds = array<i64: 2, 2, 128, 64>}, {pipeline_mode = #tpu.pipeline_mode<synchronous>, transform_indices = @transform_6, window_bounds = array<i64: 2, 2, 1, 64>}, {pipeline_mode = #tpu.pipeline_mode<synchronous>, transform_indices = @transform_7, window_bounds = array<i64: 2, 2, 128, 64>}, {pipeline_mode = #tpu.pipeline_mode<synchronous>, transform_indices = @transform_8, window_bounds = array<i64: 2, 2, 1, 64>}, {pipeline_mode = #tpu.pipeline_mode<synchronous>, transform_indices = @transform_9, window_bounds = array<i64: 2, 128, 128>}, {pipeline_mode = #tpu.pipeline_mode<synchronous>, transform_indices = @transform_10, window_bounds = array<i64: 2, 1, 128>}, {pipeline_mode = #tpu.pipeline_mode<synchronous>, transform_indices = @transform_11, window_bounds = array<i64: 2, 1, 128>}, {pipeline_mode = #tpu.pipeline_mode<synchronous>, transform_indices = @transform_12, window_bounds = array<i64: 2, 1, 128>}, {pipeline_mode = #tpu.pipeline_mode<synchronous>, transform_indices = @transform_13, window_bounds = array<i64: 2, 128, 256>}, {pipeline_mode = #tpu.pipeline_mode<synchronous>, transform_indices = @transform_14, window_bounds = array<i64: 2, 1, 256>}, {pipeline_mode = #tpu.pipeline_mode<synchronous>, transform_indices = @transform_15, window_bounds = array<i64: 2, 256, 128>}, {pipeline_mode = #tpu.pipeline_mode<synchronous>, transform_indices = @transform_16, window_bounds = array<i64: 2, 1, 128>}, {pipeline_mode = #tpu.pipeline_mode<synchronous>, transform_indices = @transform_17, window_bounds = array<i64: 2, 1, 128>}, {pipeline_mode = #tpu.pipeline_mode<synchronous>, transform_indices = @transform_18, window_bounds = array<i64: 2, 1, 128>}, {transform_indices = @transform_19, window_bounds = array<i64: 1, 1, 128>}]} {
    %c0 = arith.constant 0 : index
    %c0_0 = arith.constant 0 : index
    %c0_1 = arith.constant 0 : index
    %0 = vector.load %arg1[%c0, %c0_0, %c0_1] : memref<1x8x128xf32, #tpu.memory_space<vmem>>, vector<1x8x128xf32>
    %1 = vector.shape_cast %0 : vector<1x8x128xf32> to vector<8x128xf32>
    %c0_2 = arith.constant 0 : index
    %c0_3 = arith.constant 0 : index
    %2 = vector.load %arg2[%c0_2, %c0_3] : memref<1x128xf32, #tpu.memory_space<vmem>>, vector<1x128xf32>
    %c0_4 = arith.constant 0 : index
    %c0_5 = arith.constant 0 : index
    %3 = vector.load %arg3[%c0_4, %c0_5] : memref<1x128xf32, #tpu.memory_space<vmem>>, vector<1x128xf32>
    %cst = arith.constant dense<0.000000e+00> : vector<8xf32>
    %4 = vector.multi_reduction <add>, %1, %cst [1] : vector<8x128xf32> to vector<8xf32>
    %5 = vector.shape_cast %4 : vector<8xf32> to vector<8x1xf32>
    %cst_6 = arith.constant 1.280000e+02 : f32
    %6 = vector.broadcast %cst_6 : f32 to vector<8x1xf32>
    %7 = arith.divf %5, %6 : vector<8x1xf32>
    %8 = vector.broadcast %7 : vector<8x1xf32> to vector<8x128xf32>
    %9 = arith.subf %1, %8 : vector<8x128xf32>
    %10 = arith.mulf %9, %9 : vector<8x128xf32>
    %cst_7 = arith.constant dense<0.000000e+00> : vector<8xf32>
    %11 = vector.multi_reduction <add>, %10, %cst_7 [1] : vector<8x128xf32> to vector<8xf32>
    %12 = vector.shape_cast %11 : vector<8xf32> to vector<8x1xf32>
    %cst_8 = arith.constant 1.280000e+02 : f32
    %13 = vector.broadcast %cst_8 : f32 to vector<8x1xf32>
    %14 = arith.divf %12, %13 : vector<8x1xf32>
    %15 = vector.broadcast %7 : vector<8x1xf32> to vector<8x128xf32>
    %16 = arith.subf %1, %15 : vector<8x128xf32>
    %cst_9 = arith.constant 9.99999996E-13 : f32
    %17 = vector.broadcast %cst_9 : f32 to vector<8x1xf32>
    %18 = arith.addf %14, %17 : vector<8x1xf32>
    %19 = math.rsqrt %18 : vector<8x1xf32>
    %20 = vector.broadcast %19 : vector<8x1xf32> to vector<8x128xf32>
    %21 = arith.mulf %16, %20 : vector<8x128xf32>
    %22 = vector.broadcast %2 : vector<1x128xf32> to vector<8x128xf32>
    %23 = arith.mulf %21, %22 : vector<8x128xf32>
    %24 = vector.broadcast %3 : vector<1x128xf32> to vector<8x128xf32>
    %25 = arith.addf %23, %24 : vector<8x128xf32>
    %26 = arith.truncf %25 : vector<8x128xf32> to vector<8x128xbf16>
    %27 = vector.shape_cast %26 : vector<8x128xbf16> to vector<1x8x128xbf16>
    %28 = vector.broadcast %27 : vector<1x8x128xbf16> to vector<2x8x128xbf16>
    %c0_10 = arith.constant 0 : index
    %c0_11 = arith.constant 0 : index
    %c0_12 = arith.constant 0 : index
    %c0_13 = arith.constant 0 : index
    %29 = vector.load %arg4[%c0_10, %c0_11, %c0_12, %c0_13] : memref<2x2x128x64xbf16, #tpu.memory_space<vmem>>, vector<1x2x128x64xbf16>
    %30 = vector.shape_cast %29 : vector<1x2x128x64xbf16> to vector<2x128x64xbf16>
    "tpu.trace_start"() <{level = 10 : i32, message = "nsh,nhd->nsd"}> : () -> ()
    %cst_14 = arith.constant dense<0.000000e+00> : vector<2x8x64xf32>
    %31 = tpu.matmul %28, %30, %cst_14 {dimension_numbers = #tpu.dot_dimension_numbers<[2], [1], [1], [2], [0, 0, 0, 1, 1, 2], [0], [0]>} : vector<2x8x128xbf16>, vector<2x128x64xbf16>, vector<2x8x64xf32> -> vector<2x8x64xf32>
    "tpu.trace_stop"() : () -> ()
    %c0_15 = arith.constant 0 : index
    %c0_16 = arith.constant 0 : index
    %c0_17 = arith.constant 0 : index
    %c0_18 = arith.constant 0 : index
    %32 = vector.load %arg5[%c0_15, %c0_16, %c0_17, %c0_18] : memref<2x2x1x64xf32, #tpu.memory_space<vmem>>, vector<1x2x1x64xf32>
    %33 = vector.shape_cast %32 : vector<1x2x1x64xf32> to vector<2x1x64xf32>
    %34 = vector.broadcast %33 : vector<2x1x64xf32> to vector<2x8x64xf32>
    %35 = arith.addf %31, %34 : vector<2x8x64xf32>
    %c0_19 = arith.constant 0 : index
    %c0_20 = arith.constant 0 : index
    %c0_21 = arith.constant 0 : index
    %c0_22 = arith.constant 0 : index
    %36 = vector.load %arg6[%c0_19, %c0_20, %c0_21, %c0_22] : memref<2x2x128x64xbf16, #tpu.memory_space<vmem>>, vector<1x2x128x64xbf16>
    %37 = vector.shape_cast %36 : vector<1x2x128x64xbf16> to vector<2x128x64xbf16>
    "tpu.trace_start"() <{level = 10 : i32, message = "nsh,nhd->nsd"}> : () -> ()
    %cst_23 = arith.constant dense<0.000000e+00> : vector<2x8x64xf32>
    %38 = tpu.matmul %28, %37, %cst_23 {dimension_numbers = #tpu.dot_dimension_numbers<[2], [1], [1], [2], [0, 0, 0, 1, 1, 2], [0], [0]>} : vector<2x8x128xbf16>, vector<2x128x64xbf16>, vector<2x8x64xf32> -> vector<2x8x64xf32>
    "tpu.trace_stop"() : () -> ()
    %c0_24 = arith.constant 0 : index
    %c0_25 = arith.constant 0 : index
    %c0_26 = arith.constant 0 : index
    %c0_27 = arith.constant 0 : index
    %39 = vector.load %arg7[%c0_24, %c0_25, %c0_26, %c0_27] : memref<2x2x1x64xf32, #tpu.memory_space<vmem>>, vector<1x2x1x64xf32>
    %40 = vector.shape_cast %39 : vector<1x2x1x64xf32> to vector<2x1x64xf32>
    %41 = vector.broadcast %40 : vector<2x1x64xf32> to vector<2x8x64xf32>
    %42 = arith.addf %38, %41 : vector<2x8x64xf32>
    %c0_28 = arith.constant 0 : index
    %c0_29 = arith.constant 0 : index
    %c0_30 = arith.constant 0 : index
    %c0_31 = arith.constant 0 : index
    %43 = vector.load %arg8[%c0_28, %c0_29, %c0_30, %c0_31] : memref<2x2x128x64xbf16, #tpu.memory_space<vmem>>, vector<1x2x128x64xbf16>
    %44 = vector.shape_cast %43 : vector<1x2x128x64xbf16> to vector<2x128x64xbf16>
    "tpu.trace_start"() <{level = 10 : i32, message = "nsh,nhd->nsd"}> : () -> ()
    %cst_32 = arith.constant dense<0.000000e+00> : vector<2x8x64xf32>
    %45 = tpu.matmul %28, %44, %cst_32 {dimension_numbers = #tpu.dot_dimension_numbers<[2], [1], [1], [2], [0, 0, 0, 1, 1, 2], [0], [0]>} : vector<2x8x128xbf16>, vector<2x128x64xbf16>, vector<2x8x64xf32> -> vector<2x8x64xf32>
    "tpu.trace_stop"() : () -> ()
    %c0_33 = arith.constant 0 : index
    %c0_34 = arith.constant 0 : index
    %c0_35 = arith.constant 0 : index
    %c0_36 = arith.constant 0 : index
    %46 = vector.load %arg9[%c0_33, %c0_34, %c0_35, %c0_36] : memref<2x2x1x64xf32, #tpu.memory_space<vmem>>, vector<1x2x1x64xf32>
    %47 = vector.shape_cast %46 : vector<1x2x1x64xf32> to vector<2x1x64xf32>
    %48 = vector.broadcast %47 : vector<2x1x64xf32> to vector<2x8x64xf32>
    %49 = arith.addf %45, %48 : vector<2x8x64xf32>
    %50 = arith.truncf %35 : vector<2x8x64xf32> to vector<2x8x64xbf16>
    %51 = arith.truncf %42 : vector<2x8x64xf32> to vector<2x8x64xbf16>
    "tpu.trace_start"() <{level = 10 : i32, message = "nqd,nkd->nqk"}> : () -> ()
    %cst_37 = arith.constant dense<0.000000e+00> : vector<2x8x8xf32>
    %52 = tpu.matmul %50, %51, %cst_37 {dimension_numbers = #tpu.dot_dimension_numbers<[2], [2], [1], [1], [0, 0, 0, 1, 1, 1], [0], [0]>} : vector<2x8x64xbf16>, vector<2x8x64xbf16>, vector<2x8x8xf32> -> vector<2x8x8xf32>
    "tpu.trace_stop"() : () -> ()
    %cst_38 = arith.constant dense<0xFF800000> : vector<2x8xf32>
    %53 = vector.multi_reduction <maximumf>, %52, %cst_38 [2] : vector<2x8x8xf32> to vector<2x8xf32>
    %54 = vector.shape_cast %53 : vector<2x8xf32> to vector<2x8x1xf32>
    %55 = vector.broadcast %54 : vector<2x8x1xf32> to vector<2x8x8xf32>
    %56 = arith.subf %52, %55 : vector<2x8x8xf32>
    %57 = math.exp %56 : vector<2x8x8xf32>
    %cst_39 = arith.constant dense<0.000000e+00> : vector<2x8xf32>
    %58 = vector.multi_reduction <add>, %57, %cst_39 [2] : vector<2x8x8xf32> to vector<2x8xf32>
    %59 = vector.shape_cast %58 : vector<2x8xf32> to vector<2x8x1xf32>
    %60 = tpu.reciprocal %59 {approx = true} : vector<2x8x1xf32> -> vector<2x8x1xf32>
    %61 = vector.broadcast %60 : vector<2x8x1xf32> to vector<2x8x8xf32>
    %62 = arith.mulf %57, %61 : vector<2x8x8xf32>
    %63 = arith.truncf %62 : vector<2x8x8xf32> to vector<2x8x8xbf16>
    %64 = arith.truncf %49 : vector<2x8x64xf32> to vector<2x8x64xbf16>
    "tpu.trace_start"() <{level = 10 : i32, message = "nqk,nkd->nqd"}> : () -> ()
    %cst_40 = arith.constant dense<0.000000e+00> : vector<2x8x64xf32>
    %65 = tpu.matmul %63, %64, %cst_40 {dimension_numbers = #tpu.dot_dimension_numbers<[2], [1], [1], [2], [0, 0, 0, 1, 1, 2], [0], [0]>} : vector<2x8x8xbf16>, vector<2x8x64xbf16>, vector<2x8x64xf32> -> vector<2x8x64xf32>
    "tpu.trace_stop"() : () -> ()
    %66 = vector.extract_strided_slice %65 {offsets = [0, 0, 0], sizes = [1, 8, 64], strides = [1, 1, 1]} : vector<2x8x64xf32> to vector<1x8x64xf32>
    %67 = vector.shape_cast %66 : vector<1x8x64xf32> to vector<8x64xf32>
    %68 = vector.extract_strided_slice %65 {offsets = [1, 0, 0], sizes = [1, 8, 64], strides = [1, 1, 1]} : vector<2x8x64xf32> to vector<1x8x64xf32>
    %69 = vector.shape_cast %68 : vector<1x8x64xf32> to vector<8x64xf32>
    %70 = tpu.concatenate %67, %69 in 1 : vector<8x64xf32>, vector<8x64xf32> -> vector<8x128xf32>
    %71 = arith.truncf %70 : vector<8x128xf32> to vector<8x128xbf16>
    %c0_41 = arith.constant 0 : index
    %c0_42 = arith.constant 0 : index
    %c0_43 = arith.constant 0 : index
    %72 = vector.load %arg10[%c0_41, %c0_42, %c0_43] : memref<2x128x128xbf16, #tpu.memory_space<vmem>>, vector<1x128x128xbf16>
    %73 = vector.shape_cast %72 : vector<1x128x128xbf16> to vector<128x128xbf16>
    %cst_44 = arith.constant dense<0.000000e+00> : vector<8x128xf32>
    %74 = tpu.matmul %71, %73, %cst_44 {dimension_numbers = #tpu.dot_dimension_numbers<[1], [0], [0], [1], [0, 0, 1, 1], [], []>} : vector<8x128xbf16>, vector<128x128xbf16>, vector<8x128xf32> -> vector<8x128xf32>
    %c0_45 = arith.constant 0 : index
    %c0_46 = arith.constant 0 : index
    %c0_47 = arith.constant 0 : index
    %75 = vector.load %arg11[%c0_45, %c0_46, %c0_47] : memref<2x1x128xf32, #tpu.memory_space<vmem>>, vector<1x1x128xf32>
    %76 = vector.shape_cast %75 : vector<1x1x128xf32> to vector<1x128xf32>
    %77 = vector.broadcast %76 : vector<1x128xf32> to vector<8x128xf32>
    %78 = arith.addf %74, %77 : vector<8x128xf32>
    %79 = arith.addf %25, %78 : vector<8x128xf32>
    %c0_48 = arith.constant 0 : index
    %c0_49 = arith.constant 0 : index
    %c0_50 = arith.constant 0 : index
    %80 = vector.load %arg12[%c0_48, %c0_49, %c0_50] : memref<2x1x128xf32, #tpu.memory_space<vmem>>, vector<1x1x128xf32>
    %81 = vector.shape_cast %80 : vector<1x1x128xf32> to vector<1x128xf32>
    %c0_51 = arith.constant 0 : index
    %c0_52 = arith.constant 0 : index
    %c0_53 = arith.constant 0 : index
    %82 = vector.load %arg13[%c0_51, %c0_52, %c0_53] : memref<2x1x128xf32, #tpu.memory_space<vmem>>, vector<1x1x128xf32>
    %83 = vector.shape_cast %82 : vector<1x1x128xf32> to vector<1x128xf32>
    %cst_54 = arith.constant dense<0.000000e+00> : vector<8xf32>
    %84 = vector.multi_reduction <add>, %79, %cst_54 [1] : vector<8x128xf32> to vector<8xf32>
    %85 = vector.shape_cast %84 : vector<8xf32> to vector<8x1xf32>
    %cst_55 = arith.constant 1.280000e+02 : f32
    %86 = vector.broadcast %cst_55 : f32 to vector<8x1xf32>
    %87 = arith.divf %85, %86 : vector<8x1xf32>
    %88 = vector.broadcast %87 : vector<8x1xf32> to vector<8x128xf32>
    %89 = arith.subf %79, %88 : vector<8x128xf32>
    %90 = arith.mulf %89, %89 : vector<8x128xf32>
    %cst_56 = arith.constant dense<0.000000e+00> : vector<8xf32>
    %91 = vector.multi_reduction <add>, %90, %cst_56 [1] : vector<8x128xf32> to vector<8xf32>
    %92 = vector.shape_cast %91 : vector<8xf32> to vector<8x1xf32>
    %cst_57 = arith.constant 1.280000e+02 : f32
    %93 = vector.broadcast %cst_57 : f32 to vector<8x1xf32>
    %94 = arith.divf %92, %93 : vector<8x1xf32>
    %95 = vector.broadcast %87 : vector<8x1xf32> to vector<8x128xf32>
    %96 = arith.subf %79, %95 : vector<8x128xf32>
    %cst_58 = arith.constant 9.99999996E-13 : f32
    %97 = vector.broadcast %cst_58 : f32 to vector<8x1xf32>
    %98 = arith.addf %94, %97 : vector<8x1xf32>
    %99 = math.rsqrt %98 : vector<8x1xf32>
    %100 = vector.broadcast %99 : vector<8x1xf32> to vector<8x128xf32>
    %101 = arith.mulf %96, %100 : vector<8x128xf32>
    %102 = vector.broadcast %81 : vector<1x128xf32> to vector<8x128xf32>
    %103 = arith.mulf %101, %102 : vector<8x128xf32>
    %104 = vector.broadcast %83 : vector<1x128xf32> to vector<8x128xf32>
    %105 = arith.addf %103, %104 : vector<8x128xf32>
    %106 = arith.truncf %105 : vector<8x128xf32> to vector<8x128xbf16>
    %c0_59 = arith.constant 0 : index
    %c0_60 = arith.constant 0 : index
    %c0_61 = arith.constant 0 : index
    %107 = vector.load %arg14[%c0_59, %c0_60, %c0_61] : memref<2x128x256xbf16, #tpu.memory_space<vmem>>, vector<1x128x256xbf16>
    %108 = vector.shape_cast %107 : vector<1x128x256xbf16> to vector<128x256xbf16>
    %cst_62 = arith.constant dense<0.000000e+00> : vector<8x256xf32>
    %109 = tpu.matmul %106, %108, %cst_62 {dimension_numbers = #tpu.dot_dimension_numbers<[1], [0], [0], [1], [0, 0, 1, 1], [], []>} : vector<8x128xbf16>, vector<128x256xbf16>, vector<8x256xf32> -> vector<8x256xf32>
    %c0_63 = arith.constant 0 : index
    %c0_64 = arith.constant 0 : index
    %c0_65 = arith.constant 0 : index
    %110 = vector.load %arg15[%c0_63, %c0_64, %c0_65] : memref<2x1x256xf32, #tpu.memory_space<vmem>>, vector<1x1x256xf32>
    %111 = vector.shape_cast %110 : vector<1x1x256xf32> to vector<1x256xf32>
    %112 = vector.broadcast %111 : vector<1x256xf32> to vector<8x256xf32>
    %113 = arith.addf %109, %112 : vector<8x256xf32>
    %cst_66 = arith.constant 5.000000e-01 : f32
    %114 = vector.broadcast %cst_66 : f32 to vector<8x256xf32>
    %115 = arith.mulf %114, %113 : vector<8x256xf32>
    %cst_67 = arith.constant 4.471500e-02 : f32
    %116 = vector.broadcast %cst_67 : f32 to vector<8x256xf32>
    %117 = arith.mulf %116, %113 : vector<8x256xf32>
    %118 = arith.mulf %117, %113 : vector<8x256xf32>
    %119 = arith.mulf %118, %113 : vector<8x256xf32>
    %120 = arith.addf %113, %119 : vector<8x256xf32>
    %cst_68 = arith.constant 0.797884583 : f32
    %121 = vector.broadcast %cst_68 : f32 to vector<8x256xf32>
    %122 = arith.mulf %121, %120 : vector<8x256xf32>
    %123 = math.tanh %122 : vector<8x256xf32>
    %cst_69 = arith.constant 1.000000e+00 : f32
    %124 = vector.broadcast %cst_69 : f32 to vector<8x256xf32>
    %125 = arith.addf %124, %123 : vector<8x256xf32>
    %126 = arith.mulf %115, %125 : vector<8x256xf32>
    %127 = arith.truncf %126 : vector<8x256xf32> to vector<8x256xbf16>
    %c0_70 = arith.constant 0 : index
    %c0_71 = arith.constant 0 : index
    %c0_72 = arith.constant 0 : index
    %128 = vector.load %arg16[%c0_70, %c0_71, %c0_72] : memref<2x256x128xbf16, #tpu.memory_space<vmem>>, vector<1x256x128xbf16>
    %129 = vector.shape_cast %128 : vector<1x256x128xbf16> to vector<256x128xbf16>
    %cst_73 = arith.constant dense<0.000000e+00> : vector<8x128xf32>
    %130 = tpu.matmul %127, %129, %cst_73 {dimension_numbers = #tpu.dot_dimension_numbers<[1], [0], [0], [1], [0, 0, 1, 1], [], []>} : vector<8x256xbf16>, vector<256x128xbf16>, vector<8x128xf32> -> vector<8x128xf32>
    %c0_74 = arith.constant 0 : index
    %c0_75 = arith.constant 0 : index
    %c0_76 = arith.constant 0 : index
    %131 = vector.load %arg17[%c0_74, %c0_75, %c0_76] : memref<2x1x128xf32, #tpu.memory_space<vmem>>, vector<1x1x128xf32>
    %132 = vector.shape_cast %131 : vector<1x1x128xf32> to vector<1x128xf32>
    %133 = vector.broadcast %132 : vector<1x128xf32> to vector<8x128xf32>
    %134 = arith.addf %130, %133 : vector<8x128xf32>
    %135 = arith.addf %105, %134 : vector<8x128xf32>
    %c0_77 = arith.constant 0 : index
    %c0_78 = arith.constant 0 : index
    %c0_79 = arith.constant 0 : index
    %136 = vector.load %arg18[%c0_77, %c0_78, %c0_79] : memref<2x1x128xf32, #tpu.memory_space<vmem>>, vector<1x1x128xf32>
    %137 = vector.shape_cast %136 : vector<1x1x128xf32> to vector<1x128xf32>
    %c0_80 = arith.constant 0 : index
    %c0_81 = arith.constant 0 : index
    %c0_82 = arith.constant 0 : index
    %138 = vector.load %arg19[%c0_80, %c0_81, %c0_82] : memref<2x1x128xf32, #tpu.memory_space<vmem>>, vector<1x1x128xf32>
    %139 = vector.shape_cast %138 : vector<1x1x128xf32> to vector<1x128xf32>
    %cst_83 = arith.constant dense<0.000000e+00> : vector<8xf32>
    %140 = vector.multi_reduction <add>, %135, %cst_83 [1] : vector<8x128xf32> to vector<8xf32>
    %141 = vector.shape_cast %140 : vector<8xf32> to vector<8x1xf32>
    %cst_84 = arith.constant 1.280000e+02 : f32
    %142 = vector.broadcast %cst_84 : f32 to vector<8x1xf32>
    %143 = arith.divf %141, %142 : vector<8x1xf32>
    %144 = vector.broadcast %143 : vector<8x1xf32> to vector<8x128xf32>
    %145 = arith.subf %135, %144 : vector<8x128xf32>
    %146 = arith.mulf %145, %145 : vector<8x128xf32>
    %cst_85 = arith.constant dense<0.000000e+00> : vector<8xf32>
    %147 = vector.multi_reduction <add>, %146, %cst_85 [1] : vector<8x128xf32> to vector<8xf32>
    %148 = vector.shape_cast %147 : vector<8xf32> to vector<8x1xf32>
    %cst_86 = arith.constant 1.280000e+02 : f32
    %149 = vector.broadcast %cst_86 : f32 to vector<8x1xf32>
    %150 = arith.divf %148, %149 : vector<8x1xf32>
    %151 = vector.broadcast %143 : vector<8x1xf32> to vector<8x128xf32>
    %152 = arith.subf %135, %151 : vector<8x128xf32>
    %cst_87 = arith.constant 9.99999996E-13 : f32
    %153 = vector.broadcast %cst_87 : f32 to vector<8x1xf32>
    %154 = arith.addf %150, %153 : vector<8x1xf32>
    %155 = math.rsqrt %154 : vector<8x1xf32>
    %156 = vector.broadcast %155 : vector<8x1xf32> to vector<8x128xf32>
    %157 = arith.mulf %152, %156 : vector<8x128xf32>
    %158 = vector.broadcast %137 : vector<1x128xf32> to vector<8x128xf32>
    %159 = arith.mulf %157, %158 : vector<8x128xf32>
    %160 = vector.broadcast %139 : vector<1x128xf32> to vector<8x128xf32>
    %161 = arith.addf %159, %160 : vector<8x128xf32>
    %162 = arith.truncf %161 : vector<8x128xf32> to vector<8x128xbf16>
    %163 = vector.shape_cast %162 : vector<8x128xbf16> to vector<1x8x128xbf16>
    %164 = vector.broadcast %163 : vector<1x8x128xbf16> to vector<2x8x128xbf16>
    %c1 = arith.constant 1 : index
    %c0_88 = arith.constant 0 : index
    %c0_89 = arith.constant 0 : index
    %c0_90 = arith.constant 0 : index
    %165 = vector.load %arg4[%c1, %c0_88, %c0_89, %c0_90] : memref<2x2x128x64xbf16, #tpu.memory_space<vmem>>, vector<1x2x128x64xbf16>
    %166 = vector.shape_cast %165 : vector<1x2x128x64xbf16> to vector<2x128x64xbf16>
    "tpu.trace_start"() <{level = 10 : i32, message = "nsh,nhd->nsd"}> : () -> ()
    %cst_91 = arith.constant dense<0.000000e+00> : vector<2x8x64xf32>
    %167 = tpu.matmul %164, %166, %cst_91 {dimension_numbers = #tpu.dot_dimension_numbers<[2], [1], [1], [2], [0, 0, 0, 1, 1, 2], [0], [0]>} : vector<2x8x128xbf16>, vector<2x128x64xbf16>, vector<2x8x64xf32> -> vector<2x8x64xf32>
    "tpu.trace_stop"() : () -> ()
    %c1_92 = arith.constant 1 : index
    %c0_93 = arith.constant 0 : index
    %c0_94 = arith.constant 0 : index
    %c0_95 = arith.constant 0 : index
    %168 = vector.load %arg5[%c1_92, %c0_93, %c0_94, %c0_95] : memref<2x2x1x64xf32, #tpu.memory_space<vmem>>, vector<1x2x1x64xf32>
    %169 = vector.shape_cast %168 : vector<1x2x1x64xf32> to vector<2x1x64xf32>
    %170 = vector.broadcast %169 : vector<2x1x64xf32> to vector<2x8x64xf32>
    %171 = arith.addf %167, %170 : vector<2x8x64xf32>
    %c1_96 = arith.constant 1 : index
    %c0_97 = arith.constant 0 : index
    %c0_98 = arith.constant 0 : index
    %c0_99 = arith.constant 0 : index
    %172 = vector.load %arg6[%c1_96, %c0_97, %c0_98, %c0_99] : memref<2x2x128x64xbf16, #tpu.memory_space<vmem>>, vector<1x2x128x64xbf16>
    %173 = vector.shape_cast %172 : vector<1x2x128x64xbf16> to vector<2x128x64xbf16>
    "tpu.trace_start"() <{level = 10 : i32, message = "nsh,nhd->nsd"}> : () -> ()
    %cst_100 = arith.constant dense<0.000000e+00> : vector<2x8x64xf32>
    %174 = tpu.matmul %164, %173, %cst_100 {dimension_numbers = #tpu.dot_dimension_numbers<[2], [1], [1], [2], [0, 0, 0, 1, 1, 2], [0], [0]>} : vector<2x8x128xbf16>, vector<2x128x64xbf16>, vector<2x8x64xf32> -> vector<2x8x64xf32>
    "tpu.trace_stop"() : () -> ()
    %c1_101 = arith.constant 1 : index
    %c0_102 = arith.constant 0 : index
    %c0_103 = arith.constant 0 : index
    %c0_104 = arith.constant 0 : index
    %175 = vector.load %arg7[%c1_101, %c0_102, %c0_103, %c0_104] : memref<2x2x1x64xf32, #tpu.memory_space<vmem>>, vector<1x2x1x64xf32>
    %176 = vector.shape_cast %175 : vector<1x2x1x64xf32> to vector<2x1x64xf32>
    %177 = vector.broadcast %176 : vector<2x1x64xf32> to vector<2x8x64xf32>
    %178 = arith.addf %174, %177 : vector<2x8x64xf32>
    %c1_105 = arith.constant 1 : index
    %c0_106 = arith.constant 0 : index
    %c0_107 = arith.constant 0 : index
    %c0_108 = arith.constant 0 : index
    %179 = vector.load %arg8[%c1_105, %c0_106, %c0_107, %c0_108] : memref<2x2x128x64xbf16, #tpu.memory_space<vmem>>, vector<1x2x128x64xbf16>
    %180 = vector.shape_cast %179 : vector<1x2x128x64xbf16> to vector<2x128x64xbf16>
    "tpu.trace_start"() <{level = 10 : i32, message = "nsh,nhd->nsd"}> : () -> ()
    %cst_109 = arith.constant dense<0.000000e+00> : vector<2x8x64xf32>
    %181 = tpu.matmul %164, %180, %cst_109 {dimension_numbers = #tpu.dot_dimension_numbers<[2], [1], [1], [2], [0, 0, 0, 1, 1, 2], [0], [0]>} : vector<2x8x128xbf16>, vector<2x128x64xbf16>, vector<2x8x64xf32> -> vector<2x8x64xf32>
    "tpu.trace_stop"() : () -> ()
    %c1_110 = arith.constant 1 : index
    %c0_111 = arith.constant 0 : index
    %c0_112 = arith.constant 0 : index
    %c0_113 = arith.constant 0 : index
    %182 = vector.load %arg9[%c1_110, %c0_111, %c0_112, %c0_113] : memref<2x2x1x64xf32, #tpu.memory_space<vmem>>, vector<1x2x1x64xf32>
    %183 = vector.shape_cast %182 : vector<1x2x1x64xf32> to vector<2x1x64xf32>
    %184 = vector.broadcast %183 : vector<2x1x64xf32> to vector<2x8x64xf32>
    %185 = arith.addf %181, %184 : vector<2x8x64xf32>
    %186 = arith.truncf %171 : vector<2x8x64xf32> to vector<2x8x64xbf16>
    %187 = arith.truncf %178 : vector<2x8x64xf32> to vector<2x8x64xbf16>
    "tpu.trace_start"() <{level = 10 : i32, message = "nqd,nkd->nqk"}> : () -> ()
    %cst_114 = arith.constant dense<0.000000e+00> : vector<2x8x8xf32>
    %188 = tpu.matmul %186, %187, %cst_114 {dimension_numbers = #tpu.dot_dimension_numbers<[2], [2], [1], [1], [0, 0, 0, 1, 1, 1], [0], [0]>} : vector<2x8x64xbf16>, vector<2x8x64xbf16>, vector<2x8x8xf32> -> vector<2x8x8xf32>
    "tpu.trace_stop"() : () -> ()
    %cst_115 = arith.constant dense<0xFF800000> : vector<2x8xf32>
    %189 = vector.multi_reduction <maximumf>, %188, %cst_115 [2] : vector<2x8x8xf32> to vector<2x8xf32>
    %190 = vector.shape_cast %189 : vector<2x8xf32> to vector<2x8x1xf32>
    %191 = vector.broadcast %190 : vector<2x8x1xf32> to vector<2x8x8xf32>
    %192 = arith.subf %188, %191 : vector<2x8x8xf32>
    %193 = math.exp %192 : vector<2x8x8xf32>
    %cst_116 = arith.constant dense<0.000000e+00> : vector<2x8xf32>
    %194 = vector.multi_reduction <add>, %193, %cst_116 [2] : vector<2x8x8xf32> to vector<2x8xf32>
    %195 = vector.shape_cast %194 : vector<2x8xf32> to vector<2x8x1xf32>
    %196 = tpu.reciprocal %195 {approx = true} : vector<2x8x1xf32> -> vector<2x8x1xf32>
    %197 = vector.broadcast %196 : vector<2x8x1xf32> to vector<2x8x8xf32>
    %198 = arith.mulf %193, %197 : vector<2x8x8xf32>
    %199 = arith.truncf %198 : vector<2x8x8xf32> to vector<2x8x8xbf16>
    %200 = arith.truncf %185 : vector<2x8x64xf32> to vector<2x8x64xbf16>
    "tpu.trace_start"() <{level = 10 : i32, message = "nqk,nkd->nqd"}> : () -> ()
    %cst_117 = arith.constant dense<0.000000e+00> : vector<2x8x64xf32>
    %201 = tpu.matmul %199, %200, %cst_117 {dimension_numbers = #tpu.dot_dimension_numbers<[2], [1], [1], [2], [0, 0, 0, 1, 1, 2], [0], [0]>} : vector<2x8x8xbf16>, vector<2x8x64xbf16>, vector<2x8x64xf32> -> vector<2x8x64xf32>
    "tpu.trace_stop"() : () -> ()
    %202 = vector.extract_strided_slice %201 {offsets = [0, 0, 0], sizes = [1, 8, 64], strides = [1, 1, 1]} : vector<2x8x64xf32> to vector<1x8x64xf32>
    %203 = vector.shape_cast %202 : vector<1x8x64xf32> to vector<8x64xf32>
    %204 = vector.extract_strided_slice %201 {offsets = [1, 0, 0], sizes = [1, 8, 64], strides = [1, 1, 1]} : vector<2x8x64xf32> to vector<1x8x64xf32>
    %205 = vector.shape_cast %204 : vector<1x8x64xf32> to vector<8x64xf32>
    %206 = tpu.concatenate %203, %205 in 1 : vector<8x64xf32>, vector<8x64xf32> -> vector<8x128xf32>
    %207 = arith.truncf %206 : vector<8x128xf32> to vector<8x128xbf16>
    %c1_118 = arith.constant 1 : index
    %c0_119 = arith.constant 0 : index
    %c0_120 = arith.constant 0 : index
    %208 = vector.load %arg10[%c1_118, %c0_119, %c0_120] : memref<2x128x128xbf16, #tpu.memory_space<vmem>>, vector<1x128x128xbf16>
    %209 = vector.shape_cast %208 : vector<1x128x128xbf16> to vector<128x128xbf16>
    %cst_121 = arith.constant dense<0.000000e+00> : vector<8x128xf32>
    %210 = tpu.matmul %207, %209, %cst_121 {dimension_numbers = #tpu.dot_dimension_numbers<[1], [0], [0], [1], [0, 0, 1, 1], [], []>} : vector<8x128xbf16>, vector<128x128xbf16>, vector<8x128xf32> -> vector<8x128xf32>
    %c1_122 = arith.constant 1 : index
    %c0_123 = arith.constant 0 : index
    %c0_124 = arith.constant 0 : index
    %211 = vector.load %arg11[%c1_122, %c0_123, %c0_124] : memref<2x1x128xf32, #tpu.memory_space<vmem>>, vector<1x1x128xf32>
    %212 = vector.shape_cast %211 : vector<1x1x128xf32> to vector<1x128xf32>
    %213 = vector.broadcast %212 : vector<1x128xf32> to vector<8x128xf32>
    %214 = arith.addf %210, %213 : vector<8x128xf32>
    %215 = arith.addf %161, %214 : vector<8x128xf32>
    %c1_125 = arith.constant 1 : index
    %c0_126 = arith.constant 0 : index
    %c0_127 = arith.constant 0 : index
    %216 = vector.load %arg12[%c1_125, %c0_126, %c0_127] : memref<2x1x128xf32, #tpu.memory_space<vmem>>, vector<1x1x128xf32>
    %217 = vector.shape_cast %216 : vector<1x1x128xf32> to vector<1x128xf32>
    %c1_128 = arith.constant 1 : index
    %c0_129 = arith.constant 0 : index
    %c0_130 = arith.constant 0 : index
    %218 = vector.load %arg13[%c1_128, %c0_129, %c0_130] : memref<2x1x128xf32, #tpu.memory_space<vmem>>, vector<1x1x128xf32>
    %219 = vector.shape_cast %218 : vector<1x1x128xf32> to vector<1x128xf32>
    %cst_131 = arith.constant dense<0.000000e+00> : vector<8xf32>
    %220 = vector.multi_reduction <add>, %215, %cst_131 [1] : vector<8x128xf32> to vector<8xf32>
    %221 = vector.shape_cast %220 : vector<8xf32> to vector<8x1xf32>
    %cst_132 = arith.constant 1.280000e+02 : f32
    %222 = vector.broadcast %cst_132 : f32 to vector<8x1xf32>
    %223 = arith.divf %221, %222 : vector<8x1xf32>
    %224 = vector.broadcast %223 : vector<8x1xf32> to vector<8x128xf32>
    %225 = arith.subf %215, %224 : vector<8x128xf32>
    %226 = arith.mulf %225, %225 : vector<8x128xf32>
    %cst_133 = arith.constant dense<0.000000e+00> : vector<8xf32>
    %227 = vector.multi_reduction <add>, %226, %cst_133 [1] : vector<8x128xf32> to vector<8xf32>
    %228 = vector.shape_cast %227 : vector<8xf32> to vector<8x1xf32>
    %cst_134 = arith.constant 1.280000e+02 : f32
    %229 = vector.broadcast %cst_134 : f32 to vector<8x1xf32>
    %230 = arith.divf %228, %229 : vector<8x1xf32>
    %231 = vector.broadcast %223 : vector<8x1xf32> to vector<8x128xf32>
    %232 = arith.subf %215, %231 : vector<8x128xf32>
    %cst_135 = arith.constant 9.99999996E-13 : f32
    %233 = vector.broadcast %cst_135 : f32 to vector<8x1xf32>
    %234 = arith.addf %230, %233 : vector<8x1xf32>
    %235 = math.rsqrt %234 : vector<8x1xf32>
    %236 = vector.broadcast %235 : vector<8x1xf32> to vector<8x128xf32>
    %237 = arith.mulf %232, %236 : vector<8x128xf32>
    %238 = vector.broadcast %217 : vector<1x128xf32> to vector<8x128xf32>
    %239 = arith.mulf %237, %238 : vector<8x128xf32>
    %240 = vector.broadcast %219 : vector<1x128xf32> to vector<8x128xf32>
    %241 = arith.addf %239, %240 : vector<8x128xf32>
    %242 = arith.truncf %241 : vector<8x128xf32> to vector<8x128xbf16>
    %c1_136 = arith.constant 1 : index
    %c0_137 = arith.constant 0 : index
    %c0_138 = arith.constant 0 : index
    %243 = vector.load %arg14[%c1_136, %c0_137, %c0_138] : memref<2x128x256xbf16, #tpu.memory_space<vmem>>, vector<1x128x256xbf16>
    %244 = vector.shape_cast %243 : vector<1x128x256xbf16> to vector<128x256xbf16>
    %cst_139 = arith.constant dense<0.000000e+00> : vector<8x256xf32>
    %245 = tpu.matmul %242, %244, %cst_139 {dimension_numbers = #tpu.dot_dimension_numbers<[1], [0], [0], [1], [0, 0, 1, 1], [], []>} : vector<8x128xbf16>, vector<128x256xbf16>, vector<8x256xf32> -> vector<8x256xf32>
    %c1_140 = arith.constant 1 : index
    %c0_141 = arith.constant 0 : index
    %c0_142 = arith.constant 0 : index
    %246 = vector.load %arg15[%c1_140, %c0_141, %c0_142] : memref<2x1x256xf32, #tpu.memory_space<vmem>>, vector<1x1x256xf32>
    %247 = vector.shape_cast %246 : vector<1x1x256xf32> to vector<1x256xf32>
    %248 = vector.broadcast %247 : vector<1x256xf32> to vector<8x256xf32>
    %249 = arith.addf %245, %248 : vector<8x256xf32>
    %cst_143 = arith.constant 5.000000e-01 : f32
    %250 = vector.broadcast %cst_143 : f32 to vector<8x256xf32>
    %251 = arith.mulf %250, %249 : vector<8x256xf32>
    %cst_144 = arith.constant 4.471500e-02 : f32
    %252 = vector.broadcast %cst_144 : f32 to vector<8x256xf32>
    %253 = arith.mulf %252, %249 : vector<8x256xf32>
    %254 = arith.mulf %253, %249 : vector<8x256xf32>
    %255 = arith.mulf %254, %249 : vector<8x256xf32>
    %256 = arith.addf %249, %255 : vector<8x256xf32>
    %cst_145 = arith.constant 0.797884583 : f32
    %257 = vector.broadcast %cst_145 : f32 to vector<8x256xf32>
    %258 = arith.mulf %257, %256 : vector<8x256xf32>
    %259 = math.tanh %258 : vector<8x256xf32>
    %cst_146 = arith.constant 1.000000e+00 : f32
    %260 = vector.broadcast %cst_146 : f32 to vector<8x256xf32>
    %261 = arith.addf %260, %259 : vector<8x256xf32>
    %262 = arith.mulf %251, %261 : vector<8x256xf32>
    %263 = arith.truncf %262 : vector<8x256xf32> to vector<8x256xbf16>
    %c1_147 = arith.constant 1 : index
    %c0_148 = arith.constant 0 : index
    %c0_149 = arith.constant 0 : index
    %264 = vector.load %arg16[%c1_147, %c0_148, %c0_149] : memref<2x256x128xbf16, #tpu.memory_space<vmem>>, vector<1x256x128xbf16>
    %265 = vector.shape_cast %264 : vector<1x256x128xbf16> to vector<256x128xbf16>
    %cst_150 = arith.constant dense<0.000000e+00> : vector<8x128xf32>
    %266 = tpu.matmul %263, %265, %cst_150 {dimension_numbers = #tpu.dot_dimension_numbers<[1], [0], [0], [1], [0, 0, 1, 1], [], []>} : vector<8x256xbf16>, vector<256x128xbf16>, vector<8x128xf32> -> vector<8x128xf32>
    %c1_151 = arith.constant 1 : index
    %c0_152 = arith.constant 0 : index
    %c0_153 = arith.constant 0 : index
    %267 = vector.load %arg17[%c1_151, %c0_152, %c0_153] : memref<2x1x128xf32, #tpu.memory_space<vmem>>, vector<1x1x128xf32>
    %268 = vector.shape_cast %267 : vector<1x1x128xf32> to vector<1x128xf32>
    %269 = vector.broadcast %268 : vector<1x128xf32> to vector<8x128xf32>
    %270 = arith.addf %266, %269 : vector<8x128xf32>
    %271 = arith.addf %241, %270 : vector<8x128xf32>
    %c1_154 = arith.constant 1 : index
    %c0_155 = arith.constant 0 : index
    %c0_156 = arith.constant 0 : index
    %272 = vector.load %arg18[%c1_154, %c0_155, %c0_156] : memref<2x1x128xf32, #tpu.memory_space<vmem>>, vector<1x1x128xf32>
    %273 = vector.shape_cast %272 : vector<1x1x128xf32> to vector<1x128xf32>
    %c1_157 = arith.constant 1 : index
    %c0_158 = arith.constant 0 : index
    %c0_159 = arith.constant 0 : index
    %274 = vector.load %arg19[%c1_157, %c0_158, %c0_159] : memref<2x1x128xf32, #tpu.memory_space<vmem>>, vector<1x1x128xf32>
    %275 = vector.shape_cast %274 : vector<1x1x128xf32> to vector<1x128xf32>
    %cst_160 = arith.constant dense<0.000000e+00> : vector<8xf32>
    %276 = vector.multi_reduction <add>, %271, %cst_160 [1] : vector<8x128xf32> to vector<8xf32>
    %277 = vector.shape_cast %276 : vector<8xf32> to vector<8x1xf32>
    %cst_161 = arith.constant 1.280000e+02 : f32
    %278 = vector.broadcast %cst_161 : f32 to vector<8x1xf32>
    %279 = arith.divf %277, %278 : vector<8x1xf32>
    %280 = vector.broadcast %279 : vector<8x1xf32> to vector<8x128xf32>
    %281 = arith.subf %271, %280 : vector<8x128xf32>
    %282 = arith.mulf %281, %281 : vector<8x128xf32>
    %cst_162 = arith.constant dense<0.000000e+00> : vector<8xf32>
    %283 = vector.multi_reduction <add>, %282, %cst_162 [1] : vector<8x128xf32> to vector<8xf32>
    %284 = vector.shape_cast %283 : vector<8xf32> to vector<8x1xf32>
    %cst_163 = arith.constant 1.280000e+02 : f32
    %285 = vector.broadcast %cst_163 : f32 to vector<8x1xf32>
    %286 = arith.divf %284, %285 : vector<8x1xf32>
    %287 = vector.broadcast %279 : vector<8x1xf32> to vector<8x128xf32>
    %288 = arith.subf %271, %287 : vector<8x128xf32>
    %cst_164 = arith.constant 9.99999996E-13 : f32
    %289 = vector.broadcast %cst_164 : f32 to vector<8x1xf32>
    %290 = arith.addf %286, %289 : vector<8x1xf32>
    %291 = math.rsqrt %290 : vector<8x1xf32>
    %292 = vector.broadcast %291 : vector<8x1xf32> to vector<8x128xf32>
    %293 = arith.mulf %288, %292 : vector<8x128xf32>
    %294 = vector.broadcast %273 : vector<1x128xf32> to vector<8x128xf32>
    %295 = arith.mulf %293, %294 : vector<8x128xf32>
    %296 = vector.broadcast %275 : vector<1x128xf32> to vector<8x128xf32>
    %297 = arith.addf %295, %296 : vector<8x128xf32>
    %298 = vector.extract_strided_slice %297 {offsets = [0, 0], sizes = [1, 128], strides = [1, 1]} : vector<8x128xf32> to vector<1x128xf32>
    %c0_165 = arith.constant 0 : index
    %c0_166 = arith.constant 0 : index
    %c0_167 = arith.constant 0 : index
    %299 = vector.load %arg20[%c0_165, %c0_166, %c0_167] : memref<1x1x128xf32, #tpu.memory_space<vmem>>, vector<1x1x128xf32>
    %300 = vector.shape_cast %299 : vector<1x1x128xf32> to vector<1x128xf32>
    %301 = vector.shape_cast %298 : vector<1x128xf32> to vector<1x1x128xf32>
    tpu.vector_store %arg20[%c0_165, %c0_166, %c0_167], %301 {strides = array<i32>} : memref<1x1x128xf32, #tpu.memory_space<vmem>>, vector<1x1x128xf32>,
    return
  }
  func.func @transform_0(%arg0: i32) -> (i32, i32, i32) {
    %c0_i32 = arith.constant 0 : i32
    %c0_i32_0 = arith.constant 0 : i32
    %c0_i32_1 = arith.constant 0 : i32
    return %arg0, %c0_i32, %c0_i32_0 : i32, i32, i32
  }
  func.func @transform_1(%arg0: i32) -> (i32, i32) {
    %c0_i32 = arith.constant 0 : i32
    %c0_i32_0 = arith.constant 0 : i32
    %c0_i32_1 = arith.constant 0 : i32
    return %c0_i32, %c0_i32_0 : i32, i32
  }
  func.func @transform_2(%arg0: i32) -> (i32, i32) {
    %c0_i32 = arith.constant 0 : i32
    %c0_i32_0 = arith.constant 0 : i32
    %c0_i32_1 = arith.constant 0 : i32
    return %c0_i32, %c0_i32_0 : i32, i32
  }
  func.func @transform_3(%arg0: i32) -> (i32, i32, i32, i32) {
    %c0_i32 = arith.constant 0 : i32
    %c0_i32_0 = arith.constant 0 : i32
    %c0_i32_1 = arith.constant 0 : i32
    %c0_i32_2 = arith.constant 0 : i32
    %c0_i32_3 = arith.constant 0 : i32
    return %c0_i32, %c0_i32_0, %c0_i32_1, %c0_i32_2 : i32, i32, i32, i32
  }
  func.func @transform_4(%arg0: i32) -> (i32, i32, i32, i32) {
    %c0_i32 = arith.constant 0 : i32
    %c0_i32_0 = arith.constant 0 : i32
    %c0_i32_1 = arith.constant 0 : i32
    %c0_i32_2 = arith.constant 0 : i32
    %c0_i32_3 = arith.constant 0 : i32
    return %c0_i32, %c0_i32_0, %c0_i32_1, %c0_i32_2 : i32, i32, i32, i32
  }
  func.func @transform_5(%arg0: i32) -> (i32, i32, i32, i32) {
    %c0_i32 = arith.constant 0 : i32
    %c0_i32_0 = arith.constant 0 : i32
    %c0_i32_1 = arith.constant 0 : i32
    %c0_i32_2 = arith.constant 0 : i32
    %c0_i32_3 = arith.constant 0 : i32
    return %c0_i32, %c0_i32_0, %c0_i32_1, %c0_i32_2 : i32, i32, i32, i32
  }
  func.func @transform_6(%arg0: i32) -> (i32, i32, i32, i32) {
    %c0_i32 = arith.constant 0 : i32
    %c0_i32_0 = arith.constant 0 : i32
    %c0_i32_1 = arith.constant 0 : i32
    %c0_i32_2 = arith.constant 0 : i32
    %c0_i32_3 = arith.constant 0 : i32
    return %c0_i32, %c0_i32_0, %c0_i32_1, %c0_i32_2 : i32, i32, i32, i32
  }
  func.func @transform_7(%arg0: i32) -> (i32, i32, i32, i32) {
    %c0_i32 = arith.constant 0 : i32
    %c0_i32_0 = arith.constant 0 : i32
    %c0_i32_1 = arith.constant 0 : i32
    %c0_i32_2 = arith.constant 0 : i32
    %c0_i32_3 = arith.constant 0 : i32
    return %c0_i32, %c0_i32_0, %c0_i32_1, %c0_i32_2 : i32, i32, i32, i32
  }
  func.func @transform_8(%arg0: i32) -> (i32, i32, i32, i32) {
    %c0_i32 = arith.constant 0 : i32
    %c0_i32_0 = arith.constant 0 : i32
    %c0_i32_1 = arith.constant 0 : i32
    %c0_i32_2 = arith.constant 0 : i32
    %c0_i32_3 = arith.constant 0 : i32
    return %c0_i32, %c0_i32_0, %c0_i32_1, %c0_i32_2 : i32, i32, i32, i32
  }
  func.func @transform_9(%arg0: i32) -> (i32, i32, i32) {
    %c0_i32 = arith.constant 0 : i32
    %c0_i32_0 = arith.constant 0 : i32
    %c0_i32_1 = arith.constant 0 : i32
    %c0_i32_2 = arith.constant 0 : i32
    return %c0_i32, %c0_i32_0, %c0_i32_1 : i32, i32, i32
  }
  func.func @transform_10(%arg0: i32) -> (i32, i32, i32) {
    %c0_i32 = arith.constant 0 : i32
    %c0_i32_0 = arith.constant 0 : i32
    %c0_i32_1 = arith.constant 0 : i32
    %c0_i32_2 = arith.constant 0 : i32
    return %c0_i32, %c0_i32_0, %c0_i32_1 : i32, i32, i32
  }
  func.func @transform_11(%arg0: i32) -> (i32, i32, i32) {
    %c0_i32 = arith.constant 0 : i32
    %c0_i32_0 = arith.constant 0 : i32
    %c0_i32_1 = arith.constant 0 : i32
    %c0_i32_2 = arith.constant 0 : i32
    return %c0_i32, %c0_i32_0, %c0_i32_1 : i32, i32, i32
  }
  func.func @transform_12(%arg0: i32) -> (i32, i32, i32) {
    %c0_i32 = arith.constant 0 : i32
    %c0_i32_0 = arith.constant 0 : i32
    %c0_i32_1 = arith.constant 0 : i32
    %c0_i32_2 = arith.constant 0 : i32
    return %c0_i32, %c0_i32_0, %c0_i32_1 : i32, i32, i32
  }
  func.func @transform_13(%arg0: i32) -> (i32, i32, i32) {
    %c0_i32 = arith.constant 0 : i32
    %c0_i32_0 = arith.constant 0 : i32
    %c0_i32_1 = arith.constant 0 : i32
    %c0_i32_2 = arith.constant 0 : i32
    return %c0_i32, %c0_i32_0, %c0_i32_1 : i32, i32, i32
  }
  func.func @transform_14(%arg0: i32) -> (i32, i32, i32) {
    %c0_i32 = arith.constant 0 : i32
    %c0_i32_0 = arith.constant 0 : i32
    %c0_i32_1 = arith.constant 0 : i32
    %c0_i32_2 = arith.constant 0 : i32
    return %c0_i32, %c0_i32_0, %c0_i32_1 : i32, i32, i32
  }
  func.func @transform_15(%arg0: i32) -> (i32, i32, i32) {
    %c0_i32 = arith.constant 0 : i32
    %c0_i32_0 = arith.constant 0 : i32
    %c0_i32_1 = arith.constant 0 : i32
    %c0_i32_2 = arith.constant 0 : i32
    return %c0_i32, %c0_i32_0, %c0_i32_1 : i32, i32, i32
  }
  func.func @transform_16(%arg0: i32) -> (i32, i32, i32) {
    %c0_i32 = arith.constant 0 : i32
    %c0_i32_0 = arith.constant 0 : i32
    %c0_i32_1 = arith.constant 0 : i32
    %c0_i32_2 = arith.constant 0 : i32
    return %c0_i32, %c0_i32_0, %c0_i32_1 : i32, i32, i32
  }
  func.func @transform_17(%arg0: i32) -> (i32, i32, i32) {
    %c0_i32 = arith.constant 0 : i32
    %c0_i32_0 = arith.constant 0 : i32
    %c0_i32_1 = arith.constant 0 : i32
    %c0_i32_2 = arith.constant 0 : i32
    return %c0_i32, %c0_i32_0, %c0_i32_1 : i32, i32, i32
  }
  func.func @transform_18(%arg0: i32) -> (i32, i32, i32) {
    %c0_i32 = arith.constant 0 : i32
    %c0_i32_0 = arith.constant 0 : i32
    %c0_i32_1 = arith.constant 0 : i32
    %c0_i32_2 = arith.constant 0 : i32
    return %c0_i32, %c0_i32_0, %c0_i32_1 : i32, i32, i32
  }
  func.func @transform_19(%arg0: i32) -> (i32, i32, i32) {
    %c0_i32 = arith.constant 0 : i32
    %c0_i32_0 = arith.constant 0 : i32
    %c0_i32_1 = arith.constant 0 : i32
    return %arg0, %c0_i32, %c0_i32_0 : i32, i32, i32
  }
}

</mosaic_0001>

<llo_original>
// kernel: dpr_question_encoder_forward.1
$region0: #{dpr_question_encoder_forward.1}
  #allocation0 [shape = 'u32[]', space=smem, size = 0x4, offset = 0x4, fixed_abs, tag = 'smem constant byte address 0x4 - core index']
  #allocation1 [shape = 'u32[144,128]{1,0:T(1,128)}', space=vmem, size = 0x12000, scoped, tag = 'internal scratch']
  %s0 = inlined_call_operand.vmem [shape: f32[2,8,128], index: 0, kind: input, shape index: {}]
  %s1 = inlined_call_operand.vmem [shape: f32[1,128], index: 1, kind: input, shape index: {}]
  %s2 = inlined_call_operand.vmem [shape: f32[1,128], index: 2, kind: input, shape index: {}]
  %s3 = inlined_call_operand.vmem [shape: bf16[2,2,128,64], index: 3, kind: input, shape index: {}]
  %s4 = inlined_call_operand.vmem [shape: f32[2,2,1,64], index: 4, kind: input, shape index: {}]
  %s5 = inlined_call_operand.vmem [shape: bf16[2,2,128,64], index: 5, kind: input, shape index: {}]
  %s6 = inlined_call_operand.vmem [shape: f32[2,2,1,64], index: 6, kind: input, shape index: {}]
  %s7 = inlined_call_operand.vmem [shape: bf16[2,2,128,64], index: 7, kind: input, shape index: {}]
  %s8 = inlined_call_operand.vmem [shape: f32[2,2,1,64], index: 8, kind: input, shape index: {}]
  %s9 = inlined_call_operand.vmem [shape: bf16[2,128,128], index: 9, kind: input, shape index: {}]
  %s10 = inlined_call_operand.vmem [shape: f32[2,1,128], index: 10, kind: input, shape index: {}]
  %s11 = inlined_call_operand.vmem [shape: f32[2,1,128], index: 11, kind: input, shape index: {}]
  %s12 = inlined_call_operand.vmem [shape: f32[2,1,128], index: 12, kind: input, shape index: {}]
  %s13 = inlined_call_operand.vmem [shape: bf16[2,128,256], index: 13, kind: input, shape index: {}]
  %s14 = inlined_call_operand.vmem [shape: f32[2,1,256], index: 14, kind: input, shape index: {}]
  %s15 = inlined_call_operand.vmem [shape: bf16[2,256,128], index: 15, kind: input, shape index: {}]
  %s16 = inlined_call_operand.vmem [shape: f32[2,1,128], index: 16, kind: input, shape index: {}]
  %s17 = inlined_call_operand.vmem [shape: f32[2,1,128], index: 17, kind: input, shape index: {}]
  %s18 = inlined_call_operand.vmem [shape: f32[2,1,128], index: 18, kind: input, shape index: {}]
  %s19 = inlined_call_operand.hbm [shape: f32[2,1,128], index: 19, kind: output, shape index: {}]
  %s20 = sld [smem:[#allocation0]]
  $region109: #{dpr_question_encoder_forward.1} parent=0
    _
  %s22 = ssub.s32 1, %s20
  %s23 = scalar_select 0, %s22, %s20
  $region1: #{dpr_question_encoder_forward.1} parent=0
    #allocation2 [shape = 'u8[1024]{0}', space=vmem, size = 0x400, scoped, tag = 'output window, operand 0']
    #allocation3 [shape = 's32[2]{0}', space=sflag, size = 0x8, scoped, tag = 'scoped memory for dpr_question_encoder_forward.1']
    %24 = vsyncpa [#allocation3], 0
    %s25 = scalar_lea.sflag [#allocation3], 1
    %26 = vsyncpa %s25, 0
    loop: start=0, step=1, limit=4
    $region2: #{dpr_question_encoder_forward.1} parent=1 // loop_pre_header
      _
    $region3: #{dpr_question_encoder_forward.1} parent=1 // loop_header
      %s28 = sphi 0, %s32
      %p29 = scmp.ge.s32.totalorder %s28, 4
      %s38 = sphi 0, %s40
      %s41 = sphi 0, %s38
      %s42 = sphi 0, %s41
      %s58 = sphi 0, %s42
      %s62 = sphi 0, %s62
      %s64 = sphi 0, %s62
      %s65 = sphi 0, %s64
      %s79 = sphi 0, %s65
      %s83 = sphi 0, %s83
      %s85 = sphi 0, %s83
      %s86 = sphi 0, %s85
      %s100 = sphi 0, %s86
      %s104 = sphi 0, %s104
      %s106 = sphi 0, %s104
      %s107 = sphi 0, %s106
      %s121 = sphi 0, %s107
      %s125 = sphi 0, %s125
      %s127 = sphi 0, %s125
      %s128 = sphi 0, %s127
      %s142 = sphi 0, %s128
      %s146 = sphi 0, %s146
      %s148 = sphi 0, %s146
      %s149 = sphi 0, %s148
      %s163 = sphi 0, %s149
      %s167 = sphi 0, %s167
      %s169 = sphi 0, %s167
      %s170 = sphi 0, %s169
      %s184 = sphi 0, %s170
      %s188 = sphi 0, %s188
      %s190 = sphi 0, %s188
      %s191 = sphi 0, %s190
      %s205 = sphi 0, %s191
      %s209 = sphi 0, %s209
      %s211 = sphi 0, %s209
      %s212 = sphi 0, %s211
      %s226 = sphi 0, %s212
      %s230 = sphi 0, %s230
      %s232 = sphi 0, %s230
      %s233 = sphi 0, %s232
      %s247 = sphi 0, %s233
      %s251 = sphi 0, %s251
      %s253 = sphi 0, %s251
      %s254 = sphi 0, %s253
      %s268 = sphi 0, %s254
      %s272 = sphi 0, %s272
      %s274 = sphi 0, %s272
      %s275 = sphi 0, %s274
      %s289 = sphi 0, %s275
      %s293 = sphi 0, %s293
      %s295 = sphi 0, %s293
      %s296 = sphi 0, %s295
      %s310 = sphi 0, %s296
      %s314 = sphi 0, %s314
      %s316 = sphi 0, %s314
      %s317 = sphi 0, %s316
      %s331 = sphi 0, %s317
      %s335 = sphi 0, %s335
      %s337 = sphi 0, %s335
      %s338 = sphi 0, %s337
      %s352 = sphi 0, %s338
      %s356 = sphi 0, %s356
      %s358 = sphi 0, %s356
      %s359 = sphi 0, %s358
      %s373 = sphi 0, %s359
      %s377 = sphi 0, %s377
      %s379 = sphi 0, %s377
      %s380 = sphi 0, %s379
      %s394 = sphi 0, %s380
      %s398 = sphi 0, %s398
      %s400 = sphi 0, %s398
      %s401 = sphi 0, %s400
      %s415 = sphi 0, %s401
      %s419 = sphi 0, %s419
      %s421 = sphi 0, %s419
      %s422 = sphi 0, %s421
      %s436 = sphi 0, %s422
      %s442 = sphi 0, %s444
      %s445 = sphi 0, %s442
      %s446 = sphi 0, %s445
      %s462 = sphi 0, %s446
    $region4: #{dpr_question_encoder_forward.1} parent=1 // loop_header_branch
      %31 = sbr.rel (%p29) target = $region8
    $region5: #{dpr_question_encoder_forward.1} parent=1 // loop_body
      %s33 = ssub.s32 %s28, 1
      %s34 = ssub.s32 %s28, 2
      %s35 = sadd.s32 %s28, 1
      %s36 = ssub.s32 %s28, %s35
      %p37 = scmp.eq.s32.totalorder %s36, 0
      %s39 = sadd.s32 %s38, 1
      %s40 = scalar_select %p37, %s38, %s39
      %p43 = pneg %p37
      %p44 = scmp.eq.s32.totalorder %s28, 1
      %p45 = por %p43, %p44
      %p46 = scmp.ne.s32.totalorder %s38, %s41
      %p47 = scmp.eq.s32.totalorder %s28, 0
      %p48 = por %p46, %p47
      %p49 = scmp.ne.s32.totalorder %s38, %s41
      %p50 = scmp.eq.s32.totalorder %s33, 1
      %p51 = por %p49, %p50
      %p52 = scmp.ne.s32.totalorder %s41, %s42
      %p53 = scmp.eq.s32.totalorder %s33, 0
      %p54 = por %p52, %p53
      %p55 = scmp.ne.s32.totalorder %s41, %s42
      %p56 = scmp.eq.s32.totalorder %s34, 1
      %p57 = por %p55, %p56
      %p59 = scmp.ne.s32.totalorder %s42, %s58
      %p60 = scmp.eq.s32.totalorder %s34, 0
      %p61 = por %p59, %p60
      %s63 = sadd.s32 %s62, 1
      %p66 = scmp.eq.s32.totalorder %s28, 1
      %p67 = scmp.ne.s32.totalorder %s62, %s64
      %p68 = scmp.eq.s32.totalorder %s28, 0
      %p69 = por %p67, %p68
      %p70 = scmp.ne.s32.totalorder %s62, %s64
      %p71 = scmp.eq.s32.totalorder %s33, 1
      %p72 = por %p70, %p71
      %p73 = scmp.ne.s32.totalorder %s64, %s65
      %p74 = scmp.eq.s32.totalorder %s33, 0
      %p75 = por %p73, %p74
      %p76 = scmp.ne.s32.totalorder %s64, %s65
      %p77 = scmp.eq.s32.totalorder %s34, 1
      %p78 = por %p76, %p77
      %p80 = scmp.ne.s32.totalorder %s65, %s79
      %p81 = scmp.eq.s32.totalorder %s34, 0
      %p82 = por %p80, %p81
      %s84 = sadd.s32 %s83, 1
      %p87 = scmp.eq.s32.totalorder %s28, 1
      %p88 = scmp.ne.s32.totalorder %s83, %s85
      %p89 = scmp.eq.s32.totalorder %s28, 0
      %p90 = por %p88, %p89
      %p91 = scmp.ne.s32.totalorder %s83, %s85
      %p92 = scmp.eq.s32.totalorder %s33, 1
      %p93 = por %p91, %p92
      %p94 = scmp.ne.s32.totalorder %s85, %s86
      %p95 = scmp.eq.s32.totalorder %s33, 0
      %p96 = por %p94, %p95
      %p97 = scmp.ne.s32.totalorder %s85, %s86
      %p98 = scmp.eq.s32.totalorder %s34, 1
      %p99 = por %p97, %p98
      %p101 = scmp.ne.s32.totalorder %s86, %s100
      %p102 = scmp.eq.s32.totalorder %s34, 0
      %p103 = por %p101, %p102
      %s105 = sadd.s32 %s104, 1
      %p108 = scmp.eq.s32.totalorder %s28, 1
      %p109 = scmp.ne.s32.totalorder %s104, %s106
      %p110 = scmp.eq.s32.totalorder %s28, 0
      %p111 = por %p109, %p110
      %p112 = scmp.ne.s32.totalorder %s104, %s106
      %p113 = scmp.eq.s32.totalorder %s33, 1
      %p114 = por %p112, %p113
      %p115 = scmp.ne.s32.totalorder %s106, %s107
      %p116 = scmp.eq.s32.totalorder %s33, 0
      %p117 = por %p115, %p116
      %p118 = scmp.ne.s32.totalorder %s106, %s107
      %p119 = scmp.eq.s32.totalorder %s34, 1
      %p120 = por %p118, %p119
      %p122 = scmp.ne.s32.totalorder %s107, %s121
      %p123 = scmp.eq.s32.totalorder %s34, 0
      %p124 = por %p122, %p123
      %s126 = sadd.s32 %s125, 1
      %p129 = scmp.eq.s32.totalorder %s28, 1
      %p130 = scmp.ne.s32.totalorder %s125, %s127
      %p131 = scmp.eq.s32.totalorder %s28, 0
      %p132 = por %p130, %p131
      %p133 = scmp.ne.s32.totalorder %s125, %s127
      %p134 = scmp.eq.s32.totalorder %s33, 1
      %p135 = por %p133, %p134
      %p136 = scmp.ne.s32.totalorder %s127, %s128
      %p137 = scmp.eq.s32.totalorder %s33, 0
      %p138 = por %p136, %p137
      %p139 = scmp.ne.s32.totalorder %s127, %s128
      %p140 = scmp.eq.s32.totalorder %s34, 1
      %p141 = por %p139, %p140
      %p143 = scmp.ne.s32.totalorder %s128, %s142
      %p144 = scmp.eq.s32.totalorder %s34, 0
      %p145 = por %p143, %p144
      %s147 = sadd.s32 %s146, 1
      %p150 = scmp.eq.s32.totalorder %s28, 1
      %p151 = scmp.ne.s32.totalorder %s146, %s148
      %p152 = scmp.eq.s32.totalorder %s28, 0
      %p153 = por %p151, %p152
      %p154 = scmp.ne.s32.totalorder %s146, %s148
      %p155 = scmp.eq.s32.totalorder %s33, 1
      %p156 = por %p154, %p155
      %p157 = scmp.ne.s32.totalorder %s148, %s149
      %p158 = scmp.eq.s32.totalorder %s33, 0
      %p159 = por %p157, %p158
      %p160 = scmp.ne.s32.totalorder %s148, %s149
      %p161 = scmp.eq.s32.totalorder %s34, 1
      %p162 = por %p160, %p161
      %p164 = scmp.ne.s32.totalorder %s149, %s163
      %p165 = scmp.eq.s32.totalorder %s34, 0
      %p166 = por %p164, %p165
      %s168 = sadd.s32 %s167, 1
      %p171 = scmp.eq.s32.totalorder %s28, 1
      %p172 = scmp.ne.s32.totalorder %s167, %s169
      %p173 = scmp.eq.s32.totalorder %s28, 0
      %p174 = por %p172, %p173
      %p175 = scmp.ne.s32.totalorder %s167, %s169
      %p176 = scmp.eq.s32.totalorder %s33, 1
      %p177 = por %p175, %p176
      %p178 = scmp.ne.s32.totalorder %s169, %s170
      %p179 = scmp.eq.s32.totalorder %s33, 0
      %p180 = por %p178, %p179
      %p181 = scmp.ne.s32.totalorder %s169, %s170
      %p182 = scmp.eq.s32.totalorder %s34, 1
      %p183 = por %p181, %p182
      %p185 = scmp.ne.s32.totalorder %s170, %s184
      %p186 = scmp.eq.s32.totalorder %s34, 0
      %p187 = por %p185, %p186
      %s189 = sadd.s32 %s188, 1
      %p192 = scmp.eq.s32.totalorder %s28, 1
      %p193 = scmp.ne.s32.totalorder %s188, %s190
      %p194 = scmp.eq.s32.totalorder %s28, 0
      %p195 = por %p193, %p194
      %p196 = scmp.ne.s32.totalorder %s188, %s190
      %p197 = scmp.eq.s32.totalorder %s33, 1
      %p198 = por %p196, %p197
      %p199 = scmp.ne.s32.totalorder %s190, %s191
      %p200 = scmp.eq.s32.totalorder %s33, 0
      %p201 = por %p199, %p200
      %p202 = scmp.ne.s32.totalorder %s190, %s191
      %p203 = scmp.eq.s32.totalorder %s34, 1
      %p204 = por %p202, %p203
      %p206 = scmp.ne.s32.totalorder %s191, %s205
      %p207 = scmp.eq.s32.totalorder %s34, 0
      %p208 = por %p206, %p207
      %s210 = sadd.s32 %s209, 1
      %p213 = scmp.eq.s32.totalorder %s28, 1
      %p214 = scmp.ne.s32.totalorder %s209, %s211
      %p215 = scmp.eq.s32.totalorder %s28, 0
      %p216 = por %p214, %p215
      %p217 = scmp.ne.s32.totalorder %s209, %s211
      %p218 = scmp.eq.s32.totalorder %s33, 1
      %p219 = por %p217, %p218
      %p220 = scmp.ne.s32.totalorder %s211, %s212
      %p221 = scmp.eq.s32.totalorder %s33, 0
      %p222 = por %p220, %p221
      %p223 = scmp.ne.s32.totalorder %s211, %s212
      %p224 = scmp.eq.s32.totalorder %s34, 1
      %p225 = por %p223, %p224
      %p227 = scmp.ne.s32.totalorder %s212, %s226
      %p228 = scmp.eq.s32.totalorder %s34, 0
      %p229 = por %p227, %p228
      %s231 = sadd.s32 %s230, 1
      %p234 = scmp.eq.s32.totalorder %s28, 1
      %p235 = scmp.ne.s32.totalorder %s230, %s232
      %p236 = scmp.eq.s32.totalorder %s28, 0
      %p237 = por %p235, %p236
      %p238 = scmp.ne.s32.totalorder %s230, %s232
      %p239 = scmp.eq.s32.totalorder %s33, 1
      %p240 = por %p238, %p239
      %p241 = scmp.ne.s32.totalorder %s232, %s233
      %p242 = scmp.eq.s32.totalorder %s33, 0
      %p243 = por %p241, %p242
      %p244 = scmp.ne.s32.totalorder %s232, %s233
      %p245 = scmp.eq.s32.totalorder %s34, 1
      %p246 = por %p244, %p245
      %p248 = scmp.ne.s32.totalorder %s233, %s247
      %p249 = scmp.eq.s32.totalorder %s34, 0
      %p250 = por %p248, %p249
      %s252 = sadd.s32 %s251, 1
      %p255 = scmp.eq.s32.totalorder %s28, 1
      %p256 = scmp.ne.s32.totalorder %s251, %s253
      %p257 = scmp.eq.s32.totalorder %s28, 0
      %p258 = por %p256, %p257
      %p259 = scmp.ne.s32.totalorder %s251, %s253
      %p260 = scmp.eq.s32.totalorder %s33, 1
      %p261 = por %p259, %p260
      %p262 = scmp.ne.s32.totalorder %s253, %s254
      %p263 = scmp.eq.s32.totalorder %s33, 0
      %p264 = por %p262, %p263
      %p265 = scmp.ne.s32.totalorder %s253, %s254
      %p266 = scmp.eq.s32.totalorder %s34, 1
      %p267 = por %p265, %p266
      %p269 = scmp.ne.s32.totalorder %s254, %s268
      %p270 = scmp.eq.s32.totalorder %s34, 0
      %p271 = por %p269, %p270
      %s273 = sadd.s32 %s272, 1
      %p276 = scmp.eq.s32.totalorder %s28, 1
      %p277 = scmp.ne.s32.totalorder %s272, %s274
      %p278 = scmp.eq.s32.totalorder %s28, 0
      %p279 = por %p277, %p278
      %p280 = scmp.ne.s32.totalorder %s272, %s274
      %p281 = scmp.eq.s32.totalorder %s33, 1
      %p282 = por %p280, %p281
      %p283 = scmp.ne.s32.totalorder %s274, %s275
      %p284 = scmp.eq.s32.totalorder %s33, 0
      %p285 = por %p283, %p284
      %p286 = scmp.ne.s32.totalorder %s274, %s275
      %p287 = scmp.eq.s32.totalorder %s34, 1
      %p288 = por %p286, %p287
      %p290 = scmp.ne.s32.totalorder %s275, %s289
      %p291 = scmp.eq.s32.totalorder %s34, 0
      %p292 = por %p290, %p291
      %s294 = sadd.s32 %s293, 1
      %p297 = scmp.eq.s32.totalorder %s28, 1
      %p298 = scmp.ne.s32.totalorder %s293, %s295
      %p299 = scmp.eq.s32.totalorder %s28, 0
      %p300 = por %p298, %p299
      %p301 = scmp.ne.s32.totalorder %s293, %s295
      %p302 = scmp.eq.s32.totalorder %s33, 1
      %p303 = por %p301, %p302
      %p304 = scmp.ne.s32.totalorder %s295, %s296
      %p305 = scmp.eq.s32.totalorder %s33, 0
      %p306 = por %p304, %p305
      %p307 = scmp.ne.s32.totalorder %s295, %s296
      %p308 = scmp.eq.s32.totalorder %s34, 1
      %p309 = por %p307, %p308
      %p311 = scmp.ne.s32.totalorder %s296, %s310
      %p312 = scmp.eq.s32.totalorder %s34, 0
      %p313 = por %p311, %p312
      %s315 = sadd.s32 %s314, 1
      %p318 = scmp.eq.s32.totalorder %s28, 1
      %p319 = scmp.ne.s32.totalorder %s314, %s316
      %p320 = scmp.eq.s32.totalorder %s28, 0
      %p321 = por %p319, %p320
      %p322 = scmp.ne.s32.totalorder %s314, %s316
      %p323 = scmp.eq.s32.totalorder %s33, 1
      %p324 = por %p322, %p323
      %p325 = scmp.ne.s32.totalorder %s316, %s317
      %p326 = scmp.eq.s32.totalorder %s33, 0
      %p327 = por %p325, %p326
      %p328 = scmp.ne.s32.totalorder %s316, %s317
      %p329 = scmp.eq.s32.totalorder %s34, 1
      %p330 = por %p328, %p329
      %p332 = scmp.ne.s32.totalorder %s317, %s331
      %p333 = scmp.eq.s32.totalorder %s34, 0
      %p334 = por %p332, %p333
      %s336 = sadd.s32 %s335, 1
      %p339 = scmp.eq.s32.totalorder %s28, 1
      %p340 = scmp.ne.s32.totalorder %s335, %s337
      %p341 = scmp.eq.s32.totalorder %s28, 0
      %p342 = por %p340, %p341
      %p343 = scmp.ne.s32.totalorder %s335, %s337
      %p344 = scmp.eq.s32.totalorder %s33, 1
      %p345 = por %p343, %p344
      %p346 = scmp.ne.s32.totalorder %s337, %s338
      %p347 = scmp.eq.s32.totalorder %s33, 0
      %p348 = por %p346, %p347
      %p349 = scmp.ne.s32.totalorder %s337, %s338
      %p350 = scmp.eq.s32.totalorder %s34, 1
      %p351 = por %p349, %p350
      %p353 = scmp.ne.s32.totalorder %s338, %s352
      %p354 = scmp.eq.s32.totalorder %s34, 0
      %p355 = por %p353, %p354
      %s357 = sadd.s32 %s356, 1
      %p360 = scmp.eq.s32.totalorder %s28, 1
      %p361 = scmp.ne.s32.totalorder %s356, %s358
      %p362 = scmp.eq.s32.totalorder %s28, 0
      %p363 = por %p361, %p362
      %p364 = scmp.ne.s32.totalorder %s356, %s358
      %p365 = scmp.eq.s32.totalorder %s33, 1
      %p366 = por %p364, %p365
      %p367 = scmp.ne.s32.totalorder %s358, %s359
      %p368 = scmp.eq.s32.totalorder %s33, 0
      %p369 = por %p367, %p368
      %p370 = scmp.ne.s32.totalorder %s358, %s359
      %p371 = scmp.eq.s32.totalorder %s34, 1
      %p372 = por %p370, %p371
      %p374 = scmp.ne.s32.totalorder %s359, %s373
      %p375 = scmp.eq.s32.totalorder %s34, 0
      %p376 = por %p374, %p375
      %s378 = sadd.s32 %s377, 1
      %p381 = scmp.eq.s32.totalorder %s28, 1
      %p382 = scmp.ne.s32.totalorder %s377, %s379
      %p383 = scmp.eq.s32.totalorder %s28, 0
      %p384 = por %p382, %p383
      %p385 = scmp.ne.s32.totalorder %s377, %s379
      %p386 = scmp.eq.s32.totalorder %s33, 1
      %p387 = por %p385, %p386
      %p388 = scmp.ne.s32.totalorder %s379, %s380
      %p389 = scmp.eq.s32.totalorder %s33, 0
      %p390 = por %p388, %p389
      %p391 = scmp.ne.s32.totalorder %s379, %s380
      %p392 = scmp.eq.s32.totalorder %s34, 1
      %p393 = por %p391, %p392
      %p395 = scmp.ne.s32.totalorder %s380, %s394
      %p396 = scmp.eq.s32.totalorder %s34, 0
      %p397 = por %p395, %p396
      %s399 = sadd.s32 %s398, 1
      %p402 = scmp.eq.s32.totalorder %s28, 1
      %p403 = scmp.ne.s32.totalorder %s398, %s400
      %p404 = scmp.eq.s32.totalorder %s28, 0
      %p405 = por %p403, %p404
      %p406 = scmp.ne.s32.totalorder %s398, %s400
      %p407 = scmp.eq.s32.totalorder %s33, 1
      %p408 = por %p406, %p407
      %p409 = scmp.ne.s32.totalorder %s400, %s401
      %p410 = scmp.eq.s32.totalorder %s33, 0
      %p411 = por %p409, %p410
      %p412 = scmp.ne.s32.totalorder %s400, %s401
      %p413 = scmp.eq.s32.totalorder %s34, 1
      %p414 = por %p412, %p413
      %p416 = scmp.ne.s32.totalorder %s401, %s415
      %p417 = scmp.eq.s32.totalorder %s34, 0
      %p418 = por %p416, %p417
      %s420 = sadd.s32 %s419, 1
      %p423 = scmp.eq.s32.totalorder %s28, 1
      %p424 = scmp.ne.s32.totalorder %s419, %s421
      %p425 = scmp.eq.s32.totalorder %s28, 0
      %p426 = por %p424, %p425
      %p427 = scmp.ne.s32.totalorder %s419, %s421
      %p428 = scmp.eq.s32.totalorder %s33, 1
      %p429 = por %p427, %p428
      %p430 = scmp.ne.s32.totalorder %s421, %s422
      %p431 = scmp.eq.s32.totalorder %s33, 0
      %p432 = por %p430, %p431
      %p433 = scmp.ne.s32.totalorder %s421, %s422
      %p434 = scmp.eq.s32.totalorder %s34, 1
      %p435 = por %p433, %p434
      %p437 = scmp.ne.s32.totalorder %s422, %s436
      %p438 = scmp.eq.s32.totalorder %s34, 0
      %p439 = por %p437, %p438
      %s440 = ssub.s32 %s28, %s35
      %p441 = scmp.eq.s32.totalorder %s440, 0
      %s443 = sadd.s32 %s442, 1
      %s444 = scalar_select %p441, %s442, %s443
      %p447 = pneg %p441
      %p448 = scmp.eq.s32.totalorder %s28, 1
      %p449 = por %p447, %p448
      %p450 = scmp.ne.s32.totalorder %s442, %s445
      %p451 = scmp.eq.s32.totalorder %s28, 0
      %p452 = por %p450, %p451
      %p453 = scmp.ne.s32.totalorder %s442, %s445
      %p454 = scmp.eq.s32.totalorder %s33, 1
      %p455 = por %p453, %p454
      %p456 = scmp.ne.s32.totalorder %s445, %s446
      %p457 = scmp.eq.s32.totalorder %s33, 0
      %p458 = por %p456, %p457
      %p459 = scmp.ne.s32.totalorder %s445, %s446
      %p460 = scmp.eq.s32.totalorder %s34, 1
      %p461 = por %p459, %p460
      %p463 = scmp.ne.s32.totalorder %s446, %s462
      %p464 = scmp.eq.s32.totalorder %s34, 0
      %p465 = por %p463, %p464
      %p466 = scmp.le.s32.totalorder 1, %s28
      %p467 = scmp.lt.s32.totalorder %s28, 3
      %p468 = pnand %p466, %p467
      %p469 = pneg %p468
      // Predicated region
      $region9: #{dpr_question_encoder_forward.1} parent=5 // pred_check
        _
      $region10: #{dpr_question_encoder_forward.1} parent=5 // pred_check_branch
        %471 = sbr.rel (%p468) target = $region12
      $region11: #{dpr_question_encoder_forward.1} parent=5 // pred_region
        %s472 = ssub.s32 %s28, 1
        // Predicated region
        $region13: #{dpr_question_encoder_forward.1} parent=11 // pred_check
          %p473 = pneg %p75
        $region14: #{dpr_question_encoder_forward.1} parent=11 // pred_check_branch
          %475 = sbr.rel (%p473) target = $region16
        $region15: #{dpr_question_encoder_forward.1} parent=11 // pred_region
          _
        $region16: #{dpr_question_encoder_forward.1} parent=11 // pred_fallthru
          _
        // Predicated region
        $region17: #{dpr_question_encoder_forward.1} parent=11 // pred_check
          %p476 = pneg %p96
        $region18: #{dpr_question_encoder_forward.1} parent=11 // pred_check_branch
          %478 = sbr.rel (%p476) target = $region20
        $region19: #{dpr_question_encoder_forward.1} parent=11 // pred_region
          _
        $region20: #{dpr_question_encoder_forward.1} parent=11 // pred_fallthru
          _
        // Predicated region
        $region21: #{dpr_question_encoder_forward.1} parent=11 // pred_check
          %p479 = pneg %p117
        $region22: #{dpr_question_encoder_forward.1} parent=11 // pred_check_branch
          %481 = sbr.rel (%p479) target = $region24
        $region23: #{dpr_question_encoder_forward.1} parent=11 // pred_region
          _
        $region24: #{dpr_question_encoder_forward.1} parent=11 // pred_fallthru
          _
        // Predicated region
        $region25: #{dpr_question_encoder_forward.1} parent=11 // pred_check
          %p482 = pneg %p138
        $region26: #{dpr_question_encoder_forward.1} parent=11 // pred_check_branch
          %484 = sbr.rel (%p482) target = $region28
        $region27: #{dpr_question_encoder_forward.1} parent=11 // pred_region
          _
        $region28: #{dpr_question_encoder_forward.1} parent=11 // pred_fallthru
          _
        // Predicated region
        $region29: #{dpr_question_encoder_forward.1} parent=11 // pred_check
          %p485 = pneg %p159
        $region30: #{dpr_question_encoder_forward.1} parent=11 // pred_check_branch
          %487 = sbr.rel (%p485) target = $region32
        $region31: #{dpr_question_encoder_forward.1} parent=11 // pred_region
          _
        $region32: #{dpr_question_encoder_forward.1} parent=11 // pred_fallthru
          _
        // Predicated region
        $region33: #{dpr_question_encoder_forward.1} parent=11 // pred_check
          %p488 = pneg %p180
        $region34: #{dpr_question_encoder_forward.1} parent=11 // pred_check_branch
          %490 = sbr.rel (%p488) target = $region36
        $region35: #{dpr_question_encoder_forward.1} parent=11 // pred_region
          _
        $region36: #{dpr_question_encoder_forward.1} parent=11 // pred_fallthru
          _
        // Predicated region
        $region37: #{dpr_question_encoder_forward.1} parent=11 // pred_check
          %p491 = pneg %p201
        $region38: #{dpr_question_encoder_forward.1} parent=11 // pred_check_branch
          %493 = sbr.rel (%p491) target = $region40
        $region39: #{dpr_question_encoder_forward.1} parent=11 // pred_region
          _
        $region40: #{dpr_question_encoder_forward.1} parent=11 // pred_fallthru
          _
        // Predicated region
        $region41: #{dpr_question_encoder_forward.1} parent=11 // pred_check
          %p494 = pneg %p222
        $region42: #{dpr_question_encoder_forward.1} parent=11 // pred_check_branch
          %496 = sbr.rel (%p494) target = $region44
        $region43: #{dpr_question_encoder_forward.1} parent=11 // pred_region
          _
        $region44: #{dpr_question_encoder_forward.1} parent=11 // pred_fallthru
          _
        // Predicated region
        $region45: #{dpr_question_encoder_forward.1} parent=11 // pred_check
          %p497 = pneg %p243
        $region46: #{dpr_question_encoder_forward.1} parent=11 // pred_check_branch
          %499 = sbr.rel (%p497) target = $region48
        $region47: #{dpr_question_encoder_forward.1} parent=11 // pred_region
          _
        $region48: #{dpr_question_encoder_forward.1} parent=11 // pred_fallthru
          _
        // Predicated region
        $region49: #{dpr_question_encoder_forward.1} parent=11 // pred_check
          %p500 = pneg %p264
        $region50: #{dpr_question_encoder_forward.1} parent=11 // pred_check_branch
          %502 = sbr.rel (%p500) target = $region52
        $region51: #{dpr_question_encoder_forward.1} parent=11 // pred_region
          _
        $region52: #{dpr_question_encoder_forward.1} parent=11 // pred_fallthru
          _
        // Predicated region
        $region53: #{dpr_question_encoder_forward.1} parent=11 // pred_check
          %p503 = pneg %p285
        $region54: #{dpr_question_encoder_forward.1} parent=11 // pred_check_branch
          %505 = sbr.rel (%p503) target = $region56
        $region55: #{dpr_question_encoder_forward.1} parent=11 // pred_region
          _
        $region56: #{dpr_question_encoder_forward.1} parent=11 // pred_fallthru
          _
        // Predicated region
        $region57: #{dpr_question_encoder_forward.1} parent=11 // pred_check
          %p506 = pneg %p306
        $region58: #{dpr_question_encoder_forward.1} parent=11 // pred_check_branch
          %508 = sbr.rel (%p506) target = $region60
        $region59: #{dpr_question_encoder_forward.1} parent=11 // pred_region
          _
        $region60: #{dpr_question_encoder_forward.1} parent=11 // pred_fallthru
          _
        // Predicated region
        $region61: #{dpr_question_encoder_forward.1} parent=11 // pred_check
          %p509 = pneg %p327
        $region62: #{dpr_question_encoder_forward.1} parent=11 // pred_check_branch
          %511 = sbr.rel (%p509) target = $region64
        $region63: #{dpr_question_encoder_forward.1} parent=11 // pred_region
          _
        $region64: #{dpr_question_encoder_forward.1} parent=11 // pred_fallthru
          _
        // Predicated region
        $region65: #{dpr_question_encoder_forward.1} parent=11 // pred_check
          %p512 = pneg %p348
        $region66: #{dpr_question_encoder_forward.1} parent=11 // pred_check_branch
          %514 = sbr.rel (%p512) target = $region68
        $region67: #{dpr_question_encoder_forward.1} parent=11 // pred_region
          _
        $region68: #{dpr_question_encoder_forward.1} parent=11 // pred_fallthru
          _
        // Predicated region
        $region69: #{dpr_question_encoder_forward.1} parent=11 // pred_check
          %p515 = pneg %p369
        $region70: #{dpr_question_encoder_forward.1} parent=11 // pred_check_branch
          %517 = sbr.rel (%p515) target = $region72
        $region71: #{dpr_question_encoder_forward.1} parent=11 // pred_region
          _
        $region72: #{dpr_question_encoder_forward.1} parent=11 // pred_fallthru
          _
        // Predicated region
        $region73: #{dpr_question_encoder_forward.1} parent=11 // pred_check
          %p518 = pneg %p390
        $region74: #{dpr_question_encoder_forward.1} parent=11 // pred_check_branch
          %520 = sbr.rel (%p518) target = $region76
        $region75: #{dpr_question_encoder_forward.1} parent=11 // pred_region
          _
        $region76: #{dpr_question_encoder_forward.1} parent=11 // pred_fallthru
          _
        // Predicated region
        $region77: #{dpr_question_encoder_forward.1} parent=11 // pred_check
          %p521 = pneg %p411
        $region78: #{dpr_question_encoder_forward.1} parent=11 // pred_check_branch
          %523 = sbr.rel (%p521) target = $region80
        $region79: #{dpr_question_encoder_forward.1} parent=11 // pred_region
          _
        $region80: #{dpr_question_encoder_forward.1} parent=11 // pred_fallthru
          _
        // Predicated region
        $region81: #{dpr_question_encoder_forward.1} parent=11 // pred_check
          %p524 = pneg %p432
        $region82: #{dpr_question_encoder_forward.1} parent=11 // pred_check_branch
          %526 = sbr.rel (%p524) target = $region84
        $region83: #{dpr_question_encoder_forward.1} parent=11 // pred_region
          _
        $region84: #{dpr_question_encoder_forward.1} parent=11 // pred_fallthru
          _
      $region12: #{dpr_question_encoder_forward.1} parent=5 // pred_fallthru
        _
      %p527 = scmp.lt.s32.totalorder %s28, 2
      // Predicated region
      $region85: #{dpr_question_encoder_forward.1} parent=5 // pred_check
        %p528 = pneg %p527
      $region86: #{dpr_question_encoder_forward.1} parent=5 // pred_check_branch
        %530 = sbr.rel (%p528) target = $region88
      $region87: #{dpr_question_encoder_forward.1} parent=5 // pred_region
        // Predicated region
        $region89: #{dpr_question_encoder_forward.1} parent=87 // pred_check
          %p531 = pneg %p48
        $region90: #{dpr_question_encoder_forward.1} parent=87 // pred_check_branch
          %533 = sbr.rel (%p531) target = $region92
        $region91: #{dpr_question_encoder_forward.1} parent=87 // pred_region
          %p534 = scmp.lt.s32.totalorder %s28, 1
          %s535 = scalar_select %p534, %s28, 1
          %s536 = smul.addr %s535, 8
          %s537 = scalar_lea.vmem %s0, %s536
        $region92: #{dpr_question_encoder_forward.1} parent=87 // pred_fallthru
          _
      $region88: #{dpr_question_encoder_forward.1} parent=5 // pred_fallthru
        _
      %p538 = scmp.le.s32.totalorder 1, %s28
      %p539 = scmp.lt.s32.totalorder %s28, 3
      %p540 = pnand %p538, %p539
      %p541 = pneg %p540
      // Predicated region
      $region93: #{dpr_question_encoder_forward.1} parent=5 // pred_check
        _
      $region94: #{dpr_question_encoder_forward.1} parent=5 // pred_check_branch
        %543 = sbr.rel (%p540) target = $region96
      $region95: #{dpr_question_encoder_forward.1} parent=5 // pred_region
        %s544 = ssub.s32 %s28, 1
        %p545 = scmp.lt.s32.totalorder %s33, 1
        %s546 = scalar_select %p545, %s33, 1
        %s547 = smul.addr %s546, 8
        %s548 = scalar_lea.vmem %s0, %s547
        %p549 = pneg %p54
        %p550 = pneg %p51
        %p551 = pneg %p75
        %p552 = pneg %p72
        %p553 = pneg %p96
        %p554 = pneg %p93
        %p555 = pneg %p117
        %p556 = pneg %p114
        %p557 = pneg %p138
        %p558 = pneg %p135
        %p559 = pneg %p159
        %p560 = pneg %p156
        %p561 = pneg %p180
        %p562 = pneg %p177
        %p563 = pneg %p201
        %p564 = pneg %p198
        %p565 = pneg %p222
        %p566 = pneg %p219
        %p567 = pneg %p243
        %p568 = pneg %p240
        %p569 = pneg %p264
        %p570 = pneg %p261
        %p571 = pneg %p285
        %p572 = pneg %p282
        %p573 = pneg %p306
        %p574 = pneg %p303
        %p575 = pneg %p327
        %p576 = pneg %p324
        %p577 = pneg %p348
        %p578 = pneg %p345
        %p579 = pneg %p369
        %p580 = pneg %p366
        %p581 = pneg %p390
        %p582 = pneg %p387
        %p583 = pneg %p411
        %p584 = pneg %p408
        %p585 = pneg %p432
        %p586 = pneg %p429
        %p587 = pneg %p458
        %p588 = pneg %p455
        %s589 = sand.u32 %s445, 1
        %s590 = scalar_lea.sflag [#allocation3], %s589
        %s591 = sand.u32 %s445, 1
        %s592 = scalar_lea.vmem [#allocation2], %s591
        %p593 = scmp.lt.s32.totalorder %s33, 1
        %s594 = scalar_select %p593, %s33, 1
        %s595 = smul.addr %s594, 8
        %s596 = scalar_lea.vmem %s0, %s595
        %v598 = vld [vmem:[%s596] sm:$0xff]
        %v599 = vld [vmem:[%s1] sm:$0x1]
        %v600 = vld [vmem:[%s2] sm:$0x1]
        %601 = vadd.xlane.f32.xlu0 %v598
        %v602 = vpop.xlane.xlu0 %601
        %v603 = vrcp.pop 128.0
        %v604 = vmul.f32 %v602, %v603
        %v605 = vsub.f32 %v598, %v604
        %v606 = vmul.f32 %v605, %v605
        %607 = vadd.xlane.f32.xlu0 %v606
        %v608 = vpop.xlane.xlu0 %607
        %v609 = vmul.f32 %v608, %v603
        %v610 = vadd.f32 %v609, 1e-12
        %v611 = vrsqrt.pop %v610
        %v612 = vmul.f32 %v605, %v611
        %v614 = vlaneseq
        %v615 = vshrl.u32 %v614, 7
        %v616 = vsub.s32 0, %v615
        %v617 = vrot.slane %v599, %v616
        %v619 = vmul.f32 %v612, %v617
        %v621 = vlaneseq
        %v622 = vshrl.u32 %v621, 7
        %v623 = vsub.s32 0, %v622
        %v624 = vrot.slane %v600, %v623
        %v626 = vadd.f32 %v619, %v624
        %v627 = vpack.c.bf16 %v626, %v626
        %v628 = vld [vmem:[%s3] sm:$0xf]
        %v629 = vld [vmem:[%s3 + $0x4] sm:$0xf]
        %v630 = vld [vmem:[%s3 + $0x8] sm:$0xf]
        %v631 = vld [vmem:[%s3 + $0xc] sm:$0xf]
        %v632 = vld [vmem:[%s3 + $0x10] sm:$0xf]
        %v633 = vld [vmem:[%s3 + $0x14] sm:$0xf]
        %v634 = vld [vmem:[%s3 + $0x18] sm:$0xf]
        %v635 = vld [vmem:[%s3 + $0x1c] sm:$0xf]
        %v636 = vld [vmem:[%s3 + $0x20] sm:$0xf]
        %v637 = vld [vmem:[%s3 + $0x24] sm:$0xf]
        %v638 = vld [vmem:[%s3 + $0x28] sm:$0xf]
        %v639 = vld [vmem:[%s3 + $0x2c] sm:$0xf]
        %v640 = vld [vmem:[%s3 + $0x30] sm:$0xf]
        %v641 = vld [vmem:[%s3 + $0x34] sm:$0xf]
        %v642 = vld [vmem:[%s3 + $0x38] sm:$0xf]
        %v643 = vld [vmem:[%s3 + $0x3c] sm:$0xf]
        %v644 = vld [vmem:[%s3 + $0x40] sm:$0xf]
        %v645 = vld [vmem:[%s3 + $0x44] sm:$0xf]
        %v646 = vld [vmem:[%s3 + $0x48] sm:$0xf]
        %v647 = vld [vmem:[%s3 + $0x4c] sm:$0xf]
        %v648 = vld [vmem:[%s3 + $0x50] sm:$0xf]
        %v649 = vld [vmem:[%s3 + $0x54] sm:$0xf]
        %v650 = vld [vmem:[%s3 + $0x58] sm:$0xf]
        %v651 = vld [vmem:[%s3 + $0x5c] sm:$0xf]
        %v652 = vld [vmem:[%s3 + $0x60] sm:$0xf]
        %v653 = vld [vmem:[%s3 + $0x64] sm:$0xf]
        %v654 = vld [vmem:[%s3 + $0x68] sm:$0xf]
        %v655 = vld [vmem:[%s3 + $0x6c] sm:$0xf]
        %v656 = vld [vmem:[%s3 + $0x70] sm:$0xf]
        %v657 = vld [vmem:[%s3 + $0x74] sm:$0xf]
        %v658 = vld [vmem:[%s3 + $0x78] sm:$0xf]
        %v659 = vld [vmem:[%s3 + $0x7c] sm:$0xf]
        %v660 = vld [vmem:[%s4] sm:$0x1]
        %v661 = vld [vmem:[%s4 + $0x1] sm:$0x1]
        %v664 = vlaneseq
        %v665 = vshrl.u32 %v664, 7
        %v666 = vsub.s32 0, %v665
        %v667 = vrot.slane %v660, %v666
        %v668 = vlaneseq
        %v669 = vshrl.u32 %v668, 7
        %v670 = vsub.s32 0, %v669
        %v671 = vrot.slane %v661, %v670
        %v690 = vunpack.c.l.b16 %v628
        %v691 = vunpack.c.l.b16 %v629
        %v692 = vunpack.c.l.b16 %v630
        %v693 = vunpack.c.l.b16 %v631
        %v694 = vunpack.c.l.b16 %v632
        %v695 = vunpack.c.l.b16 %v633
        %v696 = vunpack.c.l.b16 %v634
        %v697 = vunpack.c.l.b16 %v635
        %v698 = vunpack.c.l.b16 %v636
        %v699 = vunpack.c.l.b16 %v637
        %v700 = vunpack.c.l.b16 %v638
        %v701 = vunpack.c.l.b16 %v639
        %v702 = vunpack.c.l.b16 %v640
        %v703 = vunpack.c.l.b16 %v641
        %v704 = vunpack.c.l.b16 %v642
        %v705 = vunpack.c.l.b16 %v643
        %v706 = vpack.c.b16 %v691, %v690
        %v707 = vpack.c.b16 %v693, %v692
        %v708 = vpack.c.b16 %v695, %v694
        %v709 = vpack.c.b16 %v697, %v696
        %v710 = vpack.c.b16 %v699, %v698
        %v711 = vpack.c.b16 %v701, %v700
        %v712 = vpack.c.b16 %v703, %v702
        %v713 = vpack.c.b16 %v705, %v704
        %722 = vmatprep.subr.bf16.mxu0 0
        %723 = vmatpush1.bf16.msra.mxu0 %v713
        %724 = vmatprep.subr.bf16.mxu0 0
        %725 = vmatpush1.bf16.msra.mxu0 %v712
        %726 = vmatprep.subr.bf16.mxu0 0
        %727 = vmatpush1.bf16.msra.mxu0 %v711
        %728 = vmatprep.subr.bf16.mxu0 0
        %729 = vmatpush1.bf16.msra.mxu0 %v710
        %730 = vmatprep.subr.bf16.mxu0 0
        %731 = vmatpush1.bf16.msra.mxu0 %v709
        %732 = vmatprep.subr.bf16.mxu0 0
        %733 = vmatpush1.bf16.msra.mxu0 %v708
        %734 = vmatprep.subr.bf16.mxu0 0
        %735 = vmatpush1.bf16.msra.mxu0 %v707
        %736 = vmatprep.subr.bf16.mxu0 0
        %737 = vmatpush1.bf16.msra.mxu0 %v706
        %738 = vmatprep.subr.bf16.mxu0 0
        %739 = vmatpush2.bf16.msra.mxu0 0
        %740 = vmatprep.subr.bf16.mxu0 0
        %741 = vmatpush2.bf16.msra.mxu0 0
        %742 = vmatprep.subr.bf16.mxu0 0
        %743 = vmatpush2.bf16.msra.mxu0 0
        %744 = vmatprep.subr.bf16.mxu0 0
        %745 = vmatpush2.bf16.msra.mxu0 0
        %746 = vmatprep.subr.bf16.mxu0 0
        %747 = vmatpush2.bf16.msra.mxu0 0
        %748 = vmatprep.subr.bf16.mxu0 0
        %749 = vmatpush2.bf16.msra.mxu0 0
        %750 = vmatprep.subr.bf16.mxu0 0
        %751 = vmatpush2.bf16.msra.mxu0 0
        %752 = vmatprep.subr.bf16.mxu0 0
        %753 = vmatpush2.bf16.msra.mxu0 0
        %754 = vmatprep.mubr.bf16.mxu0 0
        %755 = vmatmul.mubr.bf16.gmra.mxu0 %v627
        %v756 = vpop.f32.mrf.mxu0
        %v757 = vadd.f32 %v667, %v756
        %v758 = vpop.f32.mrf.mxu0
        %v759 = vpop.f32.mrf.mxu0
        %v760 = vpop.f32.mrf.mxu0
        %761 = vdwg.mxu0
        %v778 = vunpack.c.l.b16 %v644
        %v779 = vunpack.c.l.b16 %v645
        %v780 = vunpack.c.l.b16 %v646
        %v781 = vunpack.c.l.b16 %v647
        %v782 = vunpack.c.l.b16 %v648
        %v783 = vunpack.c.l.b16 %v649
        %v784 = vunpack.c.l.b16 %v650
        %v785 = vunpack.c.l.b16 %v651
        %v786 = vunpack.c.l.b16 %v652
        %v787 = vunpack.c.l.b16 %v653
        %v788 = vunpack.c.l.b16 %v654
        %v789 = vunpack.c.l.b16 %v655
        %v790 = vunpack.c.l.b16 %v656
        %v791 = vunpack.c.l.b16 %v657
        %v792 = vunpack.c.l.b16 %v658
        %v793 = vunpack.c.l.b16 %v659
        %v794 = vpack.c.b16 %v779, %v778
        %v795 = vpack.c.b16 %v781, %v780
        %v796 = vpack.c.b16 %v783, %v782
        %v797 = vpack.c.b16 %v785, %v784
        %v798 = vpack.c.b16 %v787, %v786
        %v799 = vpack.c.b16 %v789, %v788
        %v800 = vpack.c.b16 %v791, %v790
        %v801 = vpack.c.b16 %v793, %v792
        %810 = vmatprep.subr.bf16.mxu0 0
        %811 = vmatpush1.bf16.msra.mxu0 %v801
        %812 = vmatprep.subr.bf16.mxu0 0
        %813 = vmatpush1.bf16.msra.mxu0 %v800
        %814 = vmatprep.subr.bf16.mxu0 0
        %815 = vmatpush1.bf16.msra.mxu0 %v799
        %816 = vmatprep.subr.bf16.mxu0 0
        %817 = vmatpush1.bf16.msra.mxu0 %v798
        %818 = vmatprep.subr.bf16.mxu0 0
        %819 = vmatpush1.bf16.msra.mxu0 %v797
        %820 = vmatprep.subr.bf16.mxu0 0
        %821 = vmatpush1.bf16.msra.mxu0 %v796
        %822 = vmatprep.subr.bf16.mxu0 0
        %823 = vmatpush1.bf16.msra.mxu0 %v795
        %824 = vmatprep.subr.bf16.mxu0 0
        %825 = vmatpush1.bf16.msra.mxu0 %v794
        %826 = vmatprep.subr.bf16.mxu0 0
        %827 = vmatpush2.bf16.msra.mxu0 0
        %828 = vmatprep.subr.bf16.mxu0 0
        %829 = vmatpush2.bf16.msra.mxu0 0
        %830 = vmatprep.subr.bf16.mxu0 0
        %831 = vmatpush2.bf16.msra.mxu0 0
        %832 = vmatprep.subr.bf16.mxu0 0
        %833 = vmatpush2.bf16.msra.mxu0 0
        %834 = vmatprep.subr.bf16.mxu0 0
        %835 = vmatpush2.bf16.msra.mxu0 0
        %836 = vmatprep.subr.bf16.mxu0 0
        %837 = vmatpush2.bf16.msra.mxu0 0
        %838 = vmatprep.subr.bf16.mxu0 0
        %839 = vmatpush2.bf16.msra.mxu0 0
        %840 = vmatprep.subr.bf16.mxu0 0
        %841 = vmatpush2.bf16.msra.mxu0 0
        %842 = vmatprep.mubr.bf16.mxu0 0
        %843 = vmatmul.mubr.bf16.gmra.mxu0 %v627
        %v844 = vpop.f32.mrf.mxu0
        %v845 = vadd.f32 %v671, %v844
        %v846 = vpop.f32.mrf.mxu0
        %v847 = vpop.f32.mrf.mxu0
        %v848 = vpop.f32.mrf.mxu0
        %849 = vdwg.mxu0
        %v850 = vld [vmem:[%s5] sm:$0xf]
        %v851 = vld [vmem:[%s5 + $0x4] sm:$0xf]
        %v852 = vld [vmem:[%s5 + $0x8] sm:$0xf]
        %v853 = vld [vmem:[%s5 + $0xc] sm:$0xf]
        %v854 = vld [vmem:[%s5 + $0x10] sm:$0xf]
        %v855 = vld [vmem:[%s5 + $0x14] sm:$0xf]
        %v856 = vld [vmem:[%s5 + $0x18] sm:$0xf]
        %v857 = vld [vmem:[%s5 + $0x1c] sm:$0xf]
        %v858 = vld [vmem:[%s5 + $0x20] sm:$0xf]
        %v859 = vld [vmem:[%s5 + $0x24] sm:$0xf]
        %v860 = vld [vmem:[%s5 + $0x28] sm:$0xf]
        %v861 = vld [vmem:[%s5 + $0x2c] sm:$0xf]
        %v862 = vld [vmem:[%s5 + $0x30] sm:$0xf]
        %v863 = vld [vmem:[%s5 + $0x34] sm:$0xf]
        %v864 = vld [vmem:[%s5 + $0x38] sm:$0xf]
        %v865 = vld [vmem:[%s5 + $0x3c] sm:$0xf]
        %v866 = vld [vmem:[%s5 + $0x40] sm:$0xf]
        %v867 = vld [vmem:[%s5 + $0x44] sm:$0xf]
        %v868 = vld [vmem:[%s5 + $0x48] sm:$0xf]
        %v869 = vld [vmem:[%s5 + $0x4c] sm:$0xf]
        %v870 = vld [vmem:[%s5 + $0x50] sm:$0xf]
        %v871 = vld [vmem:[%s5 + $0x54] sm:$0xf]
        %v872 = vld [vmem:[%s5 + $0x58] sm:$0xf]
        %v873 = vld [vmem:[%s5 + $0x5c] sm:$0xf]
        %v874 = vld [vmem:[%s5 + $0x60] sm:$0xf]
        %v875 = vld [vmem:[%s5 + $0x64] sm:$0xf]
        %v876 = vld [vmem:[%s5 + $0x68] sm:$0xf]
        %v877 = vld [vmem:[%s5 + $0x6c] sm:$0xf]
        %v878 = vld [vmem:[%s5 + $0x70] sm:$0xf]
        %v879 = vld [vmem:[%s5 + $0x74] sm:$0xf]
        %v880 = vld [vmem:[%s5 + $0x78] sm:$0xf]
        %v881 = vld [vmem:[%s5 + $0x7c] sm:$0xf]
        %v882 = vld [vmem:[%s6] sm:$0x1]
        %v883 = vld [vmem:[%s6 + $0x1] sm:$0x1]
        %v886 = vlaneseq
        %v887 = vshrl.u32 %v886, 7
        %v888 = vsub.s32 0, %v887
        %v889 = vrot.slane %v882, %v888
        %v890 = vlaneseq
        %v891 = vshrl.u32 %v890, 7
        %v892 = vsub.s32 0, %v891
        %v893 = vrot.slane %v883, %v892
        %v912 = vunpack.c.l.b16 %v850
        %v913 = vunpack.c.l.b16 %v851
        %v914 = vunpack.c.l.b16 %v852
        %v915 = vunpack.c.l.b16 %v853
        %v916 = vunpack.c.l.b16 %v854
        %v917 = vunpack.c.l.b16 %v855
        %v918 = vunpack.c.l.b16 %v856
        %v919 = vunpack.c.l.b16 %v857
        %v920 = vunpack.c.l.b16 %v858
        %v921 = vunpack.c.l.b16 %v859
        %v922 = vunpack.c.l.b16 %v860
        %v923 = vunpack.c.l.b16 %v861
        %v924 = vunpack.c.l.b16 %v862
        %v925 = vunpack.c.l.b16 %v863
        %v926 = vunpack.c.l.b16 %v864
        %v927 = vunpack.c.l.b16 %v865
        %v928 = vpack.c.b16 %v913, %v912
        %v929 = vpack.c.b16 %v915, %v914
        %v930 = vpack.c.b16 %v917, %v916
        %v931 = vpack.c.b16 %v919, %v918
        %v932 = vpack.c.b16 %v921, %v920
        %v933 = vpack.c.b16 %v923, %v922
        %v934 = vpack.c.b16 %v925, %v924
        %v935 = vpack.c.b16 %v927, %v926
        %944 = vmatprep.subr.bf16.mxu0 0
        %945 = vmatpush1.bf16.msra.mxu0 %v935
        %946 = vmatprep.subr.bf16.mxu0 0
        %947 = vmatpush1.bf16.msra.mxu0 %v934
        %948 = vmatprep.subr.bf16.mxu0 0
        %949 = vmatpush1.bf16.msra.mxu0 %v933
        %950 = vmatprep.subr.bf16.mxu0 0
        %951 = vmatpush1.bf16.msra.mxu0 %v932
        %952 = vmatprep.subr.bf16.mxu0 0
        %953 = vmatpush1.bf16.msra.mxu0 %v931
        %954 = vmatprep.subr.bf16.mxu0 0
        %955 = vmatpush1.bf16.msra.mxu0 %v930
        %956 = vmatprep.subr.bf16.mxu0 0
        %957 = vmatpush1.bf16.msra.mxu0 %v929
        %958 = vmatprep.subr.bf16.mxu0 0
        %959 = vmatpush1.bf16.msra.mxu0 %v928
        %960 = vmatprep.subr.bf16.mxu0 0
        %961 = vmatpush2.bf16.msra.mxu0 0
        %962 = vmatprep.subr.bf16.mxu0 0
        %963 = vmatpush2.bf16.msra.mxu0 0
        %964 = vmatprep.subr.bf16.mxu0 0
        %965 = vmatpush2.bf16.msra.mxu0 0
        %966 = vmatprep.subr.bf16.mxu0 0
        %967 = vmatpush2.bf16.msra.mxu0 0
        %968 = vmatprep.subr.bf16.mxu0 0
        %969 = vmatpush2.bf16.msra.mxu0 0
        %970 = vmatprep.subr.bf16.mxu0 0
        %971 = vmatpush2.bf16.msra.mxu0 0
        %972 = vmatprep.subr.bf16.mxu0 0
        %973 = vmatpush2.bf16.msra.mxu0 0
        %974 = vmatprep.subr.bf16.mxu0 0
        %975 = vmatpush2.bf16.msra.mxu0 0
        %976 = vmatprep.mubr.bf16.mxu0 0
        %977 = vmatmul.mubr.bf16.gmra.mxu0 %v627
        %v978 = vpop.f32.mrf.mxu0
        %v979 = vadd.f32 %v889, %v978
        %v980 = vpop.f32.mrf.mxu0
        %v981 = vpop.f32.mrf.mxu0
        %v982 = vpop.f32.mrf.mxu0
        %983 = vdwg.mxu0
        %v1000 = vunpack.c.l.b16 %v866
        %v1001 = vunpack.c.l.b16 %v867
        %v1002 = vunpack.c.l.b16 %v868
        %v1003 = vunpack.c.l.b16 %v869
        %v1004 = vunpack.c.l.b16 %v870
        %v1005 = vunpack.c.l.b16 %v871
        %v1006 = vunpack.c.l.b16 %v872
        %v1007 = vunpack.c.l.b16 %v873
        %v1008 = vunpack.c.l.b16 %v874
        %v1009 = vunpack.c.l.b16 %v875
        %v1010 = vunpack.c.l.b16 %v876
        %v1011 = vunpack.c.l.b16 %v877
        %v1012 = vunpack.c.l.b16 %v878
        %v1013 = vunpack.c.l.b16 %v879
        %v1014 = vunpack.c.l.b16 %v880
        %v1015 = vunpack.c.l.b16 %v881
        %v1016 = vpack.c.b16 %v1001, %v1000
        %v1017 = vpack.c.b16 %v1003, %v1002
        %v1018 = vpack.c.b16 %v1005, %v1004
        %v1019 = vpack.c.b16 %v1007, %v1006
        %v1020 = vpack.c.b16 %v1009, %v1008
        %v1021 = vpack.c.b16 %v1011, %v1010
        %v1022 = vpack.c.b16 %v1013, %v1012
        %v1023 = vpack.c.b16 %v1015, %v1014
        %1032 = vmatprep.subr.bf16.mxu0 0
        %1033 = vmatpush1.bf16.msra.mxu0 %v1023
        %1034 = vmatprep.subr.bf16.mxu0 0
        %1035 = vmatpush1.bf16.msra.mxu0 %v1022
        %1036 = vmatprep.subr.bf16.mxu0 0
        %1037 = vmatpush1.bf16.msra.mxu0 %v1021
        %1038 = vmatprep.subr.bf16.mxu0 0
        %1039 = vmatpush1.bf16.msra.mxu0 %v1020
        %1040 = vmatprep.subr.bf16.mxu0 0
        %1041 = vmatpush1.bf16.msra.mxu0 %v1019
        %1042 = vmatprep.subr.bf16.mxu0 0
        %1043 = vmatpush1.bf16.msra.mxu0 %v1018
        %1044 = vmatprep.subr.bf16.mxu0 0
        %1045 = vmatpush1.bf16.msra.mxu0 %v1017
        %1046 = vmatprep.subr.bf16.mxu0 0
        %1047 = vmatpush1.bf16.msra.mxu0 %v1016
        %1048 = vmatprep.subr.bf16.mxu0 0
        %1049 = vmatpush2.bf16.msra.mxu0 0
        %1050 = vmatprep.subr.bf16.mxu0 0
        %1051 = vmatpush2.bf16.msra.mxu0 0
        %1052 = vmatprep.subr.bf16.mxu0 0
        %1053 = vmatpush2.bf16.msra.mxu0 0
        %1054 = vmatprep.subr.bf16.mxu0 0
        %1055 = vmatpush2.bf16.msra.mxu0 0
        %1056 = vmatprep.subr.bf16.mxu0 0
        %1057 = vmatpush2.bf16.msra.mxu0 0
        %1058 = vmatprep.subr.bf16.mxu0 0
        %1059 = vmatpush2.bf16.msra.mxu0 0
        %1060 = vmatprep.subr.bf16.mxu0 0
        %1061 = vmatpush2.bf16.msra.mxu0 0
        %1062 = vmatprep.subr.bf16.mxu0 0
        %1063 = vmatpush2.bf16.msra.mxu0 0
        %1064 = vmatprep.mubr.bf16.mxu0 0
        %1065 = vmatmul.mubr.bf16.gmra.mxu0 %v627
        %v1066 = vpop.f32.mrf.mxu0
        %v1067 = vadd.f32 %v893, %v1066
        %v1068 = vpop.f32.mrf.mxu0
        %v1069 = vpop.f32.mrf.mxu0
        %v1070 = vpop.f32.mrf.mxu0
        %1071 = vdwg.mxu0
        %v1072 = vld [vmem:[%s7] sm:$0xf]
        %v1073 = vld [vmem:[%s7 + $0x4] sm:$0xf]
        %v1074 = vld [vmem:[%s7 + $0x8] sm:$0xf]
        %v1075 = vld [vmem:[%s7 + $0xc] sm:$0xf]
        %v1076 = vld [vmem:[%s7 + $0x10] sm:$0xf]
        %v1077 = vld [vmem:[%s7 + $0x14] sm:$0xf]
        %v1078 = vld [vmem:[%s7 + $0x18] sm:$0xf]
        %v1079 = vld [vmem:[%s7 + $0x1c] sm:$0xf]
        %v1080 = vld [vmem:[%s7 + $0x20] sm:$0xf]
        %v1081 = vld [vmem:[%s7 + $0x24] sm:$0xf]
        %v1082 = vld [vmem:[%s7 + $0x28] sm:$0xf]
        %v1083 = vld [vmem:[%s7 + $0x2c] sm:$0xf]
        %v1084 = vld [vmem:[%s7 + $0x30] sm:$0xf]
        %v1085 = vld [vmem:[%s7 + $0x34] sm:$0xf]
        %v1086 = vld [vmem:[%s7 + $0x38] sm:$0xf]
        %v1087 = vld [vmem:[%s7 + $0x3c] sm:$0xf]
        %v1088 = vld [vmem:[%s7 + $0x40] sm:$0xf]
        %v1089 = vld [vmem:[%s7 + $0x44] sm:$0xf]
        %v1090 = vld [vmem:[%s7 + $0x48] sm:$0xf]
        %v1091 = vld [vmem:[%s7 + $0x4c] sm:$0xf]
        %v1092 = vld [vmem:[%s7 + $0x50] sm:$0xf]
        %v1093 = vld [vmem:[%s7 + $0x54] sm:$0xf]
        %v1094 = vld [vmem:[%s7 + $0x58] sm:$0xf]
        %v1095 = vld [vmem:[%s7 + $0x5c] sm:$0xf]
        %v1096 = vld [vmem:[%s7 + $0x60] sm:$0xf]
        %v1097 = vld [vmem:[%s7 + $0x64] sm:$0xf]
        %v1098 = vld [vmem:[%s7 + $0x68] sm:$0xf]
        %v1099 = vld [vmem:[%s7 + $0x6c] sm:$0xf]
        %v1100 = vld [vmem:[%s7 + $0x70] sm:$0xf]
        %v1101 = vld [vmem:[%s7 + $0x74] sm:$0xf]
        %v1102 = vld [vmem:[%s7 + $0x78] sm:$0xf]
        %v1103 = vld [vmem:[%s7 + $0x7c] sm:$0xf]
        %v1104 = vld [vmem:[%s8] sm:$0x1]
        %v1105 = vld [vmem:[%s8 + $0x1] sm:$0x1]
        %v1108 = vlaneseq
        %v1109 = vshrl.u32 %v1108, 7
        %v1110 = vsub.s32 0, %v1109
        %v1111 = vrot.slane %v1104, %v1110
        %v1112 = vlaneseq
        %v1113 = vshrl.u32 %v1112, 7
        %v1114 = vsub.s32 0, %v1113
        %v1115 = vrot.slane %v1105, %v1114
        %v1134 = vunpack.c.l.b16 %v1072
        %v1135 = vunpack.c.l.b16 %v1073
        %v1136 = vunpack.c.l.b16 %v1074
        %v1137 = vunpack.c.l.b16 %v1075
        %v1138 = vunpack.c.l.b16 %v1076
        %v1139 = vunpack.c.l.b16 %v1077
        %v1140 = vunpack.c.l.b16 %v1078
        %v1141 = vunpack.c.l.b16 %v1079
        %v1142 = vunpack.c.l.b16 %v1080
        %v1143 = vunpack.c.l.b16 %v1081
        %v1144 = vunpack.c.l.b16 %v1082
        %v1145 = vunpack.c.l.b16 %v1083
        %v1146 = vunpack.c.l.b16 %v1084
        %v1147 = vunpack.c.l.b16 %v1085
        %v1148 = vunpack.c.l.b16 %v1086
        %v1149 = vunpack.c.l.b16 %v1087
        %v1150 = vpack.c.b16 %v1135, %v1134
        %v1151 = vpack.c.b16 %v1137, %v1136
        %v1152 = vpack.c.b16 %v1139, %v1138
        %v1153 = vpack.c.b16 %v1141, %v1140
        %v1154 = vpack.c.b16 %v1143, %v1142
        %v1155 = vpack.c.b16 %v1145, %v1144
        %v1156 = vpack.c.b16 %v1147, %v1146
        %v1157 = vpack.c.b16 %v1149, %v1148
        %1166 = vmatprep.subr.bf16.mxu0 0
        %1167 = vmatpush1.bf16.msra.mxu0 %v1157
        %1168 = vmatprep.subr.bf16.mxu0 0
        %1169 = vmatpush1.bf16.msra.mxu0 %v1156
        %1170 = vmatprep.subr.bf16.mxu0 0
        %1171 = vmatpush1.bf16.msra.mxu0 %v1155
        %1172 = vmatprep.subr.bf16.mxu0 0
        %1173 = vmatpush1.bf16.msra.mxu0 %v1154
        %1174 = vmatprep.subr.bf16.mxu0 0
        %1175 = vmatpush1.bf16.msra.mxu0 %v1153
        %1176 = vmatprep.subr.bf16.mxu0 0
        %1177 = vmatpush1.bf16.msra.mxu0 %v1152
        %1178 = vmatprep.subr.bf16.mxu0 0
        %1179 = vmatpush1.bf16.msra.mxu0 %v1151
        %1180 = vmatprep.subr.bf16.mxu0 0
        %1181 = vmatpush1.bf16.msra.mxu0 %v1150
        %1182 = vmatprep.subr.bf16.mxu0 0
        %1183 = vmatpush2.bf16.msra.mxu0 0
        %1184 = vmatprep.subr.bf16.mxu0 0
        %1185 = vmatpush2.bf16.msra.mxu0 0
        %1186 = vmatprep.subr.bf16.mxu0 0
        %1187 = vmatpush2.bf16.msra.mxu0 0
        %1188 = vmatprep.subr.bf16.mxu0 0
        %1189 = vmatpush2.bf16.msra.mxu0 0
        %1190 = vmatprep.subr.bf16.mxu0 0
        %1191 = vmatpush2.bf16.msra.mxu0 0
        %1192 = vmatprep.subr.bf16.mxu0 0
        %1193 = vmatpush2.bf16.msra.mxu0 0
        %1194 = vmatprep.subr.bf16.mxu0 0
        %1195 = vmatpush2.bf16.msra.mxu0 0
        %1196 = vmatprep.subr.bf16.mxu0 0
        %1197 = vmatpush2.bf16.msra.mxu0 0
        %1198 = vmatprep.mubr.bf16.mxu0 0
        %1199 = vmatmul.mubr.bf16.gmra.mxu0 %v627
        %v1200 = vpop.f32.mrf.mxu0
        %v1201 = vadd.f32 %v1111, %v1200
        %v1202 = vpop.f32.mrf.mxu0
        %v1203 = vpop.f32.mrf.mxu0
        %v1204 = vpop.f32.mrf.mxu0
        %1205 = vdwg.mxu0
        %v1222 = vunpack.c.l.b16 %v1088
        %v1223 = vunpack.c.l.b16 %v1089
        %v1224 = vunpack.c.l.b16 %v1090
        %v1225 = vunpack.c.l.b16 %v1091
        %v1226 = vunpack.c.l.b16 %v1092
        %v1227 = vunpack.c.l.b16 %v1093
        %v1228 = vunpack.c.l.b16 %v1094
        %v1229 = vunpack.c.l.b16 %v1095
        %v1230 = vunpack.c.l.b16 %v1096
        %v1231 = vunpack.c.l.b16 %v1097
        %v1232 = vunpack.c.l.b16 %v1098
        %v1233 = vunpack.c.l.b16 %v1099
        %v1234 = vunpack.c.l.b16 %v1100
        %v1235 = vunpack.c.l.b16 %v1101
        %v1236 = vunpack.c.l.b16 %v1102
        %v1237 = vunpack.c.l.b16 %v1103
        %v1238 = vpack.c.b16 %v1223, %v1222
        %v1239 = vpack.c.b16 %v1225, %v1224
        %v1240 = vpack.c.b16 %v1227, %v1226
        %v1241 = vpack.c.b16 %v1229, %v1228
        %v1242 = vpack.c.b16 %v1231, %v1230
        %v1243 = vpack.c.b16 %v1233, %v1232
        %v1244 = vpack.c.b16 %v1235, %v1234
        %v1245 = vpack.c.b16 %v1237, %v1236
        %1254 = vmatprep.subr.bf16.mxu0 0
        %1255 = vmatpush1.bf16.msra.mxu0 %v1245
        %1256 = vmatprep.subr.bf16.mxu0 0
        %1257 = vmatpush1.bf16.msra.mxu0 %v1244
        %1258 = vmatprep.subr.bf16.mxu0 0
        %1259 = vmatpush1.bf16.msra.mxu0 %v1243
        %1260 = vmatprep.subr.bf16.mxu0 0
        %1261 = vmatpush1.bf16.msra.mxu0 %v1242
        %1262 = vmatprep.subr.bf16.mxu0 0
        %1263 = vmatpush1.bf16.msra.mxu0 %v1241
        %1264 = vmatprep.subr.bf16.mxu0 0
        %1265 = vmatpush1.bf16.msra.mxu0 %v1240
        %1266 = vmatprep.subr.bf16.mxu0 0
        %1267 = vmatpush1.bf16.msra.mxu0 %v1239
        %1268 = vmatprep.subr.bf16.mxu0 0
        %1269 = vmatpush1.bf16.msra.mxu0 %v1238
        %1270 = vmatprep.subr.bf16.mxu0 0
        %1271 = vmatpush2.bf16.msra.mxu0 0
        %1272 = vmatprep.subr.bf16.mxu0 0
        %1273 = vmatpush2.bf16.msra.mxu0 0
        %1274 = vmatprep.subr.bf16.mxu0 0
        %1275 = vmatpush2.bf16.msra.mxu0 0
        %1276 = vmatprep.subr.bf16.mxu0 0
        %1277 = vmatpush2.bf16.msra.mxu0 0
        %1278 = vmatprep.subr.bf16.mxu0 0
        %1279 = vmatpush2.bf16.msra.mxu0 0
        %1280 = vmatprep.subr.bf16.mxu0 0
        %1281 = vmatpush2.bf16.msra.mxu0 0
        %1282 = vmatprep.subr.bf16.mxu0 0
        %1283 = vmatpush2.bf16.msra.mxu0 0
        %1284 = vmatprep.subr.bf16.mxu0 0
        %1285 = vmatpush2.bf16.msra.mxu0 0
        %1286 = vmatprep.mubr.bf16.mxu0 0
        %1287 = vmatmul.mubr.bf16.gmra.mxu0 %v627
        %v1288 = vpop.f32.mrf.mxu0
        %v1289 = vadd.f32 %v1115, %v1288
        %v1290 = vpop.f32.mrf.mxu0
        %v1291 = vpop.f32.mrf.mxu0
        %v1292 = vpop.f32.mrf.mxu0
        %1293 = vdwg.mxu0
        %v1294 = vpack.c.bf16 %v757, %v757
        %v1295 = vpack.c.bf16 %v845, %v845
        %v1296 = vpack.c.bf16 %v979, %v979
        %v1297 = vpack.c.bf16 %v1067, %v1067
        %vm1298 = vcmask 523264
        %v1300 = vsel %vm1298, %v1294, 0
        %v1303 = vsel %vm1298, %v1296, 0
        %1305 = vmatprep.subr.bf16.mxu0 0
        %1306 = vmatpush1.bf16.xpose.msra.mxu0 0
        %1307 = vmatprep.subr.bf16.mxu0 0
        %1308 = vmatpush1.bf16.xpose.msra.mxu0 0
        %1309 = vmatprep.subr.bf16.mxu0 0
        %1310 = vmatpush1.bf16.xpose.msra.mxu0 0
        %1311 = vmatprep.subr.bf16.mxu0 0
        %1312 = vmatpush1.bf16.xpose.msra.mxu0 0
        %1313 = vmatprep.subr.bf16.mxu0 0
        %1314 = vmatpush1.bf16.xpose.msra.mxu0 0
        %1315 = vmatprep.subr.bf16.mxu0 0
        %1316 = vmatpush1.bf16.xpose.msra.mxu0 0
        %1317 = vmatprep.subr.bf16.mxu0 0
        %1318 = vmatpush1.bf16.xpose.msra.mxu0 0
        %1319 = vmatprep.subr.bf16.mxu0 0
        %1320 = vmatpush1.bf16.xpose.msra.mxu0 %v1303
        %1321 = vmatprep.subr.bf16.mxu0 0
        %1322 = vmatpush2.bf16.xpose.msra.mxu0 0
        %1323 = vmatprep.subr.bf16.mxu0 0
        %1324 = vmatpush2.bf16.xpose.msra.mxu0 0
        %1325 = vmatprep.subr.bf16.mxu0 0
        %1326 = vmatpush2.bf16.xpose.msra.mxu0 0
        %1327 = vmatprep.subr.bf16.mxu0 0
        %1328 = vmatpush2.bf16.xpose.msra.mxu0 0
        %1329 = vmatprep.subr.bf16.mxu0 0
        %1330 = vmatpush2.bf16.xpose.msra.mxu0 0
        %1331 = vmatprep.subr.bf16.mxu0 0
        %1332 = vmatpush2.bf16.xpose.msra.mxu0 0
        %1333 = vmatprep.subr.bf16.mxu0 0
        %1334 = vmatpush2.bf16.xpose.msra.mxu0 0
        %1335 = vmatprep.subr.bf16.mxu0 0
        %1336 = vmatpush2.bf16.xpose.msra.mxu0 0
        %1337 = vmatprep.mubr.bf16.mxu0 0
        %1338 = vmatmul.mubr.bf16.gmra.mxu0 %v1300
        %v1339 = vpop.f32.mrf.mxu0
        %v1340 = vadd.f32 0.0, %v1339
        %v1341 = vpop.f32.mrf.mxu0
        %v1342 = vpop.f32.mrf.mxu0
        %v1343 = vpop.f32.mrf.mxu0
        %1344 = vdwg.mxu0
        %v1346 = vsel %vm1298, %v1295, 0
        %v1349 = vsel %vm1298, %v1297, 0
        %1351 = vmatprep.subr.bf16.mxu0 0
        %1352 = vmatpush1.bf16.xpose.msra.mxu0 0
        %1353 = vmatprep.subr.bf16.mxu0 0
        %1354 = vmatpush1.bf16.xpose.msra.mxu0 0
        %1355 = vmatprep.subr.bf16.mxu0 0
        %1356 = vmatpush1.bf16.xpose.msra.mxu0 0
        %1357 = vmatprep.subr.bf16.mxu0 0
        %1358 = vmatpush1.bf16.xpose.msra.mxu0 0
        %1359 = vmatprep.subr.bf16.mxu0 0
        %1360 = vmatpush1.bf16.xpose.msra.mxu0 0
        %1361 = vmatprep.subr.bf16.mxu0 0
        %1362 = vmatpush1.bf16.xpose.msra.mxu0 0
        %1363 = vmatprep.subr.bf16.mxu0 0
        %1364 = vmatpush1.bf16.xpose.msra.mxu0 0
        %1365 = vmatprep.subr.bf16.mxu0 0
        %1366 = vmatpush1.bf16.xpose.msra.mxu0 %v1349
        %1367 = vmatprep.subr.bf16.mxu0 0
        %1368 = vmatpush2.bf16.xpose.msra.mxu0 0
        %1369 = vmatprep.subr.bf16.mxu0 0
        %1370 = vmatpush2.bf16.xpose.msra.mxu0 0
        %1371 = vmatprep.subr.bf16.mxu0 0
        %1372 = vmatpush2.bf16.xpose.msra.mxu0 0
        %1373 = vmatprep.subr.bf16.mxu0 0
        %1374 = vmatpush2.bf16.xpose.msra.mxu0 0
        %1375 = vmatprep.subr.bf16.mxu0 0
        %1376 = vmatpush2.bf16.xpose.msra.mxu0 0
        %1377 = vmatprep.subr.bf16.mxu0 0
        %1378 = vmatpush2.bf16.xpose.msra.mxu0 0
        %1379 = vmatprep.subr.bf16.mxu0 0
        %1380 = vmatpush2.bf16.xpose.msra.mxu0 0
        %1381 = vmatprep.subr.bf16.mxu0 0
        %1382 = vmatpush2.bf16.xpose.msra.mxu0 0
        %1383 = vmatprep.mubr.bf16.mxu0 0
        %1384 = vmatmul.mubr.bf16.gmra.mxu0 %v1346
        %v1385 = vpop.f32.mrf.mxu0
        %v1386 = vadd.f32 0.0, %v1385
        %v1387 = vpop.f32.mrf.mxu0
        %v1388 = vpop.f32.mrf.mxu0
        %v1389 = vpop.f32.mrf.mxu0
        %1390 = vdwg.mxu0
        %vm1391 = vcmask 64512
        %v1392 = vsel %vm1391, %v1340, -inf
        %1393 = vmax.xlane.f32.xlu0 %v1392
        %v1394 = vpop.xlane.xlu0 %1393
        %v1395 = vsel %vm1391, %v1386, -inf
        %1396 = vmax.xlane.f32.xlu0 %v1395
        %v1397 = vpop.xlane.xlu0 %1396
        %v1398 = vsub.f32 %v1340, %v1394
        %v1399 = vsub.f32 %v1386, %v1397
        %v1400 = vmul.f32 %v1398, 1.442695
        %v1401 = vpow.pop %v1400
        %v1402 = vmul.f32 %v1399, 1.442695
        %v1403 = vpow.pop %v1402
        %v1404 = vsel %vm1391, %v1401, 0.0
        %1405 = vadd.xlane.f32.xlu0 %v1404
        %v1406 = vpop.xlane.xlu0 %1405
        %v1407 = vsel %vm1391, %v1403, 0.0
        %1408 = vadd.xlane.f32.xlu0 %v1407
        %v1409 = vpop.xlane.xlu0 %1408
        %v1410 = vrcp.pop %v1406
        %v1411 = vrcp.pop %v1409
        %v1412 = vmul.f32 %v1401, %v1410
        %v1413 = vmul.f32 %v1403, %v1411
        %v1414 = vpack.c.bf16 %v1412, %v1412
        %v1415 = vpack.c.bf16 %v1413, %v1413
        %v1416 = vpack.c.bf16 %v1201, %v1201
        %v1417 = vpack.c.bf16 %v1289, %v1289
        %v1419 = vsel %vm1391, %v1414, 0
        %vm1421 = vcmask 1043456
        %v1423 = vsel %vm1421, %v1416, 0
        %1425 = vmatprep.subr.bf16.mxu0 0
        %1426 = vmatpush1.bf16.msra.mxu0 0
        %1427 = vmatprep.subr.bf16.mxu0 0
        %1428 = vmatpush1.bf16.msra.mxu0 0
        %1429 = vmatprep.subr.bf16.mxu0 0
        %1430 = vmatpush1.bf16.msra.mxu0 0
        %1431 = vmatprep.subr.bf16.mxu0 0
        %1432 = vmatpush1.bf16.msra.mxu0 0
        %1433 = vmatprep.subr.bf16.mxu0 0
        %1434 = vmatpush1.bf16.msra.mxu0 0
        %1435 = vmatprep.subr.bf16.mxu0 0
        %1436 = vmatpush1.bf16.msra.mxu0 0
        %1437 = vmatprep.subr.bf16.mxu0 0
        %1438 = vmatpush1.bf16.msra.mxu0 0
        %1439 = vmatprep.subr.bf16.mxu0 0
        %1440 = vmatpush1.bf16.msra.mxu0 %v1423
        %1441 = vmatprep.subr.bf16.mxu0 0
        %1442 = vmatpush2.bf16.msra.mxu0 0
        %1443 = vmatprep.subr.bf16.mxu0 0
        %1444 = vmatpush2.bf16.msra.mxu0 0
        %1445 = vmatprep.subr.bf16.mxu0 0
        %1446 = vmatpush2.bf16.msra.mxu0 0
        %1447 = vmatprep.subr.bf16.mxu0 0
        %1448 = vmatpush2.bf16.msra.mxu0 0
        %1449 = vmatprep.subr.bf16.mxu0 0
        %1450 = vmatpush2.bf16.msra.mxu0 0
        %1451 = vmatprep.subr.bf16.mxu0 0
        %1452 = vmatpush2.bf16.msra.mxu0 0
        %1453 = vmatprep.subr.bf16.mxu0 0
        %1454 = vmatpush2.bf16.msra.mxu0 0
        %1455 = vmatprep.subr.bf16.mxu0 0
        %1456 = vmatpush2.bf16.msra.mxu0 0
        %1457 = vmatprep.mubr.bf16.mxu0 0
        %1458 = vmatmul.mubr.bf16.gmra.mxu0 %v1419
        %v1459 = vpop.f32.mrf.mxu0
        %v1460 = vadd.f32 0.0, %v1459
        %v1461 = vpop.f32.mrf.mxu0
        %v1462 = vpop.f32.mrf.mxu0
        %v1463 = vpop.f32.mrf.mxu0
        %1464 = vdwg.mxu0
        %v1466 = vsel %vm1391, %v1415, 0
        %v1469 = vsel %vm1421, %v1417, 0
        %1471 = vmatprep.subr.bf16.mxu0 0
        %1472 = vmatpush1.bf16.msra.mxu0 0
        %1473 = vmatprep.subr.bf16.mxu0 0
        %1474 = vmatpush1.bf16.msra.mxu0 0
        %1475 = vmatprep.subr.bf16.mxu0 0
        %1476 = vmatpush1.bf16.msra.mxu0 0
        %1477 = vmatprep.subr.bf16.mxu0 0
        %1478 = vmatpush1.bf16.msra.mxu0 0
        %1479 = vmatprep.subr.bf16.mxu0 0
        %1480 = vmatpush1.bf16.msra.mxu0 0
        %1481 = vmatprep.subr.bf16.mxu0 0
        %1482 = vmatpush1.bf16.msra.mxu0 0
        %1483 = vmatprep.subr.bf16.mxu0 0
        %1484 = vmatpush1.bf16.msra.mxu0 0
        %1485 = vmatprep.subr.bf16.mxu0 0
        %1486 = vmatpush1.bf16.msra.mxu0 %v1469
        %1487 = vmatprep.subr.bf16.mxu0 0
        %1488 = vmatpush2.bf16.msra.mxu0 0
        %1489 = vmatprep.subr.bf16.mxu0 0
        %1490 = vmatpush2.bf16.msra.mxu0 0
        %1491 = vmatprep.subr.bf16.mxu0 0
        %1492 = vmatpush2.bf16.msra.mxu0 0
        %1493 = vmatprep.subr.bf16.mxu0 0
        %1494 = vmatpush2.bf16.msra.mxu0 0
        %1495 = vmatprep.subr.bf16.mxu0 0
        %1496 = vmatpush2.bf16.msra.mxu0 0
        %1497 = vmatprep.subr.bf16.mxu0 0
        %1498 = vmatpush2.bf16.msra.mxu0 0
        %1499 = vmatprep.subr.bf16.mxu0 0
        %1500 = vmatpush2.bf16.msra.mxu0 0
        %1501 = vmatprep.subr.bf16.mxu0 0
        %1502 = vmatpush2.bf16.msra.mxu0 0
        %1503 = vmatprep.mubr.bf16.mxu0 0
        %1504 = vmatmul.mubr.bf16.gmra.mxu0 %v1466
        %v1505 = vpop.f32.mrf.mxu0
        %v1506 = vadd.f32 0.0, %v1505
        %v1507 = vpop.f32.mrf.mxu0
        %v1508 = vpop.f32.mrf.mxu0
        %v1509 = vpop.f32.mrf.mxu0
        %1510 = vdwg.mxu0
        %1512 = vrot.lane.b32.xlu0 %v1506, 64
        %v1513 = vpop.permute.xlu0 %1512
        %v1515 = vsel %vm1298, %v1460, %v1513
        %v1516 = vpack.c.bf16 %v1515, %v1515
        %v1517 = vld [vmem:[%s9] sm:$0xf]
        %v1518 = vld [vmem:[%s9 + $0x4] sm:$0xf]
        %v1519 = vld [vmem:[%s9 + $0x8] sm:$0xf]
        %v1520 = vld [vmem:[%s9 + $0xc] sm:$0xf]
        %v1521 = vld [vmem:[%s9 + $0x10] sm:$0xf]
        %v1522 = vld [vmem:[%s9 + $0x14] sm:$0xf]
        %v1523 = vld [vmem:[%s9 + $0x18] sm:$0xf]
        %v1524 = vld [vmem:[%s9 + $0x1c] sm:$0xf]
        %v1525 = vld [vmem:[%s9 + $0x20] sm:$0xf]
        %v1526 = vld [vmem:[%s9 + $0x24] sm:$0xf]
        %v1527 = vld [vmem:[%s9 + $0x28] sm:$0xf]
        %v1528 = vld [vmem:[%s9 + $0x2c] sm:$0xf]
        %v1529 = vld [vmem:[%s9 + $0x30] sm:$0xf]
        %v1530 = vld [vmem:[%s9 + $0x34] sm:$0xf]
        %v1531 = vld [vmem:[%s9 + $0x38] sm:$0xf]
        %v1532 = vld [vmem:[%s9 + $0x3c] sm:$0xf]
        %v1533 = vld [vmem:[%s10] sm:$0x1]
        %v1535 = vlaneseq
        %v1536 = vshrl.u32 %v1535, 7
        %v1537 = vsub.s32 0, %v1536
        %v1538 = vrot.slane %v1533, %v1537
        %v1556 = vunpack.c.l.b16 %v1517
        %v1557 = vunpack.c.l.b16 %v1518
        %v1558 = vunpack.c.l.b16 %v1519
        %v1559 = vunpack.c.l.b16 %v1520
        %v1560 = vunpack.c.l.b16 %v1521
        %v1561 = vunpack.c.l.b16 %v1522
        %v1562 = vunpack.c.l.b16 %v1523
        %v1563 = vunpack.c.l.b16 %v1524
        %v1564 = vunpack.c.l.b16 %v1525
        %v1565 = vunpack.c.l.b16 %v1526
        %v1566 = vunpack.c.l.b16 %v1527
        %v1567 = vunpack.c.l.b16 %v1528
        %v1568 = vunpack.c.l.b16 %v1529
        %v1569 = vunpack.c.l.b16 %v1530
        %v1570 = vunpack.c.l.b16 %v1531
        %v1571 = vunpack.c.l.b16 %v1532
        %v1572 = vpack.c.b16 %v1557, %v1556
        %v1573 = vpack.c.b16 %v1559, %v1558
        %v1574 = vpack.c.b16 %v1561, %v1560
        %v1575 = vpack.c.b16 %v1563, %v1562
        %v1576 = vpack.c.b16 %v1565, %v1564
        %v1577 = vpack.c.b16 %v1567, %v1566
        %v1578 = vpack.c.b16 %v1569, %v1568
        %v1579 = vpack.c.b16 %v1571, %v1570
        %1588 = vmatprep.subr.bf16.mxu0 0
        %1589 = vmatpush1.bf16.msra.mxu0 %v1579
        %1590 = vmatprep.subr.bf16.mxu0 0
        %1591 = vmatpush1.bf16.msra.mxu0 %v1578
        %1592 = vmatprep.subr.bf16.mxu0 0
        %1593 = vmatpush1.bf16.msra.mxu0 %v1577
        %1594 = vmatprep.subr.bf16.mxu0 0
        %1595 = vmatpush1.bf16.msra.mxu0 %v1576
        %1596 = vmatprep.subr.bf16.mxu0 0
        %1597 = vmatpush1.bf16.msra.mxu0 %v1575
        %1598 = vmatprep.subr.bf16.mxu0 0
        %1599 = vmatpush1.bf16.msra.mxu0 %v1574
        %1600 = vmatprep.subr.bf16.mxu0 0
        %1601 = vmatpush1.bf16.msra.mxu0 %v1573
        %1602 = vmatprep.subr.bf16.mxu0 0
        %1603 = vmatpush1.bf16.msra.mxu0 %v1572
        %1604 = vmatprep.subr.bf16.mxu0 0
        %1605 = vmatpush2.bf16.msra.mxu0 0
        %1606 = vmatprep.subr.bf16.mxu0 0
        %1607 = vmatpush2.bf16.msra.mxu0 0
        %1608 = vmatprep.subr.bf16.mxu0 0
        %1609 = vmatpush2.bf16.msra.mxu0 0
        %1610 = vmatprep.subr.bf16.mxu0 0
        %1611 = vmatpush2.bf16.msra.mxu0 0
        %1612 = vmatprep.subr.bf16.mxu0 0
        %1613 = vmatpush2.bf16.msra.mxu0 0
        %1614 = vmatprep.subr.bf16.mxu0 0
        %1615 = vmatpush2.bf16.msra.mxu0 0
        %1616 = vmatprep.subr.bf16.mxu0 0
        %1617 = vmatpush2.bf16.msra.mxu0 0
        %1618 = vmatprep.subr.bf16.mxu0 0
        %1619 = vmatpush2.bf16.msra.mxu0 0
        %1620 = vmatprep.mubr.bf16.mxu0 0
        %1621 = vmatmul.mubr.bf16.gmra.mxu0 %v1516
        %v1622 = vpop.f32.mrf.mxu0
        %v1623 = vadd.f32 %v1538, %v1622
        %v1624 = vpop.f32.mrf.mxu0
        %v1625 = vpop.f32.mrf.mxu0
        %v1626 = vpop.f32.mrf.mxu0
        %1627 = vdwg.mxu0
        %v1628 = vadd.f32 %v626, %v1623
        %v1629 = vld [vmem:[%s11] sm:$0x1]
        %v1630 = vld [vmem:[%s12] sm:$0x1]
        %1631 = vadd.xlane.f32.xlu0 %v1628
        %v1632 = vpop.xlane.xlu0 %1631
        %v1633 = vmul.f32 %v1632, %v603
        %v1634 = vsub.f32 %v1628, %v1633
        %v1635 = vmul.f32 %v1634, %v1634
        %1636 = vadd.xlane.f32.xlu0 %v1635
        %v1637 = vpop.xlane.xlu0 %1636
        %v1638 = vmul.f32 %v1637, %v603
        %v1639 = vadd.f32 %v1638, 1e-12
        %v1640 = vrsqrt.pop %v1639
        %v1641 = vmul.f32 %v1634, %v1640
        %v1643 = vlaneseq
        %v1644 = vshrl.u32 %v1643, 7
        %v1645 = vsub.s32 0, %v1644
        %v1646 = vrot.slane %v1629, %v1645
        %v1648 = vmul.f32 %v1641, %v1646
        %v1650 = vlaneseq
        %v1651 = vshrl.u32 %v1650, 7
        %v1652 = vsub.s32 0, %v1651
        %v1653 = vrot.slane %v1630, %v1652
        %v1655 = vadd.f32 %v1648, %v1653
        %v1656 = vpack.c.bf16 %v1655, %v1655
        %v1657 = vld [vmem:[%s13] sm:$0xff]
        %v1658 = vld [vmem:[%s13 + $0x8] sm:$0xff]
        %v1659 = vld [vmem:[%s13 + $0x10] sm:$0xff]
        %v1660 = vld [vmem:[%s13 + $0x18] sm:$0xff]
        %v1661 = vld [vmem:[%s13 + $0x20] sm:$0xff]
        %v1662 = vld [vmem:[%s13 + $0x28] sm:$0xff]
        %v1663 = vld [vmem:[%s13 + $0x30] sm:$0xff]
        %v1664 = vld [vmem:[%s13 + $0x38] sm:$0xff]
        %v1665 = vld [vmem:[%s13 + $0x40] sm:$0xff]
        %v1666 = vld [vmem:[%s13 + $0x48] sm:$0xff]
        %v1667 = vld [vmem:[%s13 + $0x50] sm:$0xff]
        %v1668 = vld [vmem:[%s13 + $0x58] sm:$0xff]
        %v1669 = vld [vmem:[%s13 + $0x60] sm:$0xff]
        %v1670 = vld [vmem:[%s13 + $0x68] sm:$0xff]
        %v1671 = vld [vmem:[%s13 + $0x70] sm:$0xff]
        %v1672 = vld [vmem:[%s13 + $0x78] sm:$0xff]
        %v1673 = vld [vmem:[%s14] sm:$0x3]
        %v1675 = vlaneseq
        %v1676 = vshrl.u32 %v1675, 7
        %v1677 = vsub.s32 0, %v1676
        %v1678 = vrot.slane %v1673, %v1677
        %v1679 = vlaneseq
        %v1680 = vshrl.u32 %v1679, 7
        %v1681 = vsub.s32 1, %v1680
        %v1682 = vrot.slane %v1673, %v1681
        %v1701 = vunpack.c.l.b16 %v1657
        %v1702 = vunpack.c.h.b16 %v1657
        %v1703 = vunpack.c.l.b16 %v1658
        %v1704 = vunpack.c.h.b16 %v1658
        %v1705 = vunpack.c.l.b16 %v1659
        %v1706 = vunpack.c.h.b16 %v1659
        %v1707 = vunpack.c.l.b16 %v1660
        %v1708 = vunpack.c.h.b16 %v1660
        %v1709 = vunpack.c.l.b16 %v1661
        %v1710 = vunpack.c.h.b16 %v1661
        %v1711 = vunpack.c.l.b16 %v1662
        %v1712 = vunpack.c.h.b16 %v1662
        %v1713 = vunpack.c.l.b16 %v1663
        %v1714 = vunpack.c.h.b16 %v1663
        %v1715 = vunpack.c.l.b16 %v1664
        %v1716 = vunpack.c.h.b16 %v1664
        %v1717 = vunpack.c.l.b16 %v1665
        %v1718 = vunpack.c.h.b16 %v1665
        %v1719 = vunpack.c.l.b16 %v1666
        %v1720 = vunpack.c.h.b16 %v1666
        %v1721 = vunpack.c.l.b16 %v1667
        %v1722 = vunpack.c.h.b16 %v1667
        %v1723 = vunpack.c.l.b16 %v1668
        %v1724 = vunpack.c.h.b16 %v1668
        %v1725 = vunpack.c.l.b16 %v1669
        %v1726 = vunpack.c.h.b16 %v1669
        %v1727 = vunpack.c.l.b16 %v1670
        %v1728 = vunpack.c.h.b16 %v1670
        %v1729 = vunpack.c.l.b16 %v1671
        %v1730 = vunpack.c.h.b16 %v1671
        %v1731 = vunpack.c.l.b16 %v1672
        %v1732 = vunpack.c.h.b16 %v1672
        %v1733 = vpack.c.b16 %v1703, %v1701
        %v1734 = vpack.c.b16 %v1704, %v1702
        %v1735 = vpack.c.b16 %v1707, %v1705
        %v1736 = vpack.c.b16 %v1708, %v1706
        %v1737 = vpack.c.b16 %v1711, %v1709
        %v1738 = vpack.c.b16 %v1712, %v1710
        %v1739 = vpack.c.b16 %v1715, %v1713
        %v1740 = vpack.c.b16 %v1716, %v1714
        %v1741 = vpack.c.b16 %v1719, %v1717
        %v1742 = vpack.c.b16 %v1720, %v1718
        %v1743 = vpack.c.b16 %v1723, %v1721
        %v1744 = vpack.c.b16 %v1724, %v1722
        %v1745 = vpack.c.b16 %v1727, %v1725
        %v1746 = vpack.c.b16 %v1728, %v1726
        %v1747 = vpack.c.b16 %v1731, %v1729
        %v1748 = vpack.c.b16 %v1732, %v1730
        %1765 = vmatprep.subr.bf16.mxu0 %v1748
        %1766 = vmatpush1.bf16.msra.mxu0 %v1747
        %1767 = vmatprep.subr.bf16.mxu0 %v1746
        %1768 = vmatpush1.bf16.msra.mxu0 %v1745
        %1769 = vmatprep.subr.bf16.mxu0 %v1744
        %1770 = vmatpush1.bf16.msra.mxu0 %v1743
        %1771 = vmatprep.subr.bf16.mxu0 %v1742
        %1772 = vmatpush1.bf16.msra.mxu0 %v1741
        %1773 = vmatprep.subr.bf16.mxu0 %v1740
        %1774 = vmatpush1.bf16.msra.mxu0 %v1739
        %1775 = vmatprep.subr.bf16.mxu0 %v1738
        %1776 = vmatpush1.bf16.msra.mxu0 %v1737
        %1777 = vmatprep.subr.bf16.mxu0 %v1736
        %1778 = vmatpush1.bf16.msra.mxu0 %v1735
        %1779 = vmatprep.subr.bf16.mxu0 %v1734
        %1780 = vmatpush1.bf16.msra.mxu0 %v1733
        %1781 = vmatprep.subr.bf16.mxu0 0
        %1782 = vmatpush2.bf16.msra.mxu0 0
        %1783 = vmatprep.subr.bf16.mxu0 0
        %1784 = vmatpush2.bf16.msra.mxu0 0
        %1785 = vmatprep.subr.bf16.mxu0 0
        %1786 = vmatpush2.bf16.msra.mxu0 0
        %1787 = vmatprep.subr.bf16.mxu0 0
        %1788 = vmatpush2.bf16.msra.mxu0 0
        %1789 = vmatprep.subr.bf16.mxu0 0
        %1790 = vmatpush2.bf16.msra.mxu0 0
        %1791 = vmatprep.subr.bf16.mxu0 0
        %1792 = vmatpush2.bf16.msra.mxu0 0
        %1793 = vmatprep.subr.bf16.mxu0 0
        %1794 = vmatpush2.bf16.msra.mxu0 0
        %1795 = vmatprep.subr.bf16.mxu0 0
        %1796 = vmatpush2.bf16.msra.mxu0 0
        %1797 = vmatprep.mubr.bf16.mxu0 0
        %1798 = vmatmul.mubr.bf16.gmra.mxu0 %v1656
        %v1799 = vpop.f32.mrf.mxu0
        %v1800 = vadd.f32 %v1678, %v1799
        %v1801 = vpop.f32.mrf.mxu0
        %v1802 = vadd.f32 %v1682, %v1801
        %v1803 = vpop.f32.mrf.mxu0
        %v1804 = vpop.f32.mrf.mxu0
        %1805 = vdwg.mxu0
        %v1806 = vmul.f32 %v1800, 0.5
        %v1807 = vmul.f32 %v1802, 0.5
        %v1808 = vmul.f32 %v1800, 0.044715
        %v1809 = vmul.f32 %v1802, 0.044715
        %v1810 = vmul.f32 %v1808, %v1800
        %v1811 = vmul.f32 %v1809, %v1802
        %v1812 = vmul.f32 %v1810, %v1800
        %v1813 = vmul.f32 %v1811, %v1802
        %v1814 = vadd.f32 %v1800, %v1812
        %v1815 = vadd.f32 %v1802, %v1813
        %v1816 = vmul.f32 %v1814, 0.7978846
        %v1817 = vmul.f32 %v1815, 0.7978846
        %v1818 = vtanh.pop %v1816
        %v1819 = vtanh.pop %v1817
        %v1820 = vadd.f32 %v1818, 1.0
        %v1821 = vadd.f32 %v1819, 1.0
        %v1822 = vmul.f32 %v1806, %v1820
        %v1823 = vmul.f32 %v1807, %v1821
        %v1824 = vpack.c.bf16 %v1822, %v1822
        %v1825 = vpack.c.bf16 %v1823, %v1823
        %v1826 = vld [vmem:[%s15] sm:$0xf]
        %v1827 = vld [vmem:[%s15 + $0x4] sm:$0xf]
        %v1828 = vld [vmem:[%s15 + $0x8] sm:$0xf]
        %v1829 = vld [vmem:[%s15 + $0xc] sm:$0xf]
        %v1830 = vld [vmem:[%s15 + $0x10] sm:$0xf]
        %v1831 = vld [vmem:[%s15 + $0x14] sm:$0xf]
        %v1832 = vld [vmem:[%s15 + $0x18] sm:$0xf]
        %v1833 = vld [vmem:[%s15 + $0x1c] sm:$0xf]
        %v1834 = vld [vmem:[%s15 + $0x20] sm:$0xf]
        %v1835 = vld [vmem:[%s15 + $0x24] sm:$0xf]
        %v1836 = vld [vmem:[%s15 + $0x28] sm:$0xf]
        %v1837 = vld [vmem:[%s15 + $0x2c] sm:$0xf]
        %v1838 = vld [vmem:[%s15 + $0x30] sm:$0xf]
        %v1839 = vld [vmem:[%s15 + $0x34] sm:$0xf]
        %v1840 = vld [vmem:[%s15 + $0x38] sm:$0xf]
        %v1841 = vld [vmem:[%s15 + $0x3c] sm:$0xf]
        %v1842 = vld [vmem:[%s15 + $0x40] sm:$0xf]
        %v1843 = vld [vmem:[%s15 + $0x44] sm:$0xf]
        %v1844 = vld [vmem:[%s15 + $0x48] sm:$0xf]
        %v1845 = vld [vmem:[%s15 + $0x4c] sm:$0xf]
        %v1846 = vld [vmem:[%s15 + $0x50] sm:$0xf]
        %v1847 = vld [vmem:[%s15 + $0x54] sm:$0xf]
        %v1848 = vld [vmem:[%s15 + $0x58] sm:$0xf]
        %v1849 = vld [vmem:[%s15 + $0x5c] sm:$0xf]
        %v1850 = vld [vmem:[%s15 + $0x60] sm:$0xf]
        %v1851 = vld [vmem:[%s15 + $0x64] sm:$0xf]
        %v1852 = vld [vmem:[%s15 + $0x68] sm:$0xf]
        %v1853 = vld [vmem:[%s15 + $0x6c] sm:$0xf]
        %v1854 = vld [vmem:[%s15 + $0x70] sm:$0xf]
        %v1855 = vld [vmem:[%s15 + $0x74] sm:$0xf]
        %v1856 = vld [vmem:[%s15 + $0x78] sm:$0xf]
        %v1857 = vld [vmem:[%s15 + $0x7c] sm:$0xf]
        %v1858 = vld [vmem:[%s16] sm:$0x1]
        %v1860 = vlaneseq
        %v1861 = vshrl.u32 %v1860, 7
        %v1862 = vsub.s32 0, %v1861
        %v1863 = vrot.slane %v1858, %v1862
        %v1897 = vunpack.c.l.b16 %v1826
        %v1898 = vunpack.c.l.b16 %v1827
        %v1899 = vunpack.c.l.b16 %v1828
        %v1900 = vunpack.c.l.b16 %v1829
        %v1901 = vunpack.c.l.b16 %v1830
        %v1902 = vunpack.c.l.b16 %v1831
        %v1903 = vunpack.c.l.b16 %v1832
        %v1904 = vunpack.c.l.b16 %v1833
        %v1905 = vunpack.c.l.b16 %v1834
        %v1906 = vunpack.c.l.b16 %v1835
        %v1907 = vunpack.c.l.b16 %v1836
        %v1908 = vunpack.c.l.b16 %v1837
        %v1909 = vunpack.c.l.b16 %v1838
        %v1910 = vunpack.c.l.b16 %v1839
        %v1911 = vunpack.c.l.b16 %v1840
        %v1912 = vunpack.c.l.b16 %v1841
        %v1913 = vunpack.c.l.b16 %v1842
        %v1914 = vunpack.c.l.b16 %v1843
        %v1915 = vunpack.c.l.b16 %v1844
        %v1916 = vunpack.c.l.b16 %v1845
        %v1917 = vunpack.c.l.b16 %v1846
        %v1918 = vunpack.c.l.b16 %v1847
        %v1919 = vunpack.c.l.b16 %v1848
        %v1920 = vunpack.c.l.b16 %v1849
        %v1921 = vunpack.c.l.b16 %v1850
        %v1922 = vunpack.c.l.b16 %v1851
        %v1923 = vunpack.c.l.b16 %v1852
        %v1924 = vunpack.c.l.b16 %v1853
        %v1925 = vunpack.c.l.b16 %v1854
        %v1926 = vunpack.c.l.b16 %v1855
        %v1927 = vunpack.c.l.b16 %v1856
        %v1928 = vunpack.c.l.b16 %v1857
        %v1929 = vpack.c.b16 %v1898, %v1897
        %v1930 = vpack.c.b16 %v1900, %v1899
        %v1931 = vpack.c.b16 %v1902, %v1901
        %v1932 = vpack.c.b16 %v1904, %v1903
        %v1933 = vpack.c.b16 %v1906, %v1905
        %v1934 = vpack.c.b16 %v1908, %v1907
        %v1935 = vpack.c.b16 %v1910, %v1909
        %v1936 = vpack.c.b16 %v1912, %v1911
        %v1937 = vpack.c.b16 %v1914, %v1913
        %v1938 = vpack.c.b16 %v1916, %v1915
        %v1939 = vpack.c.b16 %v1918, %v1917
        %v1940 = vpack.c.b16 %v1920, %v1919
        %v1941 = vpack.c.b16 %v1922, %v1921
        %v1942 = vpack.c.b16 %v1924, %v1923
        %v1943 = vpack.c.b16 %v1926, %v1925
        %v1944 = vpack.c.b16 %v1928, %v1927
        %1961 = vmatprep.subr.bf16.mxu0 0
        %1962 = vmatpush1.bf16.msra.mxu0 %v1936
        %1963 = vmatprep.subr.bf16.mxu0 0
        %1964 = vmatpush1.bf16.msra.mxu0 %v1935
        %1965 = vmatprep.subr.bf16.mxu0 0
        %1966 = vmatpush1.bf16.msra.mxu0 %v1934
        %1967 = vmatprep.subr.bf16.mxu0 0
        %1968 = vmatpush1.bf16.msra.mxu0 %v1933
        %1969 = vmatprep.subr.bf16.mxu0 0
        %1970 = vmatpush1.bf16.msra.mxu0 %v1932
        %1971 = vmatprep.subr.bf16.mxu0 0
        %1972 = vmatpush1.bf16.msra.mxu0 %v1931
        %1973 = vmatprep.subr.bf16.mxu0 0
        %1974 = vmatpush1.bf16.msra.mxu0 %v1930
        %1975 = vmatprep.subr.bf16.mxu0 0
        %1976 = vmatpush1.bf16.msra.mxu0 %v1929
        %1977 = vmatprep.subr.bf16.mxu0 0
        %1978 = vmatpush2.bf16.msra.mxu0 %v1944
        %1979 = vmatprep.subr.bf16.mxu0 0
        %1980 = vmatpush2.bf16.msra.mxu0 %v1943
        %1981 = vmatprep.subr.bf16.mxu0 0
        %1982 = vmatpush2.bf16.msra.mxu0 %v1942
        %1983 = vmatprep.subr.bf16.mxu0 0
        %1984 = vmatpush2.bf16.msra.mxu0 %v1941
        %1985 = vmatprep.subr.bf16.mxu0 0
        %1986 = vmatpush2.bf16.msra.mxu0 %v1940
        %1987 = vmatprep.subr.bf16.mxu0 0
        %1988 = vmatpush2.bf16.msra.mxu0 %v1939
        %1989 = vmatprep.subr.bf16.mxu0 0
        %1990 = vmatpush2.bf16.msra.mxu0 %v1938
        %1991 = vmatprep.subr.bf16.mxu0 0
        %1992 = vmatpush2.bf16.msra.mxu0 %v1937
        %1993 = vmatprep.mubr.bf16.mxu0 %v1825
        %1994 = vmatmul.mubr.bf16.gmra.mxu0 %v1824
        %v1995 = vpop.f32.mrf.mxu0
        %v1996 = vadd.f32 %v1863, %v1995
        %v1997 = vpop.f32.mrf.mxu0
        %v1998 = vpop.f32.mrf.mxu0
        %v1999 = vpop.f32.mrf.mxu0
        %2000 = vdwg.mxu0
        %v2001 = vadd.f32 %v1655, %v1996
        %v2002 = vld [vmem:[%s17] sm:$0x1]
        %v2003 = vld [vmem:[%s18] sm:$0x1]
        %2004 = vadd.xlane.f32.xlu0 %v2001
        %v2005 = vpop.xlane.xlu0 %2004
        %v2006 = vmul.f32 %v2005, %v603
        %v2007 = vsub.f32 %v2001, %v2006
        %v2008 = vmul.f32 %v2007, %v2007
        %2009 = vadd.xlane.f32.xlu0 %v2008
        %v2010 = vpop.xlane.xlu0 %2009
        %v2011 = vmul.f32 %v2010, %v603
        %v2012 = vadd.f32 %v2011, 1e-12
        %v2013 = vrsqrt.pop %v2012
        %v2014 = vmul.f32 %v2007, %v2013
        %v2016 = vlaneseq
        %v2017 = vshrl.u32 %v2016, 7
        %v2018 = vsub.s32 0, %v2017
        %v2019 = vrot.slane %v2002, %v2018
        %v2021 = vmul.f32 %v2014, %v2019
        %v2023 = vlaneseq
        %v2024 = vshrl.u32 %v2023, 7
        %v2025 = vsub.s32 0, %v2024
        %v2026 = vrot.slane %v2003, %v2025
        %v2028 = vadd.f32 %v2021, %v2026
        %v2029 = vpack.c.bf16 %v2028, %v2028
        %s2030 = scalar_lea.vmem %s3, 128
        %v2031 = vld [vmem:[%s2030] sm:$0xf]
        %v2032 = vld [vmem:[%s2030 + $0x4] sm:$0xf]
        %v2033 = vld [vmem:[%s2030 + $0x8] sm:$0xf]
        %v2034 = vld [vmem:[%s2030 + $0xc] sm:$0xf]
        %v2035 = vld [vmem:[%s2030 + $0x10] sm:$0xf]
        %v2036 = vld [vmem:[%s2030 + $0x14] sm:$0xf]
        %v2037 = vld [vmem:[%s2030 + $0x18] sm:$0xf]
        %v2038 = vld [vmem:[%s2030 + $0x1c] sm:$0xf]
        %v2039 = vld [vmem:[%s2030 + $0x20] sm:$0xf]
        %v2040 = vld [vmem:[%s2030 + $0x24] sm:$0xf]
        %v2041 = vld [vmem:[%s2030 + $0x28] sm:$0xf]
        %v2042 = vld [vmem:[%s2030 + $0x2c] sm:$0xf]
        %v2043 = vld [vmem:[%s2030 + $0x30] sm:$0xf]
        %v2044 = vld [vmem:[%s2030 + $0x34] sm:$0xf]
        %v2045 = vld [vmem:[%s2030 + $0x38] sm:$0xf]
        %v2046 = vld [vmem:[%s2030 + $0x3c] sm:$0xf]
        %v2047 = vld [vmem:[%s2030 + $0x40] sm:$0xf]
        %v2048 = vld [vmem:[%s2030 + $0x44] sm:$0xf]
        %v2049 = vld [vmem:[%s2030 + $0x48] sm:$0xf]
        %v2050 = vld [vmem:[%s2030 + $0x4c] sm:$0xf]
        %v2051 = vld [vmem:[%s2030 + $0x50] sm:$0xf]
        %v2052 = vld [vmem:[%s2030 + $0x54] sm:$0xf]
        %v2053 = vld [vmem:[%s2030 + $0x58] sm:$0xf]
        %v2054 = vld [vmem:[%s2030 + $0x5c] sm:$0xf]
        %v2055 = vld [vmem:[%s2030 + $0x60] sm:$0xf]
        %v2056 = vld [vmem:[%s2030 + $0x64] sm:$0xf]
        %v2057 = vld [vmem:[%s2030 + $0x68] sm:$0xf]
        %v2058 = vld [vmem:[%s2030 + $0x6c] sm:$0xf]
        %v2059 = vld [vmem:[%s2030 + $0x70] sm:$0xf]
        %v2060 = vld [vmem:[%s2030 + $0x74] sm:$0xf]
        %v2061 = vld [vmem:[%s2030 + $0x78] sm:$0xf]
        %v2062 = vld [vmem:[%s2030 + $0x7c] sm:$0xf]
        %s2063 = scalar_lea.vmem %s4, 2
        %v2064 = vld [vmem:[%s2063] sm:$0x1]
        %v2065 = vld [vmem:[%s2063 + $0x1] sm:$0x1]
        %v2068 = vlaneseq
        %v2069 = vshrl.u32 %v2068, 7
        %v2070 = vsub.s32 0, %v2069
        %v2071 = vrot.slane %v2064, %v2070
        %v2072 = vlaneseq
        %v2073 = vshrl.u32 %v2072, 7
        %v2074 = vsub.s32 0, %v2073
        %v2075 = vrot.slane %v2065, %v2074
        %v2094 = vunpack.c.l.b16 %v2031
        %v2095 = vunpack.c.l.b16 %v2032
        %v2096 = vunpack.c.l.b16 %v2033
        %v2097 = vunpack.c.l.b16 %v2034
        %v2098 = vunpack.c.l.b16 %v2035
        %v2099 = vunpack.c.l.b16 %v2036
        %v2100 = vunpack.c.l.b16 %v2037
        %v2101 = vunpack.c.l.b16 %v2038
        %v2102 = vunpack.c.l.b16 %v2039
        %v2103 = vunpack.c.l.b16 %v2040
        %v2104 = vunpack.c.l.b16 %v2041
        %v2105 = vunpack.c.l.b16 %v2042
        %v2106 = vunpack.c.l.b16 %v2043
        %v2107 = vunpack.c.l.b16 %v2044
        %v2108 = vunpack.c.l.b16 %v2045
        %v2109 = vunpack.c.l.b16 %v2046
        %v2110 = vpack.c.b16 %v2095, %v2094
        %v2111 = vpack.c.b16 %v2097, %v2096
        %v2112 = vpack.c.b16 %v2099, %v2098
        %v2113 = vpack.c.b16 %v2101, %v2100
        %v2114 = vpack.c.b16 %v2103, %v2102
        %v2115 = vpack.c.b16 %v2105, %v2104
        %v2116 = vpack.c.b16 %v2107, %v2106
        %v2117 = vpack.c.b16 %v2109, %v2108
        %2126 = vmatprep.subr.bf16.mxu0 0
        %2127 = vmatpush1.bf16.msra.mxu0 %v2117
        %2128 = vmatprep.subr.bf16.mxu0 0
        %2129 = vmatpush1.bf16.msra.mxu0 %v2116
        %2130 = vmatprep.subr.bf16.mxu0 0
        %2131 = vmatpush1.bf16.msra.mxu0 %v2115
        %2132 = vmatprep.subr.bf16.mxu0 0
        %2133 = vmatpush1.bf16.msra.mxu0 %v2114
        %2134 = vmatprep.subr.bf16.mxu0 0
        %2135 = vmatpush1.bf16.msra.mxu0 %v2113
        %2136 = vmatprep.subr.bf16.mxu0 0
        %2137 = vmatpush1.bf16.msra.mxu0 %v2112
        %2138 = vmatprep.subr.bf16.mxu0 0
        %2139 = vmatpush1.bf16.msra.mxu0 %v2111
        %2140 = vmatprep.subr.bf16.mxu0 0
        %2141 = vmatpush1.bf16.msra.mxu0 %v2110
        %2142 = vmatprep.subr.bf16.mxu0 0
        %2143 = vmatpush2.bf16.msra.mxu0 0
        %2144 = vmatprep.subr.bf16.mxu0 0
        %2145 = vmatpush2.bf16.msra.mxu0 0
        %2146 = vmatprep.subr.bf16.mxu0 0
        %2147 = vmatpush2.bf16.msra.mxu0 0
        %2148 = vmatprep.subr.bf16.mxu0 0
        %2149 = vmatpush2.bf16.msra.mxu0 0
        %2150 = vmatprep.subr.bf16.mxu0 0
        %2151 = vmatpush2.bf16.msra.mxu0 0
        %2152 = vmatprep.subr.bf16.mxu0 0
        %2153 = vmatpush2.bf16.msra.mxu0 0
        %2154 = vmatprep.subr.bf16.mxu0 0
        %2155 = vmatpush2.bf16.msra.mxu0 0
        %2156 = vmatprep.subr.bf16.mxu0 0
        %2157 = vmatpush2.bf16.msra.mxu0 0
        %2158 = vmatprep.mubr.bf16.mxu0 0
        %2159 = vmatmul.mubr.bf16.gmra.mxu0 %v2029
        %v2160 = vpop.f32.mrf.mxu0
        %v2161 = vadd.f32 %v2071, %v2160
        %v2162 = vpop.f32.mrf.mxu0
        %v2163 = vpop.f32.mrf.mxu0
        %v2164 = vpop.f32.mrf.mxu0
        %2165 = vdwg.mxu0
        %v2182 = vunpack.c.l.b16 %v2047
        %v2183 = vunpack.c.l.b16 %v2048
        %v2184 = vunpack.c.l.b16 %v2049
        %v2185 = vunpack.c.l.b16 %v2050
        %v2186 = vunpack.c.l.b16 %v2051
        %v2187 = vunpack.c.l.b16 %v2052
        %v2188 = vunpack.c.l.b16 %v2053
        %v2189 = vunpack.c.l.b16 %v2054
        %v2190 = vunpack.c.l.b16 %v2055
        %v2191 = vunpack.c.l.b16 %v2056
        %v2192 = vunpack.c.l.b16 %v2057
        %v2193 = vunpack.c.l.b16 %v2058
        %v2194 = vunpack.c.l.b16 %v2059
        %v2195 = vunpack.c.l.b16 %v2060
        %v2196 = vunpack.c.l.b16 %v2061
        %v2197 = vunpack.c.l.b16 %v2062
        %v2198 = vpack.c.b16 %v2183, %v2182
        %v2199 = vpack.c.b16 %v2185, %v2184
        %v2200 = vpack.c.b16 %v2187, %v2186
        %v2201 = vpack.c.b16 %v2189, %v2188
        %v2202 = vpack.c.b16 %v2191, %v2190
        %v2203 = vpack.c.b16 %v2193, %v2192
        %v2204 = vpack.c.b16 %v2195, %v2194
        %v2205 = vpack.c.b16 %v2197, %v2196
        %2214 = vmatprep.subr.bf16.mxu0 0
        %2215 = vmatpush1.bf16.msra.mxu0 %v2205
        %2216 = vmatprep.subr.bf16.mxu0 0
        %2217 = vmatpush1.bf16.msra.mxu0 %v2204
        %2218 = vmatprep.subr.bf16.mxu0 0
        %2219 = vmatpush1.bf16.msra.mxu0 %v2203
        %2220 = vmatprep.subr.bf16.mxu0 0
        %2221 = vmatpush1.bf16.msra.mxu0 %v2202
        %2222 = vmatprep.subr.bf16.mxu0 0
        %2223 = vmatpush1.bf16.msra.mxu0 %v2201
        %2224 = vmatprep.subr.bf16.mxu0 0
        %2225 = vmatpush1.bf16.msra.mxu0 %v2200
        %2226 = vmatprep.subr.bf16.mxu0 0
        %2227 = vmatpush1.bf16.msra.mxu0 %v2199
        %2228 = vmatprep.subr.bf16.mxu0 0
        %2229 = vmatpush1.bf16.msra.mxu0 %v2198
        %2230 = vmatprep.subr.bf16.mxu0 0
        %2231 = vmatpush2.bf16.msra.mxu0 0
        %2232 = vmatprep.subr.bf16.mxu0 0
        %2233 = vmatpush2.bf16.msra.mxu0 0
        %2234 = vmatprep.subr.bf16.mxu0 0
        %2235 = vmatpush2.bf16.msra.mxu0 0
        %2236 = vmatprep.subr.bf16.mxu0 0
        %2237 = vmatpush2.bf16.msra.mxu0 0
        %2238 = vmatprep.subr.bf16.mxu0 0
        %2239 = vmatpush2.bf16.msra.mxu0 0
        %2240 = vmatprep.subr.bf16.mxu0 0
        %2241 = vmatpush2.bf16.msra.mxu0 0
        %2242 = vmatprep.subr.bf16.mxu0 0
        %2243 = vmatpush2.bf16.msra.mxu0 0
        %2244 = vmatprep.subr.bf16.mxu0 0
        %2245 = vmatpush2.bf16.msra.mxu0 0
        %2246 = vmatprep.mubr.bf16.mxu0 0
        %2247 = vmatmul.mubr.bf16.gmra.mxu0 %v2029
        %v2248 = vpop.f32.mrf.mxu0
        %v2249 = vadd.f32 %v2075, %v2248
        %v2250 = vpop.f32.mrf.mxu0
        %v2251 = vpop.f32.mrf.mxu0
        %v2252 = vpop.f32.mrf.mxu0
        %2253 = vdwg.mxu0
        %s2254 = scalar_lea.vmem %s5, 128
        %v2255 = vld [vmem:[%s2254] sm:$0xf]
        %v2256 = vld [vmem:[%s2254 + $0x4] sm:$0xf]
        %v2257 = vld [vmem:[%s2254 + $0x8] sm:$0xf]
        %v2258 = vld [vmem:[%s2254 + $0xc] sm:$0xf]
        %v2259 = vld [vmem:[%s2254 + $0x10] sm:$0xf]
        %v2260 = vld [vmem:[%s2254 + $0x14] sm:$0xf]
        %v2261 = vld [vmem:[%s2254 + $0x18] sm:$0xf]
        %v2262 = vld [vmem:[%s2254 + $0x1c] sm:$0xf]
        %v2263 = vld [vmem:[%s2254 + $0x20] sm:$0xf]
        %v2264 = vld [vmem:[%s2254 + $0x24] sm:$0xf]
        %v2265 = vld [vmem:[%s2254 + $0x28] sm:$0xf]
        %v2266 = vld [vmem:[%s2254 + $0x2c] sm:$0xf]
        %v2267 = vld [vmem:[%s2254 + $0x30] sm:$0xf]
        %v2268 = vld [vmem:[%s2254 + $0x34] sm:$0xf]
        %v2269 = vld [vmem:[%s2254 + $0x38] sm:$0xf]
        %v2270 = vld [vmem:[%s2254 + $0x3c] sm:$0xf]
        %v2271 = vld [vmem:[%s2254 + $0x40] sm:$0xf]
        %v2272 = vld [vmem:[%s2254 + $0x44] sm:$0xf]
        %v2273 = vld [vmem:[%s2254 + $0x48] sm:$0xf]
        %v2274 = vld [vmem:[%s2254 + $0x4c] sm:$0xf]
        %v2275 = vld [vmem:[%s2254 + $0x50] sm:$0xf]
        %v2276 = vld [vmem:[%s2254 + $0x54] sm:$0xf]
        %v2277 = vld [vmem:[%s2254 + $0x58] sm:$0xf]
        %v2278 = vld [vmem:[%s2254 + $0x5c] sm:$0xf]
        %v2279 = vld [vmem:[%s2254 + $0x60] sm:$0xf]
        %v2280 = vld [vmem:[%s2254 + $0x64] sm:$0xf]
        %v2281 = vld [vmem:[%s2254 + $0x68] sm:$0xf]
        %v2282 = vld [vmem:[%s2254 + $0x6c] sm:$0xf]
        %v2283 = vld [vmem:[%s2254 + $0x70] sm:$0xf]
        %v2284 = vld [vmem:[%s2254 + $0x74] sm:$0xf]
        %v2285 = vld [vmem:[%s2254 + $0x78] sm:$0xf]
        %v2286 = vld [vmem:[%s2254 + $0x7c] sm:$0xf]
        %s2287 = scalar_lea.vmem %s6, 2
        %v2288 = vld [vmem:[%s2287] sm:$0x1]
        %v2289 = vld [vmem:[%s2287 + $0x1] sm:$0x1]
        %v2292 = vlaneseq
        %v2293 = vshrl.u32 %v2292, 7
        %v2294 = vsub.s32 0, %v2293
        %v2295 = vrot.slane %v2288, %v2294
        %v2296 = vlaneseq
        %v2297 = vshrl.u32 %v2296, 7
        %v2298 = vsub.s32 0, %v2297
        %v2299 = vrot.slane %v2289, %v2298
        %v2318 = vunpack.c.l.b16 %v2255
        %v2319 = vunpack.c.l.b16 %v2256
        %v2320 = vunpack.c.l.b16 %v2257
        %v2321 = vunpack.c.l.b16 %v2258
        %v2322 = vunpack.c.l.b16 %v2259
        %v2323 = vunpack.c.l.b16 %v2260
        %v2324 = vunpack.c.l.b16 %v2261
        %v2325 = vunpack.c.l.b16 %v2262
        %v2326 = vunpack.c.l.b16 %v2263
        %v2327 = vunpack.c.l.b16 %v2264
        %v2328 = vunpack.c.l.b16 %v2265
        %v2329 = vunpack.c.l.b16 %v2266
        %v2330 = vunpack.c.l.b16 %v2267
        %v2331 = vunpack.c.l.b16 %v2268
        %v2332 = vunpack.c.l.b16 %v2269
        %v2333 = vunpack.c.l.b16 %v2270
        %v2334 = vpack.c.b16 %v2319, %v2318
        %v2335 = vpack.c.b16 %v2321, %v2320
        %v2336 = vpack.c.b16 %v2323, %v2322
        %v2337 = vpack.c.b16 %v2325, %v2324
        %v2338 = vpack.c.b16 %v2327, %v2326
        %v2339 = vpack.c.b16 %v2329, %v2328
        %v2340 = vpack.c.b16 %v2331, %v2330
        %v2341 = vpack.c.b16 %v2333, %v2332
        %2350 = vmatprep.subr.bf16.mxu0 0
        %2351 = vmatpush1.bf16.msra.mxu0 %v2341
        %2352 = vmatprep.subr.bf16.mxu0 0
        %2353 = vmatpush1.bf16.msra.mxu0 %v2340
        %2354 = vmatprep.subr.bf16.mxu0 0
        %2355 = vmatpush1.bf16.msra.mxu0 %v2339
        %2356 = vmatprep.subr.bf16.mxu0 0
        %2357 = vmatpush1.bf16.msra.mxu0 %v2338
        %2358 = vmatprep.subr.bf16.mxu0 0
        %2359 = vmatpush1.bf16.msra.mxu0 %v2337
        %2360 = vmatprep.subr.bf16.mxu0 0
        %2361 = vmatpush1.bf16.msra.mxu0 %v2336
        %2362 = vmatprep.subr.bf16.mxu0 0
        %2363 = vmatpush1.bf16.msra.mxu0 %v2335
        %2364 = vmatprep.subr.bf16.mxu0 0
        %2365 = vmatpush1.bf16.msra.mxu0 %v2334
        %2366 = vmatprep.subr.bf16.mxu0 0
        %2367 = vmatpush2.bf16.msra.mxu0 0
        %2368 = vmatprep.subr.bf16.mxu0 0
        %2369 = vmatpush2.bf16.msra.mxu0 0
        %2370 = vmatprep.subr.bf16.mxu0 0
        %2371 = vmatpush2.bf16.msra.mxu0 0
        %2372 = vmatprep.subr.bf16.mxu0 0
        %2373 = vmatpush2.bf16.msra.mxu0 0
        %2374 = vmatprep.subr.bf16.mxu0 0
        %2375 = vmatpush2.bf16.msra.mxu0 0
        %2376 = vmatprep.subr.bf16.mxu0 0
        %2377 = vmatpush2.bf16.msra.mxu0 0
        %2378 = vmatprep.subr.bf16.mxu0 0
        %2379 = vmatpush2.bf16.msra.mxu0 0
        %2380 = vmatprep.subr.bf16.mxu0 0
        %2381 = vmatpush2.bf16.msra.mxu0 0
        %2382 = vmatprep.mubr.bf16.mxu0 0
        %2383 = vmatmul.mubr.bf16.gmra.mxu0 %v2029
        %v2384 = vpop.f32.mrf.mxu0
        %v2385 = vadd.f32 %v2295, %v2384
        %v2386 = vpop.f32.mrf.mxu0
        %v2387 = vpop.f32.mrf.mxu0
        %v2388 = vpop.f32.mrf.mxu0
        %2389 = vdwg.mxu0
        %v2406 = vunpack.c.l.b16 %v2271
        %v2407 = vunpack.c.l.b16 %v2272
        %v2408 = vunpack.c.l.b16 %v2273
        %v2409 = vunpack.c.l.b16 %v2274
        %v2410 = vunpack.c.l.b16 %v2275
        %v2411 = vunpack.c.l.b16 %v2276
        %v2412 = vunpack.c.l.b16 %v2277
        %v2413 = vunpack.c.l.b16 %v2278
        %v2414 = vunpack.c.l.b16 %v2279
        %v2415 = vunpack.c.l.b16 %v2280
        %v2416 = vunpack.c.l.b16 %v2281
        %v2417 = vunpack.c.l.b16 %v2282
        %v2418 = vunpack.c.l.b16 %v2283
        %v2419 = vunpack.c.l.b16 %v2284
        %v2420 = vunpack.c.l.b16 %v2285
        %v2421 = vunpack.c.l.b16 %v2286
        %v2422 = vpack.c.b16 %v2407, %v2406
        %v2423 = vpack.c.b16 %v2409, %v2408
        %v2424 = vpack.c.b16 %v2411, %v2410
        %v2425 = vpack.c.b16 %v2413, %v2412
        %v2426 = vpack.c.b16 %v2415, %v2414
        %v2427 = vpack.c.b16 %v2417, %v2416
        %v2428 = vpack.c.b16 %v2419, %v2418
        %v2429 = vpack.c.b16 %v2421, %v2420
        %2438 = vmatprep.subr.bf16.mxu0 0
        %2439 = vmatpush1.bf16.msra.mxu0 %v2429
        %2440 = vmatprep.subr.bf16.mxu0 0
        %2441 = vmatpush1.bf16.msra.mxu0 %v2428
        %2442 = vmatprep.subr.bf16.mxu0 0
        %2443 = vmatpush1.bf16.msra.mxu0 %v2427
        %2444 = vmatprep.subr.bf16.mxu0 0
        %2445 = vmatpush1.bf16.msra.mxu0 %v2426
        %2446 = vmatprep.subr.bf16.mxu0 0
        %2447 = vmatpush1.bf16.msra.mxu0 %v2425
        %2448 = vmatprep.subr.bf16.mxu0 0
        %2449 = vmatpush1.bf16.msra.mxu0 %v2424
        %2450 = vmatprep.subr.bf16.mxu0 0
        %2451 = vmatpush1.bf16.msra.mxu0 %v2423
        %2452 = vmatprep.subr.bf16.mxu0 0
        %2453 = vmatpush1.bf16.msra.mxu0 %v2422
        %2454 = vmatprep.subr.bf16.mxu0 0
        %2455 = vmatpush2.bf16.msra.mxu0 0
        %2456 = vmatprep.subr.bf16.mxu0 0
        %2457 = vmatpush2.bf16.msra.mxu0 0
        %2458 = vmatprep.subr.bf16.mxu0 0
        %2459 = vmatpush2.bf16.msra.mxu0 0
        %2460 = vmatprep.subr.bf16.mxu0 0
        %2461 = vmatpush2.bf16.msra.mxu0 0
        %2462 = vmatprep.subr.bf16.mxu0 0
        %2463 = vmatpush2.bf16.msra.mxu0 0
        %2464 = vmatprep.subr.bf16.mxu0 0
        %2465 = vmatpush2.bf16.msra.mxu0 0
        %2466 = vmatprep.subr.bf16.mxu0 0
        %2467 = vmatpush2.bf16.msra.mxu0 0
        %2468 = vmatprep.subr.bf16.mxu0 0
        %2469 = vmatpush2.bf16.msra.mxu0 0
        %2470 = vmatprep.mubr.bf16.mxu0 0
        %2471 = vmatmul.mubr.bf16.gmra.mxu0 %v2029
        %v2472 = vpop.f32.mrf.mxu0
        %v2473 = vadd.f32 %v2299, %v2472
        %v2474 = vpop.f32.mrf.mxu0
        %v2475 = vpop.f32.mrf.mxu0
        %v2476 = vpop.f32.mrf.mxu0
        %2477 = vdwg.mxu0
        %s2478 = scalar_lea.vmem %s7, 128
        %v2479 = vld [vmem:[%s2478] sm:$0xf]
        %v2480 = vld [vmem:[%s2478 + $0x4] sm:$0xf]
        %v2481 = vld [vmem:[%s2478 + $0x8] sm:$0xf]
        %v2482 = vld [vmem:[%s2478 + $0xc] sm:$0xf]
        %v2483 = vld [vmem:[%s2478 + $0x10] sm:$0xf]
        %v2484 = vld [vmem:[%s2478 + $0x14] sm:$0xf]
        %v2485 = vld [vmem:[%s2478 + $0x18] sm:$0xf]
        %v2486 = vld [vmem:[%s2478 + $0x1c] sm:$0xf]
        %v2487 = vld [vmem:[%s2478 + $0x20] sm:$0xf]
        %v2488 = vld [vmem:[%s2478 + $0x24] sm:$0xf]
        %v2489 = vld [vmem:[%s2478 + $0x28] sm:$0xf]
        %v2490 = vld [vmem:[%s2478 + $0x2c] sm:$0xf]
        %v2491 = vld [vmem:[%s2478 + $0x30] sm:$0xf]
        %v2492 = vld [vmem:[%s2478 + $0x34] sm:$0xf]
        %v2493 = vld [vmem:[%s2478 + $0x38] sm:$0xf]
        %v2494 = vld [vmem:[%s2478 + $0x3c] sm:$0xf]
        %v2495 = vld [vmem:[%s2478 + $0x40] sm:$0xf]
        %v2496 = vld [vmem:[%s2478 + $0x44] sm:$0xf]
        %v2497 = vld [vmem:[%s2478 + $0x48] sm:$0xf]
        %v2498 = vld [vmem:[%s2478 + $0x4c] sm:$0xf]
        %v2499 = vld [vmem:[%s2478 + $0x50] sm:$0xf]
        %v2500 = vld [vmem:[%s2478 + $0x54] sm:$0xf]
        %v2501 = vld [vmem:[%s2478 + $0x58] sm:$0xf]
        %v2502 = vld [vmem:[%s2478 + $0x5c] sm:$0xf]
        %v2503 = vld [vmem:[%s2478 + $0x60] sm:$0xf]
        %v2504 = vld [vmem:[%s2478 + $0x64] sm:$0xf]
        %v2505 = vld [vmem:[%s2478 + $0x68] sm:$0xf]
        %v2506 = vld [vmem:[%s2478 + $0x6c] sm:$0xf]
        %v2507 = vld [vmem:[%s2478 + $0x70] sm:$0xf]
        %v2508 = vld [vmem:[%s2478 + $0x74] sm:$0xf]
        %v2509 = vld [vmem:[%s2478 + $0x78] sm:$0xf]
        %v2510 = vld [vmem:[%s2478 + $0x7c] sm:$0xf]
        %s2511 = scalar_lea.vmem %s8, 2
        %v2512 = vld [vmem:[%s2511] sm:$0x1]
        %v2513 = vld [vmem:[%s2511 + $0x1] sm:$0x1]
        %v2516 = vlaneseq
        %v2517 = vshrl.u32 %v2516, 7
        %v2518 = vsub.s32 0, %v2517
        %v2519 = vrot.slane %v2512, %v2518
        %v2520 = vlaneseq
        %v2521 = vshrl.u32 %v2520, 7
        %v2522 = vsub.s32 0, %v2521
        %v2523 = vrot.slane %v2513, %v2522
        %v2542 = vunpack.c.l.b16 %v2479
        %v2543 = vunpack.c.l.b16 %v2480
        %v2544 = vunpack.c.l.b16 %v2481
        %v2545 = vunpack.c.l.b16 %v2482
        %v2546 = vunpack.c.l.b16 %v2483
        %v2547 = vunpack.c.l.b16 %v2484
        %v2548 = vunpack.c.l.b16 %v2485
        %v2549 = vunpack.c.l.b16 %v2486
        %v2550 = vunpack.c.l.b16 %v2487
        %v2551 = vunpack.c.l.b16 %v2488
        %v2552 = vunpack.c.l.b16 %v2489
        %v2553 = vunpack.c.l.b16 %v2490
        %v2554 = vunpack.c.l.b16 %v2491
        %v2555 = vunpack.c.l.b16 %v2492
        %v2556 = vunpack.c.l.b16 %v2493
        %v2557 = vunpack.c.l.b16 %v2494
        %v2558 = vpack.c.b16 %v2543, %v2542
        %v2559 = vpack.c.b16 %v2545, %v2544
        %v2560 = vpack.c.b16 %v2547, %v2546
        %v2561 = vpack.c.b16 %v2549, %v2548
        %v2562 = vpack.c.b16 %v2551, %v2550
        %v2563 = vpack.c.b16 %v2553, %v2552
        %v2564 = vpack.c.b16 %v2555, %v2554
        %v2565 = vpack.c.b16 %v2557, %v2556
        %2574 = vmatprep.subr.bf16.mxu0 0
        %2575 = vmatpush1.bf16.msra.mxu0 %v2565
        %2576 = vmatprep.subr.bf16.mxu0 0
        %2577 = vmatpush1.bf16.msra.mxu0 %v2564
        %2578 = vmatprep.subr.bf16.mxu0 0
        %2579 = vmatpush1.bf16.msra.mxu0 %v2563
        %2580 = vmatprep.subr.bf16.mxu0 0
        %2581 = vmatpush1.bf16.msra.mxu0 %v2562
        %2582 = vmatprep.subr.bf16.mxu0 0
        %2583 = vmatpush1.bf16.msra.mxu0 %v2561
        %2584 = vmatprep.subr.bf16.mxu0 0
        %2585 = vmatpush1.bf16.msra.mxu0 %v2560
        %2586 = vmatprep.subr.bf16.mxu0 0
        %2587 = vmatpush1.bf16.msra.mxu0 %v2559
        %2588 = vmatprep.subr.bf16.mxu0 0
        %2589 = vmatpush1.bf16.msra.mxu0 %v2558
        %2590 = vmatprep.subr.bf16.mxu0 0
        %2591 = vmatpush2.bf16.msra.mxu0 0
        %2592 = vmatprep.subr.bf16.mxu0 0
        %2593 = vmatpush2.bf16.msra.mxu0 0
        %2594 = vmatprep.subr.bf16.mxu0 0
        %2595 = vmatpush2.bf16.msra.mxu0 0
        %2596 = vmatprep.subr.bf16.mxu0 0
        %2597 = vmatpush2.bf16.msra.mxu0 0
        %2598 = vmatprep.subr.bf16.mxu0 0
        %2599 = vmatpush2.bf16.msra.mxu0 0
        %2600 = vmatprep.subr.bf16.mxu0 0
        %2601 = vmatpush2.bf16.msra.mxu0 0
        %2602 = vmatprep.subr.bf16.mxu0 0
        %2603 = vmatpush2.bf16.msra.mxu0 0
        %2604 = vmatprep.subr.bf16.mxu0 0
        %2605 = vmatpush2.bf16.msra.mxu0 0
        %2606 = vmatprep.mubr.bf16.mxu0 0
        %2607 = vmatmul.mubr.bf16.gmra.mxu0 %v2029
        %v2608 = vpop.f32.mrf.mxu0
        %v2609 = vadd.f32 %v2519, %v2608
        %v2610 = vpop.f32.mrf.mxu0
        %v2611 = vpop.f32.mrf.mxu0
        %v2612 = vpop.f32.mrf.mxu0
        %2613 = vdwg.mxu0
        %v2630 = vunpack.c.l.b16 %v2495
        %v2631 = vunpack.c.l.b16 %v2496
        %v2632 = vunpack.c.l.b16 %v2497
        %v2633 = vunpack.c.l.b16 %v2498
        %v2634 = vunpack.c.l.b16 %v2499
        %v2635 = vunpack.c.l.b16 %v2500
        %v2636 = vunpack.c.l.b16 %v2501
        %v2637 = vunpack.c.l.b16 %v2502
        %v2638 = vunpack.c.l.b16 %v2503
        %v2639 = vunpack.c.l.b16 %v2504
        %v2640 = vunpack.c.l.b16 %v2505
        %v2641 = vunpack.c.l.b16 %v2506
        %v2642 = vunpack.c.l.b16 %v2507
        %v2643 = vunpack.c.l.b16 %v2508
        %v2644 = vunpack.c.l.b16 %v2509
        %v2645 = vunpack.c.l.b16 %v2510
        %v2646 = vpack.c.b16 %v2631, %v2630
        %v2647 = vpack.c.b16 %v2633, %v2632
        %v2648 = vpack.c.b16 %v2635, %v2634
        %v2649 = vpack.c.b16 %v2637, %v2636
        %v2650 = vpack.c.b16 %v2639, %v2638
        %v2651 = vpack.c.b16 %v2641, %v2640
        %v2652 = vpack.c.b16 %v2643, %v2642
        %v2653 = vpack.c.b16 %v2645, %v2644
        %2662 = vmatprep.subr.bf16.mxu0 0
        %2663 = vmatpush1.bf16.msra.mxu0 %v2653
        %2664 = vmatprep.subr.bf16.mxu0 0
        %2665 = vmatpush1.bf16.msra.mxu0 %v2652
        %2666 = vmatprep.subr.bf16.mxu0 0
        %2667 = vmatpush1.bf16.msra.mxu0 %v2651
        %2668 = vmatprep.subr.bf16.mxu0 0
        %2669 = vmatpush1.bf16.msra.mxu0 %v2650
        %2670 = vmatprep.subr.bf16.mxu0 0
        %2671 = vmatpush1.bf16.msra.mxu0 %v2649
        %2672 = vmatprep.subr.bf16.mxu0 0
        %2673 = vmatpush1.bf16.msra.mxu0 %v2648
        %2674 = vmatprep.subr.bf16.mxu0 0
        %2675 = vmatpush1.bf16.msra.mxu0 %v2647
        %2676 = vmatprep.subr.bf16.mxu0 0
        %2677 = vmatpush1.bf16.msra.mxu0 %v2646
        %2678 = vmatprep.subr.bf16.mxu0 0
        %2679 = vmatpush2.bf16.msra.mxu0 0
        %2680 = vmatprep.subr.bf16.mxu0 0
        %2681 = vmatpush2.bf16.msra.mxu0 0
        %2682 = vmatprep.subr.bf16.mxu0 0
        %2683 = vmatpush2.bf16.msra.mxu0 0
        %2684 = vmatprep.subr.bf16.mxu0 0
        %2685 = vmatpush2.bf16.msra.mxu0 0
        %2686 = vmatprep.subr.bf16.mxu0 0
        %2687 = vmatpush2.bf16.msra.mxu0 0
        %2688 = vmatprep.subr.bf16.mxu0 0
        %2689 = vmatpush2.bf16.msra.mxu0 0
        %2690 = vmatprep.subr.bf16.mxu0 0
        %2691 = vmatpush2.bf16.msra.mxu0 0
        %2692 = vmatprep.subr.bf16.mxu0 0
        %2693 = vmatpush2.bf16.msra.mxu0 0
        %2694 = vmatprep.mubr.bf16.mxu0 0
        %2695 = vmatmul.mubr.bf16.gmra.mxu0 %v2029
        %v2696 = vpop.f32.mrf.mxu0
        %v2697 = vadd.f32 %v2523, %v2696
        %v2698 = vpop.f32.mrf.mxu0
        %v2699 = vpop.f32.mrf.mxu0
        %v2700 = vpop.f32.mrf.mxu0
        %2701 = vdwg.mxu0
        %v2702 = vpack.c.bf16 %v2161, %v2161
        %v2703 = vpack.c.bf16 %v2249, %v2249
        %v2704 = vpack.c.bf16 %v2385, %v2385
        %v2705 = vpack.c.bf16 %v2473, %v2473
        %v2707 = vsel %vm1298, %v2702, 0
        %v2710 = vsel %vm1298, %v2704, 0
        %2712 = vmatprep.subr.bf16.mxu0 0
        %2713 = vmatpush1.bf16.xpose.msra.mxu0 0
        %2714 = vmatprep.subr.bf16.mxu0 0
        %2715 = vmatpush1.bf16.xpose.msra.mxu0 0
        %2716 = vmatprep.subr.bf16.mxu0 0
        %2717 = vmatpush1.bf16.xpose.msra.mxu0 0
        %2718 = vmatprep.subr.bf16.mxu0 0
        %2719 = vmatpush1.bf16.xpose.msra.mxu0 0
        %2720 = vmatprep.subr.bf16.mxu0 0
        %2721 = vmatpush1.bf16.xpose.msra.mxu0 0
        %2722 = vmatprep.subr.bf16.mxu0 0
        %2723 = vmatpush1.bf16.xpose.msra.mxu0 0
        %2724 = vmatprep.subr.bf16.mxu0 0
        %2725 = vmatpush1.bf16.xpose.msra.mxu0 0
        %2726 = vmatprep.subr.bf16.mxu0 0
        %2727 = vmatpush1.bf16.xpose.msra.mxu0 %v2710
        %2728 = vmatprep.subr.bf16.mxu0 0
        %2729 = vmatpush2.bf16.xpose.msra.mxu0 0
        %2730 = vmatprep.subr.bf16.mxu0 0
        %2731 = vmatpush2.bf16.xpose.msra.mxu0 0
        %2732 = vmatprep.subr.bf16.mxu0 0
        %2733 = vmatpush2.bf16.xpose.msra.mxu0 0
        %2734 = vmatprep.subr.bf16.mxu0 0
        %2735 = vmatpush2.bf16.xpose.msra.mxu0 0
        %2736 = vmatprep.subr.bf16.mxu0 0
        %2737 = vmatpush2.bf16.xpose.msra.mxu0 0
        %2738 = vmatprep.subr.bf16.mxu0 0
        %2739 = vmatpush2.bf16.xpose.msra.mxu0 0
        %2740 = vmatprep.subr.bf16.mxu0 0
        %2741 = vmatpush2.bf16.xpose.msra.mxu0 0
        %2742 = vmatprep.subr.bf16.mxu0 0
        %2743 = vmatpush2.bf16.xpose.msra.mxu0 0
        %2744 = vmatprep.mubr.bf16.mxu0 0
        %2745 = vmatmul.mubr.bf16.gmra.mxu0 %v2707
        %v2746 = vpop.f32.mrf.mxu0
        %v2747 = vadd.f32 0.0, %v2746
        %v2748 = vpop.f32.mrf.mxu0
        %v2749 = vpop.f32.mrf.mxu0
        %v2750 = vpop.f32.mrf.mxu0
        %2751 = vdwg.mxu0
        %v2753 = vsel %vm1298, %v2703, 0
        %v2756 = vsel %vm1298, %v2705, 0
        %2758 = vmatprep.subr.bf16.mxu0 0
        %2759 = vmatpush1.bf16.xpose.msra.mxu0 0
        %2760 = vmatprep.subr.bf16.mxu0 0
        %2761 = vmatpush1.bf16.xpose.msra.mxu0 0
        %2762 = vmatprep.subr.bf16.mxu0 0
        %2763 = vmatpush1.bf16.xpose.msra.mxu0 0
        %2764 = vmatprep.subr.bf16.mxu0 0
        %2765 = vmatpush1.bf16.xpose.msra.mxu0 0
        %2766 = vmatprep.subr.bf16.mxu0 0
        %2767 = vmatpush1.bf16.xpose.msra.mxu0 0
        %2768 = vmatprep.subr.bf16.mxu0 0
        %2769 = vmatpush1.bf16.xpose.msra.mxu0 0
        %2770 = vmatprep.subr.bf16.mxu0 0
        %2771 = vmatpush1.bf16.xpose.msra.mxu0 0
        %2772 = vmatprep.subr.bf16.mxu0 0
        %2773 = vmatpush1.bf16.xpose.msra.mxu0 %v2756
        %2774 = vmatprep.subr.bf16.mxu0 0
        %2775 = vmatpush2.bf16.xpose.msra.mxu0 0
        %2776 = vmatprep.subr.bf16.mxu0 0
        %2777 = vmatpush2.bf16.xpose.msra.mxu0 0
        %2778 = vmatprep.subr.bf16.mxu0 0
        %2779 = vmatpush2.bf16.xpose.msra.mxu0 0
        %2780 = vmatprep.subr.bf16.mxu0 0
        %2781 = vmatpush2.bf16.xpose.msra.mxu0 0
        %2782 = vmatprep.subr.bf16.mxu0 0
        %2783 = vmatpush2.bf16.xpose.msra.mxu0 0
        %2784 = vmatprep.subr.bf16.mxu0 0
        %2785 = vmatpush2.bf16.xpose.msra.mxu0 0
        %2786 = vmatprep.subr.bf16.mxu0 0
        %2787 = vmatpush2.bf16.xpose.msra.mxu0 0
        %2788 = vmatprep.subr.bf16.mxu0 0
        %2789 = vmatpush2.bf16.xpose.msra.mxu0 0
        %2790 = vmatprep.mubr.bf16.mxu0 0
        %2791 = vmatmul.mubr.bf16.gmra.mxu0 %v2753
        %v2792 = vpop.f32.mrf.mxu0
        %v2793 = vadd.f32 0.0, %v2792
        %v2794 = vpop.f32.mrf.mxu0
        %v2795 = vpop.f32.mrf.mxu0
        %v2796 = vpop.f32.mrf.mxu0
        %2797 = vdwg.mxu0
        %v2798 = vsel %vm1391, %v2747, -inf
        %2799 = vmax.xlane.f32.xlu0 %v2798
        %v2800 = vpop.xlane.xlu0 %2799
        %v2801 = vsel %vm1391, %v2793, -inf
        %2802 = vmax.xlane.f32.xlu0 %v2801
        %v2803 = vpop.xlane.xlu0 %2802
        %v2804 = vsub.f32 %v2747, %v2800
        %v2805 = vsub.f32 %v2793, %v2803
        %v2806 = vmul.f32 %v2804, 1.442695
        %v2807 = vpow.pop %v2806
        %v2808 = vmul.f32 %v2805, 1.442695
        %v2809 = vpow.pop %v2808
        %v2810 = vsel %vm1391, %v2807, 0.0
        %2811 = vadd.xlane.f32.xlu0 %v2810
        %v2812 = vpop.xlane.xlu0 %2811
        %v2813 = vsel %vm1391, %v2809, 0.0
        %2814 = vadd.xlane.f32.xlu0 %v2813
        %v2815 = vpop.xlane.xlu0 %2814
        %v2816 = vrcp.pop %v2812
        %v2817 = vrcp.pop %v2815
        %v2818 = vmul.f32 %v2807, %v2816
        %v2819 = vmul.f32 %v2809, %v2817
        %v2820 = vpack.c.bf16 %v2818, %v2818
        %v2821 = vpack.c.bf16 %v2819, %v2819
        %v2822 = vpack.c.bf16 %v2609, %v2609
        %v2823 = vpack.c.bf16 %v2697, %v2697
        %v2825 = vsel %vm1391, %v2820, 0
        %v2828 = vsel %vm1421, %v2822, 0
        %2830 = vmatprep.subr.bf16.mxu0 0
        %2831 = vmatpush1.bf16.msra.mxu0 0
        %2832 = vmatprep.subr.bf16.mxu0 0
        %2833 = vmatpush1.bf16.msra.mxu0 0
        %2834 = vmatprep.subr.bf16.mxu0 0
        %2835 = vmatpush1.bf16.msra.mxu0 0
        %2836 = vmatprep.subr.bf16.mxu0 0
        %2837 = vmatpush1.bf16.msra.mxu0 0
        %2838 = vmatprep.subr.bf16.mxu0 0
        %2839 = vmatpush1.bf16.msra.mxu0 0
        %2840 = vmatprep.subr.bf16.mxu0 0
        %2841 = vmatpush1.bf16.msra.mxu0 0
        %2842 = vmatprep.subr.bf16.mxu0 0
        %2843 = vmatpush1.bf16.msra.mxu0 0
        %2844 = vmatprep.subr.bf16.mxu0 0
        %2845 = vmatpush1.bf16.msra.mxu0 %v2828
        %2846 = vmatprep.subr.bf16.mxu0 0
        %2847 = vmatpush2.bf16.msra.mxu0 0
        %2848 = vmatprep.subr.bf16.mxu0 0
        %2849 = vmatpush2.bf16.msra.mxu0 0
        %2850 = vmatprep.subr.bf16.mxu0 0
        %2851 = vmatpush2.bf16.msra.mxu0 0
        %2852 = vmatprep.subr.bf16.mxu0 0
        %2853 = vmatpush2.bf16.msra.mxu0 0
        %2854 = vmatprep.subr.bf16.mxu0 0
        %2855 = vmatpush2.bf16.msra.mxu0 0
        %2856 = vmatprep.subr.bf16.mxu0 0
        %2857 = vmatpush2.bf16.msra.mxu0 0
        %2858 = vmatprep.subr.bf16.mxu0 0
        %2859 = vmatpush2.bf16.msra.mxu0 0
        %2860 = vmatprep.subr.bf16.mxu0 0
        %2861 = vmatpush2.bf16.msra.mxu0 0
        %2862 = vmatprep.mubr.bf16.mxu0 0
        %2863 = vmatmul.mubr.bf16.gmra.mxu0 %v2825
        %v2864 = vpop.f32.mrf.mxu0
        %v2865 = vadd.f32 0.0, %v2864
        %v2866 = vpop.f32.mrf.mxu0
        %v2867 = vpop.f32.mrf.mxu0
        %v2868 = vpop.f32.mrf.mxu0
        %2869 = vdwg.mxu0
        %v2871 = vsel %vm1391, %v2821, 0
        %v2874 = vsel %vm1421, %v2823, 0
        %2876 = vmatprep.subr.bf16.mxu0 0
        %2877 = vmatpush1.bf16.msra.mxu0 0
        %2878 = vmatprep.subr.bf16.mxu0 0
        %2879 = vmatpush1.bf16.msra.mxu0 0
        %2880 = vmatprep.subr.bf16.mxu0 0
        %2881 = vmatpush1.bf16.msra.mxu0 0
        %2882 = vmatprep.subr.bf16.mxu0 0
        %2883 = vmatpush1.bf16.msra.mxu0 0
        %2884 = vmatprep.subr.bf16.mxu0 0
        %2885 = vmatpush1.bf16.msra.mxu0 0
        %2886 = vmatprep.subr.bf16.mxu0 0
        %2887 = vmatpush1.bf16.msra.mxu0 0
        %2888 = vmatprep.subr.bf16.mxu0 0
        %2889 = vmatpush1.bf16.msra.mxu0 0
        %2890 = vmatprep.subr.bf16.mxu0 0
        %2891 = vmatpush1.bf16.msra.mxu0 %v2874
        %2892 = vmatprep.subr.bf16.mxu0 0
        %2893 = vmatpush2.bf16.msra.mxu0 0
        %2894 = vmatprep.subr.bf16.mxu0 0
        %2895 = vmatpush2.bf16.msra.mxu0 0
        %2896 = vmatprep.subr.bf16.mxu0 0
        %2897 = vmatpush2.bf16.msra.mxu0 0
        %2898 = vmatprep.subr.bf16.mxu0 0
        %2899 = vmatpush2.bf16.msra.mxu0 0
        %2900 = vmatprep.subr.bf16.mxu0 0
        %2901 = vmatpush2.bf16.msra.mxu0 0
        %2902 = vmatprep.subr.bf16.mxu0 0
        %2903 = vmatpush2.bf16.msra.mxu0 0
        %2904 = vmatprep.subr.bf16.mxu0 0
        %2905 = vmatpush2.bf16.msra.mxu0 0
        %2906 = vmatprep.subr.bf16.mxu0 0
        %2907 = vmatpush2.bf16.msra.mxu0 0
        %2908 = vmatprep.mubr.bf16.mxu0 0
        %2909 = vmatmul.mubr.bf16.gmra.mxu0 %v2871
        %v2910 = vpop.f32.mrf.mxu0
        %v2911 = vadd.f32 0.0, %v2910
        %v2912 = vpop.f32.mrf.mxu0
        %v2913 = vpop.f32.mrf.mxu0
        %v2914 = vpop.f32.mrf.mxu0
        %2915 = vdwg.mxu0
        %2917 = vrot.lane.b32.xlu0 %v2911, 64
        %v2918 = vpop.permute.xlu0 %2917
        %v2920 = vsel %vm1298, %v2865, %v2918
        %v2921 = vpack.c.bf16 %v2920, %v2920
        %s2922 = scalar_lea.vmem %s9, 64
        %v2923 = vld [vmem:[%s2922] sm:$0xf]
        %v2924 = vld [vmem:[%s2922 + $0x4] sm:$0xf]
        %v2925 = vld [vmem:[%s2922 + $0x8] sm:$0xf]
        %v2926 = vld [vmem:[%s2922 + $0xc] sm:$0xf]
        %v2927 = vld [vmem:[%s2922 + $0x10] sm:$0xf]
        %v2928 = vld [vmem:[%s2922 + $0x14] sm:$0xf]
        %v2929 = vld [vmem:[%s2922 + $0x18] sm:$0xf]
        %v2930 = vld [vmem:[%s2922 + $0x1c] sm:$0xf]
        %v2931 = vld [vmem:[%s2922 + $0x20] sm:$0xf]
        %v2932 = vld [vmem:[%s2922 + $0x24] sm:$0xf]
        %v2933 = vld [vmem:[%s2922 + $0x28] sm:$0xf]
        %v2934 = vld [vmem:[%s2922 + $0x2c] sm:$0xf]
        %v2935 = vld [vmem:[%s2922 + $0x30] sm:$0xf]
        %v2936 = vld [vmem:[%s2922 + $0x34] sm:$0xf]
        %v2937 = vld [vmem:[%s2922 + $0x38] sm:$0xf]
        %v2938 = vld [vmem:[%s2922 + $0x3c] sm:$0xf]
        %s2939 = scalar_lea.vmem %s10, 1
        %v2940 = vld [vmem:[%s2939] sm:$0x1]
        %v2942 = vlaneseq
        %v2943 = vshrl.u32 %v2942, 7
        %v2944 = vsub.s32 0, %v2943
        %v2945 = vrot.slane %v2940, %v2944
        %v2963 = vunpack.c.l.b16 %v2923
        %v2964 = vunpack.c.l.b16 %v2924
        %v2965 = vunpack.c.l.b16 %v2925
        %v2966 = vunpack.c.l.b16 %v2926
        %v2967 = vunpack.c.l.b16 %v2927
        %v2968 = vunpack.c.l.b16 %v2928
        %v2969 = vunpack.c.l.b16 %v2929
        %v2970 = vunpack.c.l.b16 %v2930
        %v2971 = vunpack.c.l.b16 %v2931
        %v2972 = vunpack.c.l.b16 %v2932
        %v2973 = vunpack.c.l.b16 %v2933
        %v2974 = vunpack.c.l.b16 %v2934
        %v2975 = vunpack.c.l.b16 %v2935
        %v2976 = vunpack.c.l.b16 %v2936
        %v2977 = vunpack.c.l.b16 %v2937
        %v2978 = vunpack.c.l.b16 %v2938
        %v2979 = vpack.c.b16 %v2964, %v2963
        %v2980 = vpack.c.b16 %v2966, %v2965
        %v2981 = vpack.c.b16 %v2968, %v2967
        %v2982 = vpack.c.b16 %v2970, %v2969
        %v2983 = vpack.c.b16 %v2972, %v2971
        %v2984 = vpack.c.b16 %v2974, %v2973
        %v2985 = vpack.c.b16 %v2976, %v2975
        %v2986 = vpack.c.b16 %v2978, %v2977
        %2995 = vmatprep.subr.bf16.mxu0 0
        %2996 = vmatpush1.bf16.msra.mxu0 %v2986
        %2997 = vmatprep.subr.bf16.mxu0 0
        %2998 = vmatpush1.bf16.msra.mxu0 %v2985
        %2999 = vmatprep.subr.bf16.mxu0 0
        %3000 = vmatpush1.bf16.msra.mxu0 %v2984
        %3001 = vmatprep.subr.bf16.mxu0 0
        %3002 = vmatpush1.bf16.msra.mxu0 %v2983
        %3003 = vmatprep.subr.bf16.mxu0 0
        %3004 = vmatpush1.bf16.msra.mxu0 %v2982
        %3005 = vmatprep.subr.bf16.mxu0 0
        %3006 = vmatpush1.bf16.msra.mxu0 %v2981
        %3007 = vmatprep.subr.bf16.mxu0 0
        %3008 = vmatpush1.bf16.msra.mxu0 %v2980
        %3009 = vmatprep.subr.bf16.mxu0 0
        %3010 = vmatpush1.bf16.msra.mxu0 %v2979
        %3011 = vmatprep.subr.bf16.mxu0 0
        %3012 = vmatpush2.bf16.msra.mxu0 0
        %3013 = vmatprep.subr.bf16.mxu0 0
        %3014 = vmatpush2.bf16.msra.mxu0 0
        %3015 = vmatprep.subr.bf16.mxu0 0
        %3016 = vmatpush2.bf16.msra.mxu0 0
        %3017 = vmatprep.subr.bf16.mxu0 0
        %3018 = vmatpush2.bf16.msra.mxu0 0
        %3019 = vmatprep.subr.bf16.mxu0 0
        %3020 = vmatpush2.bf16.msra.mxu0 0
        %3021 = vmatprep.subr.bf16.mxu0 0
        %3022 = vmatpush2.bf16.msra.mxu0 0
        %3023 = vmatprep.subr.bf16.mxu0 0
        %3024 = vmatpush2.bf16.msra.mxu0 0
        %3025 = vmatprep.subr.bf16.mxu0 0
        %3026 = vmatpush2.bf16.msra.mxu0 0
        %3027 = vmatprep.mubr.bf16.mxu0 0
        %3028 = vmatmul.mubr.bf16.gmra.mxu0 %v2921
        %v3029 = vpop.f32.mrf.mxu0
        %v3030 = vadd.f32 %v2945, %v3029
        %v3031 = vpop.f32.mrf.mxu0
        %v3032 = vpop.f32.mrf.mxu0
        %v3033 = vpop.f32.mrf.mxu0
        %3034 = vdwg.mxu0
        %v3035 = vadd.f32 %v2028, %v3030
        %s3036 = scalar_lea.vmem %s11, 1
        %v3037 = vld [vmem:[%s3036] sm:$0x1]
        %s3038 = scalar_lea.vmem %s12, 1
        %v3039 = vld [vmem:[%s3038] sm:$0x1]
        %3040 = vadd.xlane.f32.xlu0 %v3035
        %v3041 = vpop.xlane.xlu0 %3040
        %v3042 = vmul.f32 %v3041, %v603
        %v3043 = vsub.f32 %v3035, %v3042
        %v3044 = vmul.f32 %v3043, %v3043
        %3045 = vadd.xlane.f32.xlu0 %v3044
        %v3046 = vpop.xlane.xlu0 %3045
        %v3047 = vmul.f32 %v3046, %v603
        %v3048 = vadd.f32 %v3047, 1e-12
        %v3049 = vrsqrt.pop %v3048
        %v3050 = vmul.f32 %v3043, %v3049
        %v3052 = vlaneseq
        %v3053 = vshrl.u32 %v3052, 7
        %v3054 = vsub.s32 0, %v3053
        %v3055 = vrot.slane %v3037, %v3054
        %v3057 = vmul.f32 %v3050, %v3055
        %v3059 = vlaneseq
        %v3060 = vshrl.u32 %v3059, 7
        %v3061 = vsub.s32 0, %v3060
        %v3062 = vrot.slane %v3039, %v3061
        %v3064 = vadd.f32 %v3057, %v3062
        %v3065 = vpack.c.bf16 %v3064, %v3064
        %s3066 = scalar_lea.vmem %s13, 128
        %v3067 = vld [vmem:[%s3066] sm:$0xff]
        %v3068 = vld [vmem:[%s3066 + $0x8] sm:$0xff]
        %v3069 = vld [vmem:[%s3066 + $0x10] sm:$0xff]
        %v3070 = vld [vmem:[%s3066 + $0x18] sm:$0xff]
        %v3071 = vld [vmem:[%s3066 + $0x20] sm:$0xff]
        %v3072 = vld [vmem:[%s3066 + $0x28] sm:$0xff]
        %v3073 = vld [vmem:[%s3066 + $0x30] sm:$0xff]
        %v3074 = vld [vmem:[%s3066 + $0x38] sm:$0xff]
        %v3075 = vld [vmem:[%s3066 + $0x40] sm:$0xff]
        %v3076 = vld [vmem:[%s3066 + $0x48] sm:$0xff]
        %v3077 = vld [vmem:[%s3066 + $0x50] sm:$0xff]
        %v3078 = vld [vmem:[%s3066 + $0x58] sm:$0xff]
        %v3079 = vld [vmem:[%s3066 + $0x60] sm:$0xff]
        %v3080 = vld [vmem:[%s3066 + $0x68] sm:$0xff]
        %v3081 = vld [vmem:[%s3066 + $0x70] sm:$0xff]
        %v3082 = vld [vmem:[%s3066 + $0x78] sm:$0xff]
        %s3083 = scalar_lea.vmem %s14, 2
        %v3084 = vld [vmem:[%s3083] sm:$0x3]
        %v3086 = vlaneseq
        %v3087 = vshrl.u32 %v3086, 7
        %v3088 = vsub.s32 0, %v3087
        %v3089 = vrot.slane %v3084, %v3088
        %v3090 = vlaneseq
        %v3091 = vshrl.u32 %v3090, 7
        %v3092 = vsub.s32 1, %v3091
        %v3093 = vrot.slane %v3084, %v3092
        %v3112 = vunpack.c.l.b16 %v3067
        %v3113 = vunpack.c.h.b16 %v3067
        %v3114 = vunpack.c.l.b16 %v3068
        %v3115 = vunpack.c.h.b16 %v3068
        %v3116 = vunpack.c.l.b16 %v3069
        %v3117 = vunpack.c.h.b16 %v3069
        %v3118 = vunpack.c.l.b16 %v3070
        %v3119 = vunpack.c.h.b16 %v3070
        %v3120 = vunpack.c.l.b16 %v3071
        %v3121 = vunpack.c.h.b16 %v3071
        %v3122 = vunpack.c.l.b16 %v3072
        %v3123 = vunpack.c.h.b16 %v3072
        %v3124 = vunpack.c.l.b16 %v3073
        %v3125 = vunpack.c.h.b16 %v3073
        %v3126 = vunpack.c.l.b16 %v3074
        %v3127 = vunpack.c.h.b16 %v3074
        %v3128 = vunpack.c.l.b16 %v3075
        %v3129 = vunpack.c.h.b16 %v3075
        %v3130 = vunpack.c.l.b16 %v3076
        %v3131 = vunpack.c.h.b16 %v3076
        %v3132 = vunpack.c.l.b16 %v3077
        %v3133 = vunpack.c.h.b16 %v3077
        %v3134 = vunpack.c.l.b16 %v3078
        %v3135 = vunpack.c.h.b16 %v3078
        %v3136 = vunpack.c.l.b16 %v3079
        %v3137 = vunpack.c.h.b16 %v3079
        %v3138 = vunpack.c.l.b16 %v3080
        %v3139 = vunpack.c.h.b16 %v3080
        %v3140 = vunpack.c.l.b16 %v3081
        %v3141 = vunpack.c.h.b16 %v3081
        %v3142 = vunpack.c.l.b16 %v3082
        %v3143 = vunpack.c.h.b16 %v3082
        %v3144 = vpack.c.b16 %v3114, %v3112
        %v3145 = vpack.c.b16 %v3115, %v3113
        %v3146 = vpack.c.b16 %v3118, %v3116
        %v3147 = vpack.c.b16 %v3119, %v3117
        %v3148 = vpack.c.b16 %v3122, %v3120
        %v3149 = vpack.c.b16 %v3123, %v3121
        %v3150 = vpack.c.b16 %v3126, %v3124
        %v3151 = vpack.c.b16 %v3127, %v3125
        %v3152 = vpack.c.b16 %v3130, %v3128
        %v3153 = vpack.c.b16 %v3131, %v3129
        %v3154 = vpack.c.b16 %v3134, %v3132
        %v3155 = vpack.c.b16 %v3135, %v3133
        %v3156 = vpack.c.b16 %v3138, %v3136
        %v3157 = vpack.c.b16 %v3139, %v3137
        %v3158 = vpack.c.b16 %v3142, %v3140
        %v3159 = vpack.c.b16 %v3143, %v3141
        %3176 = vmatprep.subr.bf16.mxu0 %v3159
        %3177 = vmatpush1.bf16.msra.mxu0 %v3158
        %3178 = vmatprep.subr.bf16.mxu0 %v3157
        %3179 = vmatpush1.bf16.msra.mxu0 %v3156
        %3180 = vmatprep.subr.bf16.mxu0 %v3155
        %3181 = vmatpush1.bf16.msra.mxu0 %v3154
        %3182 = vmatprep.subr.bf16.mxu0 %v3153
        %3183 = vmatpush1.bf16.msra.mxu0 %v3152
        %3184 = vmatprep.subr.bf16.mxu0 %v3151
        %3185 = vmatpush1.bf16.msra.mxu0 %v3150
        %3186 = vmatprep.subr.bf16.mxu0 %v3149
        %3187 = vmatpush1.bf16.msra.mxu0 %v3148
        %3188 = vmatprep.subr.bf16.mxu0 %v3147
        %3189 = vmatpush1.bf16.msra.mxu0 %v3146
        %3190 = vmatprep.subr.bf16.mxu0 %v3145
        %3191 = vmatpush1.bf16.msra.mxu0 %v3144
        %3192 = vmatprep.subr.bf16.mxu0 0
        %3193 = vmatpush2.bf16.msra.mxu0 0
        %3194 = vmatprep.subr.bf16.mxu0 0
        %3195 = vmatpush2.bf16.msra.mxu0 0
        %3196 = vmatprep.subr.bf16.mxu0 0
        %3197 = vmatpush2.bf16.msra.mxu0 0
        %3198 = vmatprep.subr.bf16.mxu0 0
        %3199 = vmatpush2.bf16.msra.mxu0 0
        %3200 = vmatprep.subr.bf16.mxu0 0
        %3201 = vmatpush2.bf16.msra.mxu0 0
        %3202 = vmatprep.subr.bf16.mxu0 0
        %3203 = vmatpush2.bf16.msra.mxu0 0
        %3204 = vmatprep.subr.bf16.mxu0 0
        %3205 = vmatpush2.bf16.msra.mxu0 0
        %3206 = vmatprep.subr.bf16.mxu0 0
        %3207 = vmatpush2.bf16.msra.mxu0 0
        %3208 = vmatprep.mubr.bf16.mxu0 0
        %3209 = vmatmul.mubr.bf16.gmra.mxu0 %v3065
        %v3210 = vpop.f32.mrf.mxu0
        %v3211 = vadd.f32 %v3089, %v3210
        %v3212 = vpop.f32.mrf.mxu0
        %v3213 = vadd.f32 %v3093, %v3212
        %v3214 = vpop.f32.mrf.mxu0
        %v3215 = vpop.f32.mrf.mxu0
        %3216 = vdwg.mxu0
        %v3217 = vmul.f32 %v3211, 0.5
        %v3218 = vmul.f32 %v3213, 0.5
        %v3219 = vmul.f32 %v3211, 0.044715
        %v3220 = vmul.f32 %v3213, 0.044715
        %v3221 = vmul.f32 %v3219, %v3211
        %v3222 = vmul.f32 %v3220, %v3213
        %v3223 = vmul.f32 %v3221, %v3211
        %v3224 = vmul.f32 %v3222, %v3213
        %v3225 = vadd.f32 %v3211, %v3223
        %v3226 = vadd.f32 %v3213, %v3224
        %v3227 = vmul.f32 %v3225, 0.7978846
        %v3228 = vmul.f32 %v3226, 0.7978846
        %v3229 = vtanh.pop %v3227
        %v3230 = vtanh.pop %v3228
        %v3231 = vadd.f32 %v3229, 1.0
        %v3232 = vadd.f32 %v3230, 1.0
        %v3233 = vmul.f32 %v3217, %v3231
        %v3234 = vmul.f32 %v3218, %v3232
        %v3235 = vpack.c.bf16 %v3233, %v3233
        %v3236 = vpack.c.bf16 %v3234, %v3234
        %s3237 = scalar_lea.vmem %s15, 128
        %v3238 = vld [vmem:[%s3237] sm:$0xf]
        %v3239 = vld [vmem:[%s3237 + $0x4] sm:$0xf]
        %v3240 = vld [vmem:[%s3237 + $0x8] sm:$0xf]
        %v3241 = vld [vmem:[%s3237 + $0xc] sm:$0xf]
        %v3242 = vld [vmem:[%s3237 + $0x10] sm:$0xf]
        %v3243 = vld [vmem:[%s3237 + $0x14] sm:$0xf]
        %v3244 = vld [vmem:[%s3237 + $0x18] sm:$0xf]
        %v3245 = vld [vmem:[%s3237 + $0x1c] sm:$0xf]
        %v3246 = vld [vmem:[%s3237 + $0x20] sm:$0xf]
        %v3247 = vld [vmem:[%s3237 + $0x24] sm:$0xf]
        %v3248 = vld [vmem:[%s3237 + $0x28] sm:$0xf]
        %v3249 = vld [vmem:[%s3237 + $0x2c] sm:$0xf]
        %v3250 = vld [vmem:[%s3237 + $0x30] sm:$0xf]
        %v3251 = vld [vmem:[%s3237 + $0x34] sm:$0xf]
        %v3252 = vld [vmem:[%s3237 + $0x38] sm:$0xf]
        %v3253 = vld [vmem:[%s3237 + $0x3c] sm:$0xf]
        %v3254 = vld [vmem:[%s3237 + $0x40] sm:$0xf]
        %v3255 = vld [vmem:[%s3237 + $0x44] sm:$0xf]
        %v3256 = vld [vmem:[%s3237 + $0x48] sm:$0xf]
        %v3257 = vld [vmem:[%s3237 + $0x4c] sm:$0xf]
        %v3258 = vld [vmem:[%s3237 + $0x50] sm:$0xf]
        %v3259 = vld [vmem:[%s3237 + $0x54] sm:$0xf]
        %v3260 = vld [vmem:[%s3237 + $0x58] sm:$0xf]
        %v3261 = vld [vmem:[%s3237 + $0x5c] sm:$0xf]
        %v3262 = vld [vmem:[%s3237 + $0x60] sm:$0xf]
        %v3263 = vld [vmem:[%s3237 + $0x64] sm:$0xf]
        %v3264 = vld [vmem:[%s3237 + $0x68] sm:$0xf]
        %v3265 = vld [vmem:[%s3237 + $0x6c] sm:$0xf]
        %v3266 = vld [vmem:[%s3237 + $0x70] sm:$0xf]
        %v3267 = vld [vmem:[%s3237 + $0x74] sm:$0xf]
        %v3268 = vld [vmem:[%s3237 + $0x78] sm:$0xf]
        %v3269 = vld [vmem:[%s3237 + $0x7c] sm:$0xf]
        %s3270 = scalar_lea.vmem %s16, 1
        %v3271 = vld [vmem:[%s3270] sm:$0x1]
        %v3273 = vlaneseq
        %v3274 = vshrl.u32 %v3273, 7
        %v3275 = vsub.s32 0, %v3274
        %v3276 = vrot.slane %v3271, %v3275
        %v3310 = vunpack.c.l.b16 %v3238
        %v3311 = vunpack.c.l.b16 %v3239
        %v3312 = vunpack.c.l.b16 %v3240
        %v3313 = vunpack.c.l.b16 %v3241
        %v3314 = vunpack.c.l.b16 %v3242
        %v3315 = vunpack.c.l.b16 %v3243
        %v3316 = vunpack.c.l.b16 %v3244
        %v3317 = vunpack.c.l.b16 %v3245
        %v3318 = vunpack.c.l.b16 %v3246
        %v3319 = vunpack.c.l.b16 %v3247
        %v3320 = vunpack.c.l.b16 %v3248
        %v3321 = vunpack.c.l.b16 %v3249
        %v3322 = vunpack.c.l.b16 %v3250
        %v3323 = vunpack.c.l.b16 %v3251
        %v3324 = vunpack.c.l.b16 %v3252
        %v3325 = vunpack.c.l.b16 %v3253
        %v3326 = vunpack.c.l.b16 %v3254
        %v3327 = vunpack.c.l.b16 %v3255
        %v3328 = vunpack.c.l.b16 %v3256
        %v3329 = vunpack.c.l.b16 %v3257
        %v3330 = vunpack.c.l.b16 %v3258
        %v3331 = vunpack.c.l.b16 %v3259
        %v3332 = vunpack.c.l.b16 %v3260
        %v3333 = vunpack.c.l.b16 %v3261
        %v3334 = vunpack.c.l.b16 %v3262
        %v3335 = vunpack.c.l.b16 %v3263
        %v3336 = vunpack.c.l.b16 %v3264
        %v3337 = vunpack.c.l.b16 %v3265
        %v3338 = vunpack.c.l.b16 %v3266
        %v3339 = vunpack.c.l.b16 %v3267
        %v3340 = vunpack.c.l.b16 %v3268
        %v3341 = vunpack.c.l.b16 %v3269
        %v3342 = vpack.c.b16 %v3311, %v3310
        %v3343 = vpack.c.b16 %v3313, %v3312
        %v3344 = vpack.c.b16 %v3315, %v3314
        %v3345 = vpack.c.b16 %v3317, %v3316
        %v3346 = vpack.c.b16 %v3319, %v3318
        %v3347 = vpack.c.b16 %v3321, %v3320
        %v3348 = vpack.c.b16 %v3323, %v3322
        %v3349 = vpack.c.b16 %v3325, %v3324
        %v3350 = vpack.c.b16 %v3327, %v3326
        %v3351 = vpack.c.b16 %v3329, %v3328
        %v3352 = vpack.c.b16 %v3331, %v3330
        %v3353 = vpack.c.b16 %v3333, %v3332
        %v3354 = vpack.c.b16 %v3335, %v3334
        %v3355 = vpack.c.b16 %v3337, %v3336
        %v3356 = vpack.c.b16 %v3339, %v3338
        %v3357 = vpack.c.b16 %v3341, %v3340
        %3374 = vmatprep.subr.bf16.mxu0 0
        %3375 = vmatpush1.bf16.msra.mxu0 %v3349
        %3376 = vmatprep.subr.bf16.mxu0 0
        %3377 = vmatpush1.bf16.msra.mxu0 %v3348
        %3378 = vmatprep.subr.bf16.mxu0 0
        %3379 = vmatpush1.bf16.msra.mxu0 %v3347
        %3380 = vmatprep.subr.bf16.mxu0 0
        %3381 = vmatpush1.bf16.msra.mxu0 %v3346
        %3382 = vmatprep.subr.bf16.mxu0 0
        %3383 = vmatpush1.bf16.msra.mxu0 %v3345
        %3384 = vmatprep.subr.bf16.mxu0 0
        %3385 = vmatpush1.bf16.msra.mxu0 %v3344
        %3386 = vmatprep.subr.bf16.mxu0 0
        %3387 = vmatpush1.bf16.msra.mxu0 %v3343
        %3388 = vmatprep.subr.bf16.mxu0 0
        %3389 = vmatpush1.bf16.msra.mxu0 %v3342
        %3390 = vmatprep.subr.bf16.mxu0 0
        %3391 = vmatpush2.bf16.msra.mxu0 %v3357
        %3392 = vmatprep.subr.bf16.mxu0 0
        %3393 = vmatpush2.bf16.msra.mxu0 %v3356
        %3394 = vmatprep.subr.bf16.mxu0 0
        %3395 = vmatpush2.bf16.msra.mxu0 %v3355
        %3396 = vmatprep.subr.bf16.mxu0 0
        %3397 = vmatpush2.bf16.msra.mxu0 %v3354
        %3398 = vmatprep.subr.bf16.mxu0 0
        %3399 = vmatpush2.bf16.msra.mxu0 %v3353
        %3400 = vmatprep.subr.bf16.mxu0 0
        %3401 = vmatpush2.bf16.msra.mxu0 %v3352
        %3402 = vmatprep.subr.bf16.mxu0 0
        %3403 = vmatpush2.bf16.msra.mxu0 %v3351
        %3404 = vmatprep.subr.bf16.mxu0 0
        %3405 = vmatpush2.bf16.msra.mxu0 %v3350
        %3406 = vmatprep.mubr.bf16.mxu0 %v3236
        %3407 = vmatmul.mubr.bf16.gmra.mxu0 %v3235
        %v3408 = vpop.f32.mrf.mxu0
        %v3409 = vadd.f32 %v3276, %v3408
        %v3410 = vpop.f32.mrf.mxu0
        %v3411 = vpop.f32.mrf.mxu0
        %v3412 = vpop.f32.mrf.mxu0
        %3413 = vdwg.mxu0
        %v3414 = vadd.f32 %v3064, %v3409
        %s3415 = scalar_lea.vmem %s17, 1
        %v3416 = vld [vmem:[%s3415] sm:$0x1]
        %s3417 = scalar_lea.vmem %s18, 1
        %v3418 = vld [vmem:[%s3417] sm:$0x1]
        %3419 = vadd.xlane.f32.xlu0 %v3414
        %v3420 = vpop.xlane.xlu0 %3419
        %v3421 = vmul.f32 %v3420, %v603
        %v3422 = vsub.f32 %v3414, %v3421
        %v3423 = vmul.f32 %v3422, %v3422
        %3424 = vadd.xlane.f32.xlu0 %v3423
        %v3425 = vpop.xlane.xlu0 %3424
        %v3426 = vmul.f32 %v3425, %v603
        %v3427 = vadd.f32 %v3426, 1e-12
        %v3428 = vrsqrt.pop %v3427
        %v3429 = vmul.f32 %v3422, %v3428
        %v3431 = vlaneseq
        %v3432 = vshrl.u32 %v3431, 7
        %v3433 = vsub.s32 0, %v3432
        %v3434 = vrot.slane %v3416, %v3433
        %v3436 = vmul.f32 %v3429, %v3434
        %v3438 = vlaneseq
        %v3439 = vshrl.u32 %v3438, 7
        %v3440 = vsub.s32 0, %v3439
        %v3441 = vrot.slane %v3418, %v3440
        %v3443 = vadd.f32 %v3436, %v3441
        %3444 = vst [vmem:[%s592] sm:$0x1] %v3443
        %s3445 = sand.u32 %s445, 1
        %s3446 = scalar_lea.sflag [#allocation3], %s3445
        %s3447 = sand.u32 %s445, 1
        %s3448 = scalar_lea.vmem [#allocation2], %s3447
        // Predicated region
        $region97: #{dpr_question_encoder_forward.1} parent=95 // pred_check
          %p3449 = pneg %p455
        $region98: #{dpr_question_encoder_forward.1} parent=95 // pred_check_branch
          %3451 = sbr.rel (%p3449) target = $region100
        $region99: #{dpr_question_encoder_forward.1} parent=95 // pred_region
          %s3453 = ssub.s32 16, 16
          %3454 = vsyncadd %s3446, %s3453
          %s3455 = smul.addr %s33, 16
          %s3456 = scalar_lea.hbm %s19, %s3455
          %s3458 = sshll.u32 %s3448, 4
          %s3459 = int_to_ptr.vmem [resolvable:$true] %s3458
          %3461 = dma.vmem_to_hbm [thread:$0]  %s3459, 16, %s3456, %s3446
        $region100: #{dpr_question_encoder_forward.1} parent=95 // pred_fallthru
          _
      $region96: #{dpr_question_encoder_forward.1} parent=5 // pred_fallthru
        _
      %p3462 = scmp.le.s32.totalorder 2, %s28
      // Predicated region
      $region101: #{dpr_question_encoder_forward.1} parent=5 // pred_check
        %p3463 = pneg %p3462
      $region102: #{dpr_question_encoder_forward.1} parent=5 // pred_check_branch
        %3465 = sbr.rel (%p3463) target = $region104
      $region103: #{dpr_question_encoder_forward.1} parent=5 // pred_region
        %s3466 = ssub.s32 %s28, 2
        // Predicated region
        $region105: #{dpr_question_encoder_forward.1} parent=103 // pred_check
          %p3467 = pneg %p461
        $region106: #{dpr_question_encoder_forward.1} parent=103 // pred_check_branch
          %3469 = sbr.rel (%p3467) target = $region108
        $region107: #{dpr_question_encoder_forward.1} parent=103 // pred_region
          %s3470 = sand.u32 %s446, 1
          %s3471 = scalar_lea.sflag [#allocation3], %s3470
          %s3472 = sand.u32 %s446, 1
          %s3473 = scalar_lea.vmem [#allocation2], %s3472
          %3474 = dma.done %s3471, 16
        $region108: #{dpr_question_encoder_forward.1} parent=103 // pred_fallthru
          _
      $region104: #{dpr_question_encoder_forward.1} parent=5 // pred_fallthru
        _
    $region6: #{dpr_question_encoder_forward.1} parent=1 // loop_footer
      %s32 = sadd.s32 1, %s28
    $region7: #{dpr_question_encoder_forward.1} parent=1 // loop_footer_branch
      %27 = sbr.rel target = $region3
    $region8: #{dpr_question_encoder_forward.1} parent=1 // loop_exit
      _
    %3475 = vsyncpa [#allocation3], 1
    %s3476 = scalar_lea.sflag [#allocation3], 1
    %3477 = vsyncpa %s3476, 1

</llo_original>
